<compile_context>
chip_gen: v5e
topology: v5e:2x2
jax: 0.10.0
libtpu: 0.0.40
codegen_flags: <defaults>
</compile_context>

<pallas_src>
import functools

import jax
import jax.numpy as jnp
from jax.experimental import pallas as pl
from jax.experimental.pallas import tpu as pltpu

# Logical (PyTorch) layer dims and lane-padded dims used inside the kernel.
LAYER_DIMS = [784, 512, 256, 128, 64, 128, 256, 512, 784]
PAD_DIMS = [896, 512, 256, 128, 128, 128, 256, 512, 896]
N_LAYERS = len(LAYER_DIMS) - 1  # 8
RELU_LAYERS = (0, 1, 2, 4, 5, 6)  # hidden layers; 3 = latent (no act), 7 = sigmoid


def _round_up(x, m):
    return ((x + m - 1) // m) * m


def _cdiv(a, b):
    return -(-a // b)


def autoencoder_kernel(x_ref, *refs):
    """Fused 8-layer MLP autoencoder forward on one (TB, 896) batch tile.

    refs = (w0, b0, w1, b1, ..., w7, b7, out_ref)
    x is bf16, weights are bf16 (in, out) padded tiles, biases f32 (1, out).
    MXU matmuls run bf16 x bf16 -> f32; bias add / ReLU / sigmoid in f32;
    inter-layer h is carried in bf16 to halve VMEM spill traffic.
    """
    out_ref = refs[-1]
    param_refs = refs[:-1]

    h = x_ref[...]  # (TB, 896) bf16
    for i in range(N_LAYERS):
        w = param_refs[2 * i][...]        # (in_p, out_p) bf16
        b = param_refs[2 * i + 1][...]    # (1, out_p)    f32
        acc = jnp.dot(h, w, preferred_element_type=jnp.float32) + b
        if i in RELU_LAYERS:
            h = jnp.maximum(acc, 0.0).astype(jnp.bfloat16)
        elif i == N_LAYERS - 1:
            h = jax.nn.sigmoid(acc)       # final layer kept in f32
        else:  # i == 3: latent projection, no activation (padded lanes stay 0)
            h = acc.astype(jnp.bfloat16)
    out_ref[...] = h.astype(out_ref.dtype)


def init_params(key):
    """Deterministic f32 params at logical shapes (PyTorch nn.Linear-style
    uniform(-1/sqrt(fan_in), 1/sqrt(fan_in)) init), weights pre-transposed
    to (in, out)."""
    params = []
    for i in range(N_LAYERS):
        d_in, d_out = LAYER_DIMS[i], LAYER_DIMS[i + 1]
        key, kw, kb = jax.random.split(key, 3)
        bound = 1.0 / jnp.sqrt(jnp.float32(d_in))
        w_t = jax.random.uniform(kw, (d_in, d_out), jnp.float32, -bound, bound)
        b = jax.random.uniform(kb, (1, d_out), jnp.float32, -bound, bound)
        params.append((w_t, b))
    return params


def prepare_params(params):
    """Zero-pad weights/biases to lane-aligned shapes; cast weights to bf16."""
    flat = []
    for i, (w, b) in enumerate(params):
        d_in_p, d_out_p = PAD_DIMS[i], PAD_DIMS[i + 1]
        d_in, d_out = w.shape
        w_p = jnp.zeros((d_in_p, d_out_p), jnp.float32)
        w_p = w_p.at[:d_in, :d_out].set(w).astype(jnp.bfloat16)
        b_p = jnp.zeros((1, d_out_p), jnp.float32)
        b_p = b_p.at[:, :d_out].set(b)
        flat += [w_p, b_p]
    return flat


def _choose_tile(B, max_tb):
    """Pick batch tile TB (multiple of 8) minimizing padding waste and, when
    the batch allows, giving >= 2 grid steps so v7x's two TCs both get work."""
    B8 = _round_up(max(B, 1), 8)
    n_steps = max(_cdiv(B8, max_tb), 1)
    if n_steps < 2 and B8 >= 16:          # dual-TC occupancy on v7x
        n_steps = 2
    TB = _round_up(_cdiv(B8, n_steps), 8)
    B_pad = _round_up(B8, TB)
    return TB, B_pad


@functools.partial(jax.jit, static_argnames=("tb",))
def autoencoder_forward(x_nchw, flat_params, *, tb=256):
    # NOTE: keep tb <= 256 on v5e; 512 is viable on v6e/v7x (re-budget VMEM).
    B = x_nchw.shape[0]
    x = x_nchw.reshape(B, -1)                               # (B, 784)
    d_in, d_out = PAD_DIMS[0], PAD_DIMS[-1]

    TB, B_pad = _choose_tile(B, tb)
    # bf16 input tile: halves input DMA + x double-buffer VMEM; the first MXU
    # matmul consumes bf16 anyway, so this loses no accuracy.
    x_p = jnp.zeros((B_pad, d_in), jnp.bfloat16)
    x_p = x_p.at[:B, :x.shape[1]].set(x.astype(jnp.bfloat16))

    in_specs = [pl.BlockSpec((TB, d_in), lambda gi: (gi, 0))]
    for i in range(N_LAYERS):
        # Constant index_map -> weight/bias blocks stay VMEM-resident across
        # grid steps; Buffered(1) avoids double-buffering constant data.
        in_specs.append(pl.BlockSpec((PAD_DIMS[i], PAD_DIMS[i + 1]),
                                     lambda gi: (0, 0),
                                     pipeline_mode=pl.Buffered(1)))
        in_specs.append(pl.BlockSpec((1, PAD_DIMS[i + 1]),
                                     lambda gi: (0, 0),
                                     pipeline_mode=pl.Buffered(1)))

    out_flat = pl.pallas_call(
        autoencoder_kernel,
        out_shape=jax.ShapeDtypeStruct((B_pad, d_out), jnp.float32),
        grid=(B_pad // TB,),
        in_specs=in_specs,
        out_specs=pl.BlockSpec((TB, d_out), lambda gi: (gi, 0)),
        compiler_params=pltpu.CompilerParams(
            dimension_semantics=("parallel",),
            vmem_limit_bytes=32 << 20,
        ),
    )(x_p, *flat_params)

    # Strip batch + lane padding (padded lanes/rows hold sigmoid(0)=0.5),
    # back to NCHW.
    return out_flat[:B, :LAYER_DIMS[-1]].reshape(B, 1, 28, 28)


def autoencoder_reference(x_nchw, params):
    """Pure-JAX reference with the same bf16-activation / bf16-weight /
    f32-accumulate math as the kernel."""
    B = x_nchw.shape[0]
    h = x_nchw.reshape(B, -1).astype(jnp.bfloat16)
    for i, (w, b) in enumerate(params):
        acc = jnp.dot(h, w.astype(jnp.bfloat16),
                      preferred_element_type=jnp.float32) + b
        if i in RELU_LAYERS:
            h = jnp.maximum(acc, 0.0).astype(jnp.bfloat16)
        elif i == N_LAYERS - 1:
            h = jax.nn.sigmoid(acc)
        else:
            h = acc.astype(jnp.bfloat16)
    return h.reshape(B, 1, 28, 28)


if __name__ == "__main__":
    key = jax.random.PRNGKey(0)
    key, kx = jax.random.split(key)

    B = 2
    x = jax.random.uniform(kx, (B, 1, 28, 28), jnp.float32)  # MNIST-like input
    params = init_params(key)
    flat_params = prepare_params(params)

    out = autoencoder_forward(x, flat_params)
    out = jax.block_until_ready(out)

    ref = autoencoder_reference(x, params)
    assert out.shape == (B, 1, 28, 28), out.shape
    max_err = float(jnp.max(jnp.abs(out - ref)))
    assert jnp.allclose(out, ref, atol=5e-3, rtol=5e-3), max_err

    print("KERNEL_OK")
</pallas_src>

<mosaic_0001>
module attributes {stable_mosaic.version = 11 : i64} {
  func.func @autoencoder_kernel(%arg0: i32, %arg1: memref<8x896xbf16, #tpu.memory_space<vmem>>, %arg2: memref<896x512xbf16, #tpu.memory_space<vmem>>, %arg3: memref<1x512xf32, #tpu.memory_space<vmem>>, %arg4: memref<512x256xbf16, #tpu.memory_space<vmem>>, %arg5: memref<1x256xf32, #tpu.memory_space<vmem>>, %arg6: memref<256x128xbf16, #tpu.memory_space<vmem>>, %arg7: memref<1x128xf32, #tpu.memory_space<vmem>>, %arg8: memref<128x128xbf16, #tpu.memory_space<vmem>>, %arg9: memref<1x128xf32, #tpu.memory_space<vmem>>, %arg10: memref<128x128xbf16, #tpu.memory_space<vmem>>, %arg11: memref<1x128xf32, #tpu.memory_space<vmem>>, %arg12: memref<128x256xbf16, #tpu.memory_space<vmem>>, %arg13: memref<1x256xf32, #tpu.memory_space<vmem>>, %arg14: memref<256x512xbf16, #tpu.memory_space<vmem>>, %arg15: memref<1x512xf32, #tpu.memory_space<vmem>>, %arg16: memref<512x896xbf16, #tpu.memory_space<vmem>>, %arg17: memref<1x896xf32, #tpu.memory_space<vmem>>, %arg18: memref<8x896xf32, #tpu.memory_space<vmem>>) attributes {dimension_semantics = [#tpu.dimension_semantics<parallel>], iteration_bounds = array<i64: 1>, scalar_prefetch = 0 : i64, scratch_operands = 0 : i64, tpu.core_type = #tpu.core_type<tc>, window_params = [{transform_indices = @transform_0, window_bounds = array<i64: 8, 896>}, {pipeline_mode = #tpu.pipeline_mode<synchronous>, transform_indices = @transform_1, window_bounds = array<i64: 896, 512>}, {pipeline_mode = #tpu.pipeline_mode<synchronous>, transform_indices = @transform_2, window_bounds = array<i64: 1, 512>}, {pipeline_mode = #tpu.pipeline_mode<synchronous>, transform_indices = @transform_3, window_bounds = array<i64: 512, 256>}, {pipeline_mode = #tpu.pipeline_mode<synchronous>, transform_indices = @transform_4, window_bounds = array<i64: 1, 256>}, {pipeline_mode = #tpu.pipeline_mode<synchronous>, transform_indices = @transform_5, window_bounds = array<i64: 256, 128>}, {pipeline_mode = #tpu.pipeline_mode<synchronous>, transform_indices = @transform_6, window_bounds = array<i64: 1, 128>}, {pipeline_mode = #tpu.pipeline_mode<synchronous>, transform_indices = @transform_7, window_bounds = array<i64: 128, 128>}, {pipeline_mode = #tpu.pipeline_mode<synchronous>, transform_indices = @transform_8, window_bounds = array<i64: 1, 128>}, {pipeline_mode = #tpu.pipeline_mode<synchronous>, transform_indices = @transform_9, window_bounds = array<i64: 128, 128>}, {pipeline_mode = #tpu.pipeline_mode<synchronous>, transform_indices = @transform_10, window_bounds = array<i64: 1, 128>}, {pipeline_mode = #tpu.pipeline_mode<synchronous>, transform_indices = @transform_11, window_bounds = array<i64: 128, 256>}, {pipeline_mode = #tpu.pipeline_mode<synchronous>, transform_indices = @transform_12, window_bounds = array<i64: 1, 256>}, {pipeline_mode = #tpu.pipeline_mode<synchronous>, transform_indices = @transform_13, window_bounds = array<i64: 256, 512>}, {pipeline_mode = #tpu.pipeline_mode<synchronous>, transform_indices = @transform_14, window_bounds = array<i64: 1, 512>}, {pipeline_mode = #tpu.pipeline_mode<synchronous>, transform_indices = @transform_15, window_bounds = array<i64: 512, 896>}, {pipeline_mode = #tpu.pipeline_mode<synchronous>, transform_indices = @transform_16, window_bounds = array<i64: 1, 896>}, {transform_indices = @transform_17, window_bounds = array<i64: 8, 896>}]} {
    %c0 = arith.constant 0 : index
    %c0_0 = arith.constant 0 : index
    %0 = vector.load %arg1[%c0, %c0_0] : memref<8x896xbf16, #tpu.memory_space<vmem>>, vector<8x896xbf16>
    %c0_1 = arith.constant 0 : index
    %c0_2 = arith.constant 0 : index
    %1 = vector.load %arg2[%c0_1, %c0_2] : memref<896x512xbf16, #tpu.memory_space<vmem>>, vector<896x512xbf16>
    %c0_3 = arith.constant 0 : index
    %c0_4 = arith.constant 0 : index
    %2 = vector.load %arg3[%c0_3, %c0_4] : memref<1x512xf32, #tpu.memory_space<vmem>>, vector<1x512xf32>
    %cst = arith.constant dense<0.000000e+00> : vector<8x512xf32>
    %3 = tpu.matmul %0, %1, %cst {dimension_numbers = #tpu.dot_dimension_numbers<[1], [0], [0], [1], [0, 0, 1, 1], [], []>} : vector<8x896xbf16>, vector<896x512xbf16>, vector<8x512xf32> -> vector<8x512xf32>
    %4 = vector.broadcast %2 : vector<1x512xf32> to vector<8x512xf32>
    %5 = arith.addf %3, %4 : vector<8x512xf32>
    %cst_5 = arith.constant 0.000000e+00 : f32
    %6 = vector.broadcast %cst_5 : f32 to vector<8x512xf32>
    %7 = arith.maximumf %5, %6 : vector<8x512xf32>
    %8 = arith.truncf %7 : vector<8x512xf32> to vector<8x512xbf16>
    %c0_6 = arith.constant 0 : index
    %c0_7 = arith.constant 0 : index
    %9 = vector.load %arg4[%c0_6, %c0_7] : memref<512x256xbf16, #tpu.memory_space<vmem>>, vector<512x256xbf16>
    %c0_8 = arith.constant 0 : index
    %c0_9 = arith.constant 0 : index
    %10 = vector.load %arg5[%c0_8, %c0_9] : memref<1x256xf32, #tpu.memory_space<vmem>>, vector<1x256xf32>
    %cst_10 = arith.constant dense<0.000000e+00> : vector<8x256xf32>
    %11 = tpu.matmul %8, %9, %cst_10 {dimension_numbers = #tpu.dot_dimension_numbers<[1], [0], [0], [1], [0, 0, 1, 1], [], []>} : vector<8x512xbf16>, vector<512x256xbf16>, vector<8x256xf32> -> vector<8x256xf32>
    %12 = vector.broadcast %10 : vector<1x256xf32> to vector<8x256xf32>
    %13 = arith.addf %11, %12 : vector<8x256xf32>
    %cst_11 = arith.constant 0.000000e+00 : f32
    %14 = vector.broadcast %cst_11 : f32 to vector<8x256xf32>
    %15 = arith.maximumf %13, %14 : vector<8x256xf32>
    %16 = arith.truncf %15 : vector<8x256xf32> to vector<8x256xbf16>
    %c0_12 = arith.constant 0 : index
    %c0_13 = arith.constant 0 : index
    %17 = vector.load %arg6[%c0_12, %c0_13] : memref<256x128xbf16, #tpu.memory_space<vmem>>, vector<256x128xbf16>
    %c0_14 = arith.constant 0 : index
    %c0_15 = arith.constant 0 : index
    %18 = vector.load %arg7[%c0_14, %c0_15] : memref<1x128xf32, #tpu.memory_space<vmem>>, vector<1x128xf32>
    %cst_16 = arith.constant dense<0.000000e+00> : vector<8x128xf32>
    %19 = tpu.matmul %16, %17, %cst_16 {dimension_numbers = #tpu.dot_dimension_numbers<[1], [0], [0], [1], [0, 0, 1, 1], [], []>} : vector<8x256xbf16>, vector<256x128xbf16>, vector<8x128xf32> -> vector<8x128xf32>
    %20 = vector.broadcast %18 : vector<1x128xf32> to vector<8x128xf32>
    %21 = arith.addf %19, %20 : vector<8x128xf32>
    %cst_17 = arith.constant 0.000000e+00 : f32
    %22 = vector.broadcast %cst_17 : f32 to vector<8x128xf32>
    %23 = arith.maximumf %21, %22 : vector<8x128xf32>
    %24 = arith.truncf %23 : vector<8x128xf32> to vector<8x128xbf16>
    %c0_18 = arith.constant 0 : index
    %c0_19 = arith.constant 0 : index
    %25 = vector.load %arg8[%c0_18, %c0_19] : memref<128x128xbf16, #tpu.memory_space<vmem>>, vector<128x128xbf16>
    %c0_20 = arith.constant 0 : index
    %c0_21 = arith.constant 0 : index
    %26 = vector.load %arg9[%c0_20, %c0_21] : memref<1x128xf32, #tpu.memory_space<vmem>>, vector<1x128xf32>
    %cst_22 = arith.constant dense<0.000000e+00> : vector<8x128xf32>
    %27 = tpu.matmul %24, %25, %cst_22 {dimension_numbers = #tpu.dot_dimension_numbers<[1], [0], [0], [1], [0, 0, 1, 1], [], []>} : vector<8x128xbf16>, vector<128x128xbf16>, vector<8x128xf32> -> vector<8x128xf32>
    %28 = vector.broadcast %26 : vector<1x128xf32> to vector<8x128xf32>
    %29 = arith.addf %27, %28 : vector<8x128xf32>
    %30 = arith.truncf %29 : vector<8x128xf32> to vector<8x128xbf16>
    %c0_23 = arith.constant 0 : index
    %c0_24 = arith.constant 0 : index
    %31 = vector.load %arg10[%c0_23, %c0_24] : memref<128x128xbf16, #tpu.memory_space<vmem>>, vector<128x128xbf16>
    %c0_25 = arith.constant 0 : index
    %c0_26 = arith.constant 0 : index
    %32 = vector.load %arg11[%c0_25, %c0_26] : memref<1x128xf32, #tpu.memory_space<vmem>>, vector<1x128xf32>
    %cst_27 = arith.constant dense<0.000000e+00> : vector<8x128xf32>
    %33 = tpu.matmul %30, %31, %cst_27 {dimension_numbers = #tpu.dot_dimension_numbers<[1], [0], [0], [1], [0, 0, 1, 1], [], []>} : vector<8x128xbf16>, vector<128x128xbf16>, vector<8x128xf32> -> vector<8x128xf32>
    %34 = vector.broadcast %32 : vector<1x128xf32> to vector<8x128xf32>
    %35 = arith.addf %33, %34 : vector<8x128xf32>
    %cst_28 = arith.constant 0.000000e+00 : f32
    %36 = vector.broadcast %cst_28 : f32 to vector<8x128xf32>
    %37 = arith.maximumf %35, %36 : vector<8x128xf32>
    %38 = arith.truncf %37 : vector<8x128xf32> to vector<8x128xbf16>
    %c0_29 = arith.constant 0 : index
    %c0_30 = arith.constant 0 : index
    %39 = vector.load %arg12[%c0_29, %c0_30] : memref<128x256xbf16, #tpu.memory_space<vmem>>, vector<128x256xbf16>
    %c0_31 = arith.constant 0 : index
    %c0_32 = arith.constant 0 : index
    %40 = vector.load %arg13[%c0_31, %c0_32] : memref<1x256xf32, #tpu.memory_space<vmem>>, vector<1x256xf32>
    %cst_33 = arith.constant dense<0.000000e+00> : vector<8x256xf32>
    %41 = tpu.matmul %38, %39, %cst_33 {dimension_numbers = #tpu.dot_dimension_numbers<[1], [0], [0], [1], [0, 0, 1, 1], [], []>} : vector<8x128xbf16>, vector<128x256xbf16>, vector<8x256xf32> -> vector<8x256xf32>
    %42 = vector.broadcast %40 : vector<1x256xf32> to vector<8x256xf32>
    %43 = arith.addf %41, %42 : vector<8x256xf32>
    %cst_34 = arith.constant 0.000000e+00 : f32
    %44 = vector.broadcast %cst_34 : f32 to vector<8x256xf32>
    %45 = arith.maximumf %43, %44 : vector<8x256xf32>
    %46 = arith.truncf %45 : vector<8x256xf32> to vector<8x256xbf16>
    %c0_35 = arith.constant 0 : index
    %c0_36 = arith.constant 0 : index
    %47 = vector.load %arg14[%c0_35, %c0_36] : memref<256x512xbf16, #tpu.memory_space<vmem>>, vector<256x512xbf16>
    %c0_37 = arith.constant 0 : index
    %c0_38 = arith.constant 0 : index
    %48 = vector.load %arg15[%c0_37, %c0_38] : memref<1x512xf32, #tpu.memory_space<vmem>>, vector<1x512xf32>
    %cst_39 = arith.constant dense<0.000000e+00> : vector<8x512xf32>
    %49 = tpu.matmul %46, %47, %cst_39 {dimension_numbers = #tpu.dot_dimension_numbers<[1], [0], [0], [1], [0, 0, 1, 1], [], []>} : vector<8x256xbf16>, vector<256x512xbf16>, vector<8x512xf32> -> vector<8x512xf32>
    %50 = vector.broadcast %48 : vector<1x512xf32> to vector<8x512xf32>
    %51 = arith.addf %49, %50 : vector<8x512xf32>
    %cst_40 = arith.constant 0.000000e+00 : f32
    %52 = vector.broadcast %cst_40 : f32 to vector<8x512xf32>
    %53 = arith.maximumf %51, %52 : vector<8x512xf32>
    %54 = arith.truncf %53 : vector<8x512xf32> to vector<8x512xbf16>
    %c0_41 = arith.constant 0 : index
    %c0_42 = arith.constant 0 : index
    %55 = vector.load %arg16[%c0_41, %c0_42] : memref<512x896xbf16, #tpu.memory_space<vmem>>, vector<512x896xbf16>
    %c0_43 = arith.constant 0 : index
    %c0_44 = arith.constant 0 : index
    %56 = vector.load %arg17[%c0_43, %c0_44] : memref<1x896xf32, #tpu.memory_space<vmem>>, vector<1x896xf32>
    %cst_45 = arith.constant dense<0.000000e+00> : vector<8x896xf32>
    %57 = tpu.matmul %54, %55, %cst_45 {dimension_numbers = #tpu.dot_dimension_numbers<[1], [0], [0], [1], [0, 0, 1, 1], [], []>} : vector<8x512xbf16>, vector<512x896xbf16>, vector<8x896xf32> -> vector<8x896xf32>
    %58 = vector.broadcast %56 : vector<1x896xf32> to vector<8x896xf32>
    %59 = arith.addf %57, %58 : vector<8x896xf32>
    %60 = arith.negf %59 : vector<8x896xf32>
    %61 = math.exp %60 : vector<8x896xf32>
    %cst_46 = arith.constant 1.000000e+00 : f32
    %62 = vector.broadcast %cst_46 : f32 to vector<8x896xf32>
    %63 = arith.addf %62, %61 : vector<8x896xf32>
    %64 = arith.divf %62, %63 : vector<8x896xf32>
    %c0_47 = arith.constant 0 : index
    %c0_48 = arith.constant 0 : index
    %65 = vector.load %arg18[%c0_47, %c0_48] : memref<8x896xf32, #tpu.memory_space<vmem>>, vector<8x896xf32>
    tpu.vector_store %arg18[%c0_47, %c0_48], %64 {strides = array<i32>} : memref<8x896xf32, #tpu.memory_space<vmem>>, vector<8x896xf32>,
    return
  }
  func.func @transform_0(%arg0: i32) -> (i32, i32) {
    %c0_i32 = arith.constant 0 : i32
    %c0_i32_0 = arith.constant 0 : i32
    return %arg0, %c0_i32 : i32, i32
  }
  func.func @transform_1(%arg0: i32) -> (i32, i32) {
    %c0_i32 = arith.constant 0 : i32
    %c0_i32_0 = arith.constant 0 : i32
    %c0_i32_1 = arith.constant 0 : i32
    return %c0_i32, %c0_i32_0 : i32, i32
  }
  func.func @transform_2(%arg0: i32) -> (i32, i32) {
    %c0_i32 = arith.constant 0 : i32
    %c0_i32_0 = arith.constant 0 : i32
    %c0_i32_1 = arith.constant 0 : i32
    return %c0_i32, %c0_i32_0 : i32, i32
  }
  func.func @transform_3(%arg0: i32) -> (i32, i32) {
    %c0_i32 = arith.constant 0 : i32
    %c0_i32_0 = arith.constant 0 : i32
    %c0_i32_1 = arith.constant 0 : i32
    return %c0_i32, %c0_i32_0 : i32, i32
  }
  func.func @transform_4(%arg0: i32) -> (i32, i32) {
    %c0_i32 = arith.constant 0 : i32
    %c0_i32_0 = arith.constant 0 : i32
    %c0_i32_1 = arith.constant 0 : i32
    return %c0_i32, %c0_i32_0 : i32, i32
  }
  func.func @transform_5(%arg0: i32) -> (i32, i32) {
    %c0_i32 = arith.constant 0 : i32
    %c0_i32_0 = arith.constant 0 : i32
    %c0_i32_1 = arith.constant 0 : i32
    return %c0_i32, %c0_i32_0 : i32, i32
  }
  func.func @transform_6(%arg0: i32) -> (i32, i32) {
    %c0_i32 = arith.constant 0 : i32
    %c0_i32_0 = arith.constant 0 : i32
    %c0_i32_1 = arith.constant 0 : i32
    return %c0_i32, %c0_i32_0 : i32, i32
  }
  func.func @transform_7(%arg0: i32) -> (i32, i32) {
    %c0_i32 = arith.constant 0 : i32
    %c0_i32_0 = arith.constant 0 : i32
    %c0_i32_1 = arith.constant 0 : i32
    return %c0_i32, %c0_i32_0 : i32, i32
  }
  func.func @transform_8(%arg0: i32) -> (i32, i32) {
    %c0_i32 = arith.constant 0 : i32
    %c0_i32_0 = arith.constant 0 : i32
    %c0_i32_1 = arith.constant 0 : i32
    return %c0_i32, %c0_i32_0 : i32, i32
  }
  func.func @transform_9(%arg0: i32) -> (i32, i32) {
    %c0_i32 = arith.constant 0 : i32
    %c0_i32_0 = arith.constant 0 : i32
    %c0_i32_1 = arith.constant 0 : i32
    return %c0_i32, %c0_i32_0 : i32, i32
  }
  func.func @transform_10(%arg0: i32) -> (i32, i32) {
    %c0_i32 = arith.constant 0 : i32
    %c0_i32_0 = arith.constant 0 : i32
    %c0_i32_1 = arith.constant 0 : i32
    return %c0_i32, %c0_i32_0 : i32, i32
  }
  func.func @transform_11(%arg0: i32) -> (i32, i32) {
    %c0_i32 = arith.constant 0 : i32
    %c0_i32_0 = arith.constant 0 : i32
    %c0_i32_1 = arith.constant 0 : i32
    return %c0_i32, %c0_i32_0 : i32, i32
  }
  func.func @transform_12(%arg0: i32) -> (i32, i32) {
    %c0_i32 = arith.constant 0 : i32
    %c0_i32_0 = arith.constant 0 : i32
    %c0_i32_1 = arith.constant 0 : i32
    return %c0_i32, %c0_i32_0 : i32, i32
  }
  func.func @transform_13(%arg0: i32) -> (i32, i32) {
    %c0_i32 = arith.constant 0 : i32
    %c0_i32_0 = arith.constant 0 : i32
    %c0_i32_1 = arith.constant 0 : i32
    return %c0_i32, %c0_i32_0 : i32, i32
  }
  func.func @transform_14(%arg0: i32) -> (i32, i32) {
    %c0_i32 = arith.constant 0 : i32
    %c0_i32_0 = arith.constant 0 : i32
    %c0_i32_1 = arith.constant 0 : i32
    return %c0_i32, %c0_i32_0 : i32, i32
  }
  func.func @transform_15(%arg0: i32) -> (i32, i32) {
    %c0_i32 = arith.constant 0 : i32
    %c0_i32_0 = arith.constant 0 : i32
    %c0_i32_1 = arith.constant 0 : i32
    return %c0_i32, %c0_i32_0 : i32, i32
  }
  func.func @transform_16(%arg0: i32) -> (i32, i32) {
    %c0_i32 = arith.constant 0 : i32
    %c0_i32_0 = arith.constant 0 : i32
    %c0_i32_1 = arith.constant 0 : i32
    return %c0_i32, %c0_i32_0 : i32, i32
  }
  func.func @transform_17(%arg0: i32) -> (i32, i32) {
    %c0_i32 = arith.constant 0 : i32
    %c0_i32_0 = arith.constant 0 : i32
    return %arg0, %c0_i32 : i32, i32
  }
}

</mosaic_0001>

<llo_original>
// kernel: autoencoder_forward.1
$region0: #{autoencoder_forward.1}
  #allocation0 [shape = 'u32[]', space=smem, size = 0x4, offset = 0x4, fixed_abs, tag = 'smem constant byte address 0x4 - core index']
  #allocation1 [shape = 'u32[72,128]{1,0:T(1,128)}', space=vmem, size = 0x9000, scoped, tag = 'internal scratch']
  %s0 = inlined_call_operand.vmem [shape: bf16[8,896], index: 0, kind: input, shape index: {}]
  %s1 = inlined_call_operand.hbm [shape: bf16[896,512], index: 1, kind: input, shape index: {}]
  %s2 = inlined_call_operand.vmem [shape: f32[1,512], index: 2, kind: input, shape index: {}]
  %s3 = inlined_call_operand.hbm [shape: bf16[512,256], index: 3, kind: input, shape index: {}]
  %s4 = inlined_call_operand.vmem [shape: f32[1,256], index: 4, kind: input, shape index: {}]
  %s5 = inlined_call_operand.vmem [shape: bf16[256,128], index: 5, kind: input, shape index: {}]
  %s6 = inlined_call_operand.vmem [shape: f32[1,128], index: 6, kind: input, shape index: {}]
  %s7 = inlined_call_operand.hbm [shape: bf16[128,128], index: 7, kind: input, shape index: {}]
  %s8 = inlined_call_operand.vmem [shape: f32[1,128], index: 8, kind: input, shape index: {}]
  %s9 = inlined_call_operand.hbm [shape: bf16[128,128], index: 9, kind: input, shape index: {}]
  %s10 = inlined_call_operand.vmem [shape: f32[1,128], index: 10, kind: input, shape index: {}]
  %s11 = inlined_call_operand.hbm [shape: bf16[128,256], index: 11, kind: input, shape index: {}]
  %s12 = inlined_call_operand.vmem [shape: f32[1,256], index: 12, kind: input, shape index: {}]
  %s13 = inlined_call_operand.hbm [shape: bf16[256,512], index: 13, kind: input, shape index: {}]
  %s14 = inlined_call_operand.vmem [shape: f32[1,512], index: 14, kind: input, shape index: {}]
  %s15 = inlined_call_operand.hbm [shape: bf16[512,896], index: 15, kind: input, shape index: {}]
  %s16 = inlined_call_operand.vmem [shape: f32[1,896], index: 16, kind: input, shape index: {}]
  %s17 = inlined_call_operand.vmem [shape: f32[8,896], index: 17, kind: output, shape index: {}]
  %s18 = sld [smem:[#allocation0]]
  $region106: #{autoencoder_forward.1} parent=0
    _
  %s20 = ssub.s32 1, %s18
  %s21 = scalar_select 0, %s20, %s18
  $region1: #{autoencoder_forward.1} parent=0
    #allocation2 [shape = 'u8[917504]{0}', space=vmem, size = 0xe0000, scoped, tag = 'input window, operand 1, single buffered']
    #allocation3 [shape = 's32[1]{0}', space=sflag, size = 0x4, scoped, tag = 'scoped memory for autoencoder_forward.1']
    #allocation4 [shape = 'u8[262144]{0}', space=vmem, size = 0x40000, scoped, tag = 'input window, operand 3, single buffered']
    #allocation5 [shape = 's32[1]{0}', space=sflag, size = 0x4, scoped, tag = 'scoped memory for autoencoder_forward.1']
    #allocation6 [shape = 'u8[32768]{0}', space=vmem, size = 0x8000, scoped, tag = 'input window, operand 7, single buffered']
    #allocation7 [shape = 'u8[32768]{0}', space=vmem, size = 0x8000, scoped, tag = 'input window, operand 9, single buffered']
    #allocation8 [shape = 's32[1]{0}', space=sflag, size = 0x4, scoped, tag = 'scoped memory for autoencoder_forward.1']
    #allocation9 [shape = 'u8[65536]{0}', space=vmem, size = 0x10000, scoped, tag = 'input window, operand 11, single buffered']
    #allocation10 [shape = 'u8[262144]{0}', space=vmem, size = 0x40000, scoped, tag = 'input window, operand 13, single buffered']
    #allocation11 [shape = 's32[1]{0}', space=sflag, size = 0x4, scoped, tag = 'scoped memory for autoencoder_forward.1']
    #allocation12 [shape = 'u8[917504]{0}', space=vmem, size = 0xe0000, scoped, tag = 'input window, operand 15, single buffered']
    %22 = vsyncpa [#allocation3], 0
    %23 = vsyncpa [#allocation5], 0
    %24 = vsyncpa [#allocation8], 0
    %25 = vsyncpa [#allocation11], 0
    // Predicated region
    $region2: #{autoencoder_forward.1} parent=1 // pred_check
      _
    $region3: #{autoencoder_forward.1} parent=1 // pred_check_branch
      %27 = sbr.rel (0) target = $region5
    $region4: #{autoencoder_forward.1} parent=1 // pred_region
      _
    $region5: #{autoencoder_forward.1} parent=1 // pred_fallthru
      _
    // Predicated region
    $region6: #{autoencoder_forward.1} parent=1 // pred_check
      _
    $region7: #{autoencoder_forward.1} parent=1 // pred_check_branch
      %29 = sbr.rel (0) target = $region9
    $region8: #{autoencoder_forward.1} parent=1 // pred_region
      %31 = vsyncadd [#allocation3], 0
      %s32 = sshll.u32 %s1, 4
      %s33 = int_to_ptr.hbm [resolvable:$true] %s32
      %s34 = sshll.u32 [#allocation2], 4
      %s35 = int_to_ptr.vmem [resolvable:$true] %s34
      %40 = dma.hbm_to_vmem [thread:$0]  %s33, 28672, %s35, [#allocation3], 256, 256, 16
    $region9: #{autoencoder_forward.1} parent=1 // pred_fallthru
      _
    // Predicated region
    $region10: #{autoencoder_forward.1} parent=1 // pred_check
      _
    $region11: #{autoencoder_forward.1} parent=1 // pred_check_branch
      %42 = sbr.rel (0) target = $region13
    $region12: #{autoencoder_forward.1} parent=1 // pred_region
      _
    $region13: #{autoencoder_forward.1} parent=1 // pred_fallthru
      _
    // Predicated region
    $region14: #{autoencoder_forward.1} parent=1 // pred_check
      _
    $region15: #{autoencoder_forward.1} parent=1 // pred_check_branch
      %44 = sbr.rel (0) target = $region17
    $region16: #{autoencoder_forward.1} parent=1 // pred_region
      %46 = vsyncadd [#allocation5], 0
      %s47 = sshll.u32 %s3, 4
      %s48 = int_to_ptr.hbm [resolvable:$true] %s47
      %s49 = sshll.u32 [#allocation4], 4
      %s50 = int_to_ptr.vmem [resolvable:$true] %s49
      %55 = dma.hbm_to_vmem [thread:$0]  %s48, 8192, %s50, [#allocation5], 128, 128, 8
    $region17: #{autoencoder_forward.1} parent=1 // pred_fallthru
      _
    // Predicated region
    $region18: #{autoencoder_forward.1} parent=1 // pred_check
      _
    $region19: #{autoencoder_forward.1} parent=1 // pred_check_branch
      %57 = sbr.rel (0) target = $region21
    $region20: #{autoencoder_forward.1} parent=1 // pred_region
      _
    $region21: #{autoencoder_forward.1} parent=1 // pred_fallthru
      _
    // Predicated region
    $region22: #{autoencoder_forward.1} parent=1 // pred_check
      _
    $region23: #{autoencoder_forward.1} parent=1 // pred_check_branch
      %59 = sbr.rel (0) target = $region25
    $region24: #{autoencoder_forward.1} parent=1 // pred_region
      _
    $region25: #{autoencoder_forward.1} parent=1 // pred_fallthru
      _
    // Predicated region
    $region26: #{autoencoder_forward.1} parent=1 // pred_check
      _
    $region27: #{autoencoder_forward.1} parent=1 // pred_check_branch
      %61 = sbr.rel (0) target = $region29
    $region28: #{autoencoder_forward.1} parent=1 // pred_region
      _
    $region29: #{autoencoder_forward.1} parent=1 // pred_fallthru
      _
    // Predicated region
    $region30: #{autoencoder_forward.1} parent=1 // pred_check
      _
    $region31: #{autoencoder_forward.1} parent=1 // pred_check_branch
      %63 = sbr.rel (0) target = $region33
    $region32: #{autoencoder_forward.1} parent=1 // pred_region
      %65 = vsyncadd [#allocation5], 0
      %s66 = sshll.u32 %s7, 4
      %s67 = int_to_ptr.hbm [resolvable:$true] %s66
      %s68 = sshll.u32 [#allocation6], 4
      %s69 = int_to_ptr.vmem [resolvable:$true] %s68
      %74 = dma.hbm_to_vmem [thread:$0]  %s67, 1024, %s69, [#allocation5], 64, 64, 4
    $region33: #{autoencoder_forward.1} parent=1 // pred_fallthru
      _
    // Predicated region
    $region34: #{autoencoder_forward.1} parent=1 // pred_check
      _
    $region35: #{autoencoder_forward.1} parent=1 // pred_check_branch
      %76 = sbr.rel (0) target = $region37
    $region36: #{autoencoder_forward.1} parent=1 // pred_region
      _
    $region37: #{autoencoder_forward.1} parent=1 // pred_fallthru
      _
    // Predicated region
    $region38: #{autoencoder_forward.1} parent=1 // pred_check
      _
    $region39: #{autoencoder_forward.1} parent=1 // pred_check_branch
      %78 = sbr.rel (0) target = $region41
    $region40: #{autoencoder_forward.1} parent=1 // pred_region
      %80 = vsyncadd [#allocation8], 0
      %s81 = sshll.u32 %s9, 4
      %s82 = int_to_ptr.hbm [resolvable:$true] %s81
      %s83 = sshll.u32 [#allocation7], 4
      %s84 = int_to_ptr.vmem [resolvable:$true] %s83
      %89 = dma.hbm_to_vmem [thread:$0]  %s82, 1024, %s84, [#allocation8], 64, 64, 4
    $region41: #{autoencoder_forward.1} parent=1 // pred_fallthru
      _
    // Predicated region
    $region42: #{autoencoder_forward.1} parent=1 // pred_check
      _
    $region43: #{autoencoder_forward.1} parent=1 // pred_check_branch
      %91 = sbr.rel (0) target = $region45
    $region44: #{autoencoder_forward.1} parent=1 // pred_region
      _
    $region45: #{autoencoder_forward.1} parent=1 // pred_fallthru
      _
    // Predicated region
    $region46: #{autoencoder_forward.1} parent=1 // pred_check
      _
    $region47: #{autoencoder_forward.1} parent=1 // pred_check_branch
      %93 = sbr.rel (0) target = $region49
    $region48: #{autoencoder_forward.1} parent=1 // pred_region
      %95 = vsyncadd [#allocation8], 0
      %s96 = sshll.u32 %s11, 4
      %s97 = int_to_ptr.hbm [resolvable:$true] %s96
      %s98 = sshll.u32 [#allocation9], 4
      %s99 = int_to_ptr.vmem [resolvable:$true] %s98
      %104 = dma.hbm_to_vmem [thread:$0]  %s97, 2048, %s99, [#allocation8], 128, 128, 8
    $region49: #{autoencoder_forward.1} parent=1 // pred_fallthru
      _
    // Predicated region
    $region50: #{autoencoder_forward.1} parent=1 // pred_check
      _
    $region51: #{autoencoder_forward.1} parent=1 // pred_check_branch
      %106 = sbr.rel (0) target = $region53
    $region52: #{autoencoder_forward.1} parent=1 // pred_region
      _
    $region53: #{autoencoder_forward.1} parent=1 // pred_fallthru
      _
    // Predicated region
    $region54: #{autoencoder_forward.1} parent=1 // pred_check
      _
    $region55: #{autoencoder_forward.1} parent=1 // pred_check_branch
      %108 = sbr.rel (0) target = $region57
    $region56: #{autoencoder_forward.1} parent=1 // pred_region
      %110 = vsyncadd [#allocation11], 0
      %s111 = sshll.u32 %s13, 4
      %s112 = int_to_ptr.hbm [resolvable:$true] %s111
      %s113 = sshll.u32 [#allocation10], 4
      %s114 = int_to_ptr.vmem [resolvable:$true] %s113
      %119 = dma.hbm_to_vmem [thread:$0]  %s112, 8192, %s114, [#allocation11], 256, 256, 16
    $region57: #{autoencoder_forward.1} parent=1 // pred_fallthru
      _
    // Predicated region
    $region58: #{autoencoder_forward.1} parent=1 // pred_check
      _
    $region59: #{autoencoder_forward.1} parent=1 // pred_check_branch
      %121 = sbr.rel (0) target = $region61
    $region60: #{autoencoder_forward.1} parent=1 // pred_region
      _
    $region61: #{autoencoder_forward.1} parent=1 // pred_fallthru
      _
    // Predicated region
    $region62: #{autoencoder_forward.1} parent=1 // pred_check
      _
    $region63: #{autoencoder_forward.1} parent=1 // pred_check_branch
      %123 = sbr.rel (0) target = $region65
    $region64: #{autoencoder_forward.1} parent=1 // pred_region
      %125 = vsyncadd [#allocation11], 0
      %s126 = sshll.u32 %s15, 4
      %s127 = int_to_ptr.hbm [resolvable:$true] %s126
      %s128 = sshll.u32 [#allocation12], 4
      %s129 = int_to_ptr.vmem [resolvable:$true] %s128
      %134 = dma.hbm_to_vmem [thread:$0]  %s127, 28672, %s129, [#allocation11], 448, 448, 28
    $region65: #{autoencoder_forward.1} parent=1 // pred_fallthru
      _
    // Predicated region
    $region66: #{autoencoder_forward.1} parent=1 // pred_check
      _
    $region67: #{autoencoder_forward.1} parent=1 // pred_check_branch
      %136 = sbr.rel (0) target = $region69
    $region68: #{autoencoder_forward.1} parent=1 // pred_region
      _
    $region69: #{autoencoder_forward.1} parent=1 // pred_fallthru
      _
    // Predicated region
    $region70: #{autoencoder_forward.1} parent=1 // pred_check
      _
    $region71: #{autoencoder_forward.1} parent=1 // pred_check_branch
      %138 = sbr.rel (0) target = $region73
    $region72: #{autoencoder_forward.1} parent=1 // pred_region
      %140 = dma.done [#allocation3], 28672
    $region73: #{autoencoder_forward.1} parent=1 // pred_fallthru
      _
    // Predicated region
    $region74: #{autoencoder_forward.1} parent=1 // pred_check
      _
    $region75: #{autoencoder_forward.1} parent=1 // pred_check_branch
      %142 = sbr.rel (0) target = $region77
    $region76: #{autoencoder_forward.1} parent=1 // pred_region
      %144 = dma.done [#allocation5], 8192
    $region77: #{autoencoder_forward.1} parent=1 // pred_fallthru
      _
    // Predicated region
    $region78: #{autoencoder_forward.1} parent=1 // pred_check
      _
    $region79: #{autoencoder_forward.1} parent=1 // pred_check_branch
      %146 = sbr.rel (0) target = $region81
    $region80: #{autoencoder_forward.1} parent=1 // pred_region
      %148 = dma.done [#allocation5], 1024
    $region81: #{autoencoder_forward.1} parent=1 // pred_fallthru
      _
    // Predicated region
    $region82: #{autoencoder_forward.1} parent=1 // pred_check
      _
    $region83: #{autoencoder_forward.1} parent=1 // pred_check_branch
      %150 = sbr.rel (0) target = $region85
    $region84: #{autoencoder_forward.1} parent=1 // pred_region
      %152 = dma.done [#allocation8], 1024
    $region85: #{autoencoder_forward.1} parent=1 // pred_fallthru
      _
    // Predicated region
    $region86: #{autoencoder_forward.1} parent=1 // pred_check
      _
    $region87: #{autoencoder_forward.1} parent=1 // pred_check_branch
      %154 = sbr.rel (0) target = $region89
    $region88: #{autoencoder_forward.1} parent=1 // pred_region
      %156 = dma.done [#allocation8], 2048
    $region89: #{autoencoder_forward.1} parent=1 // pred_fallthru
      _
    // Predicated region
    $region90: #{autoencoder_forward.1} parent=1 // pred_check
      _
    $region91: #{autoencoder_forward.1} parent=1 // pred_check_branch
      %158 = sbr.rel (0) target = $region93
    $region92: #{autoencoder_forward.1} parent=1 // pred_region
      %160 = dma.done [#allocation11], 8192
    $region93: #{autoencoder_forward.1} parent=1 // pred_fallthru
      _
    // Predicated region
    $region94: #{autoencoder_forward.1} parent=1 // pred_check
      _
    $region95: #{autoencoder_forward.1} parent=1 // pred_check_branch
      %162 = sbr.rel (0) target = $region97
    $region96: #{autoencoder_forward.1} parent=1 // pred_region
      %164 = dma.done [#allocation11], 28672
    $region97: #{autoencoder_forward.1} parent=1 // pred_fallthru
      _
    %v165 = vld [vmem:[%s0] sm:$0xff]
    %v166 = vld [vmem:[%s0 + $0x8] sm:$0xff]
    %v167 = vld [vmem:[%s0 + $0x10] sm:$0xff]
    %v168 = vld [vmem:[%s0 + $0x18] sm:$0xf]
    %v169 = vld [vmem:[#allocation2] sm:$0xff]
    %v170 = vld [vmem:[#allocation2 + $0x8] sm:$0xff]
    %v171 = vld [vmem:[#allocation2 + $0x10] sm:$0xff]
    %v172 = vld [vmem:[#allocation2 + $0x18] sm:$0xff]
    %v173 = vld [vmem:[#allocation2 + $0x20] sm:$0xff]
    %v174 = vld [vmem:[#allocation2 + $0x28] sm:$0xff]
    %v175 = vld [vmem:[#allocation2 + $0x30] sm:$0xff]
    %v176 = vld [vmem:[#allocation2 + $0x38] sm:$0xff]
    %v177 = vld [vmem:[#allocation2 + $0x40] sm:$0xff]
    %v178 = vld [vmem:[#allocation2 + $0x48] sm:$0xff]
    %v179 = vld [vmem:[#allocation2 + $0x50] sm:$0xff]
    %v180 = vld [vmem:[#allocation2 + $0x58] sm:$0xff]
    %v181 = vld [vmem:[#allocation2 + $0x60] sm:$0xff]
    %v182 = vld [vmem:[#allocation2 + $0x68] sm:$0xff]
    %v183 = vld [vmem:[#allocation2 + $0x70] sm:$0xff]
    %v184 = vld [vmem:[#allocation2 + $0x78] sm:$0xff]
    %v185 = vld [vmem:[#allocation2 + $0x80] sm:$0xff]
    %v186 = vld [vmem:[#allocation2 + $0x88] sm:$0xff]
    %v187 = vld [vmem:[#allocation2 + $0x90] sm:$0xff]
    %v188 = vld [vmem:[#allocation2 + $0x98] sm:$0xff]
    %v189 = vld [vmem:[#allocation2 + $0xa0] sm:$0xff]
    %v190 = vld [vmem:[#allocation2 + $0xa8] sm:$0xff]
    %v191 = vld [vmem:[#allocation2 + $0xb0] sm:$0xff]
    %v192 = vld [vmem:[#allocation2 + $0xb8] sm:$0xff]
    %v193 = vld [vmem:[#allocation2 + $0xc0] sm:$0xff]
    %v194 = vld [vmem:[#allocation2 + $0xc8] sm:$0xff]
    %v195 = vld [vmem:[#allocation2 + $0xd0] sm:$0xff]
    %v196 = vld [vmem:[#allocation2 + $0xd8] sm:$0xff]
    %v197 = vld [vmem:[#allocation2 + $0xe0] sm:$0xff]
    %v198 = vld [vmem:[#allocation2 + $0xe8] sm:$0xff]
    %v199 = vld [vmem:[#allocation2 + $0xf0] sm:$0xff]
    %v200 = vld [vmem:[#allocation2 + $0xf8] sm:$0xff]
    %v201 = vld [vmem:[#allocation2 + $0x100] sm:$0xff]
    %v202 = vld [vmem:[#allocation2 + $0x108] sm:$0xff]
    %v203 = vld [vmem:[#allocation2 + $0x110] sm:$0xff]
    %v204 = vld [vmem:[#allocation2 + $0x118] sm:$0xff]
    %v205 = vld [vmem:[#allocation2 + $0x120] sm:$0xff]
    %v206 = vld [vmem:[#allocation2 + $0x128] sm:$0xff]
    %v207 = vld [vmem:[#allocation2 + $0x130] sm:$0xff]
    %v208 = vld [vmem:[#allocation2 + $0x138] sm:$0xff]
    %v209 = vld [vmem:[#allocation2 + $0x140] sm:$0xff]
    %v210 = vld [vmem:[#allocation2 + $0x148] sm:$0xff]
    %v211 = vld [vmem:[#allocation2 + $0x150] sm:$0xff]
    %v212 = vld [vmem:[#allocation2 + $0x158] sm:$0xff]
    %v213 = vld [vmem:[#allocation2 + $0x160] sm:$0xff]
    %v214 = vld [vmem:[#allocation2 + $0x168] sm:$0xff]
    %v215 = vld [vmem:[#allocation2 + $0x170] sm:$0xff]
    %v216 = vld [vmem:[#allocation2 + $0x178] sm:$0xff]
    %v217 = vld [vmem:[#allocation2 + $0x180] sm:$0xff]
    %v218 = vld [vmem:[#allocation2 + $0x188] sm:$0xff]
    %v219 = vld [vmem:[#allocation2 + $0x190] sm:$0xff]
    %v220 = vld [vmem:[#allocation2 + $0x198] sm:$0xff]
    %v221 = vld [vmem:[#allocation2 + $0x1a0] sm:$0xff]
    %v222 = vld [vmem:[#allocation2 + $0x1a8] sm:$0xff]
    %v223 = vld [vmem:[#allocation2 + $0x1b0] sm:$0xff]
    %v224 = vld [vmem:[#allocation2 + $0x1b8] sm:$0xff]
    %v225 = vld [vmem:[#allocation2 + $0x1c0] sm:$0xff]
    %v226 = vld [vmem:[#allocation2 + $0x1c8] sm:$0xff]
    %v227 = vld [vmem:[#allocation2 + $0x1d0] sm:$0xff]
    %v228 = vld [vmem:[#allocation2 + $0x1d8] sm:$0xff]
    %v229 = vld [vmem:[#allocation2 + $0x1e0] sm:$0xff]
    %v230 = vld [vmem:[#allocation2 + $0x1e8] sm:$0xff]
    %v231 = vld [vmem:[#allocation2 + $0x1f0] sm:$0xff]
    %v232 = vld [vmem:[#allocation2 + $0x1f8] sm:$0xff]
    %v233 = vld [vmem:[#allocation2 + $0x200] sm:$0xff]
    %v234 = vld [vmem:[#allocation2 + $0x208] sm:$0xff]
    %v235 = vld [vmem:[#allocation2 + $0x210] sm:$0xff]
    %v236 = vld [vmem:[#allocation2 + $0x218] sm:$0xff]
    %v237 = vld [vmem:[#allocation2 + $0x220] sm:$0xff]
    %v238 = vld [vmem:[#allocation2 + $0x228] sm:$0xff]
    %v239 = vld [vmem:[#allocation2 + $0x230] sm:$0xff]
    %v240 = vld [vmem:[#allocation2 + $0x238] sm:$0xff]
    %v241 = vld [vmem:[#allocation2 + $0x240] sm:$0xff]
    %v242 = vld [vmem:[#allocation2 + $0x248] sm:$0xff]
    %v243 = vld [vmem:[#allocation2 + $0x250] sm:$0xff]
    %v244 = vld [vmem:[#allocation2 + $0x258] sm:$0xff]
    %v245 = vld [vmem:[#allocation2 + $0x260] sm:$0xff]
    %v246 = vld [vmem:[#allocation2 + $0x268] sm:$0xff]
    %v247 = vld [vmem:[#allocation2 + $0x270] sm:$0xff]
    %v248 = vld [vmem:[#allocation2 + $0x278] sm:$0xff]
    %v249 = vld [vmem:[#allocation2 + $0x280] sm:$0xff]
    %v250 = vld [vmem:[#allocation2 + $0x288] sm:$0xff]
    %v251 = vld [vmem:[#allocation2 + $0x290] sm:$0xff]
    %v252 = vld [vmem:[#allocation2 + $0x298] sm:$0xff]
    %v253 = vld [vmem:[#allocation2 + $0x2a0] sm:$0xff]
    %v254 = vld [vmem:[#allocation2 + $0x2a8] sm:$0xff]
    %v255 = vld [vmem:[#allocation2 + $0x2b0] sm:$0xff]
    %v256 = vld [vmem:[#allocation2 + $0x2b8] sm:$0xff]
    %v257 = vld [vmem:[#allocation2 + $0x2c0] sm:$0xff]
    %v258 = vld [vmem:[#allocation2 + $0x2c8] sm:$0xff]
    %v259 = vld [vmem:[#allocation2 + $0x2d0] sm:$0xff]
    %v260 = vld [vmem:[#allocation2 + $0x2d8] sm:$0xff]
    %v261 = vld [vmem:[#allocation2 + $0x2e0] sm:$0xff]
    %v262 = vld [vmem:[#allocation2 + $0x2e8] sm:$0xff]
    %v263 = vld [vmem:[#allocation2 + $0x2f0] sm:$0xff]
    %v264 = vld [vmem:[#allocation2 + $0x2f8] sm:$0xff]
    %v265 = vld [vmem:[#allocation2 + $0x300] sm:$0xff]
    %v266 = vld [vmem:[#allocation2 + $0x308] sm:$0xff]
    %v267 = vld [vmem:[#allocation2 + $0x310] sm:$0xff]
    %v268 = vld [vmem:[#allocation2 + $0x318] sm:$0xff]
    %v269 = vld [vmem:[#allocation2 + $0x320] sm:$0xff]
    %v270 = vld [vmem:[#allocation2 + $0x328] sm:$0xff]
    %v271 = vld [vmem:[#allocation2 + $0x330] sm:$0xff]
    %v272 = vld [vmem:[#allocation2 + $0x338] sm:$0xff]
    %v273 = vld [vmem:[#allocation2 + $0x340] sm:$0xff]
    %v274 = vld [vmem:[#allocation2 + $0x348] sm:$0xff]
    %v275 = vld [vmem:[#allocation2 + $0x350] sm:$0xff]
    %v276 = vld [vmem:[#allocation2 + $0x358] sm:$0xff]
    %v277 = vld [vmem:[#allocation2 + $0x360] sm:$0xff]
    %v278 = vld [vmem:[#allocation2 + $0x368] sm:$0xff]
    %v279 = vld [vmem:[#allocation2 + $0x370] sm:$0xff]
    %v280 = vld [vmem:[#allocation2 + $0x378] sm:$0xff]
    %v281 = vld [vmem:[#allocation2 + $0x380] sm:$0xff]
    %v282 = vld [vmem:[#allocation2 + $0x388] sm:$0xff]
    %v283 = vld [vmem:[#allocation2 + $0x390] sm:$0xff]
    %v284 = vld [vmem:[#allocation2 + $0x398] sm:$0xff]
    %v285 = vld [vmem:[#allocation2 + $0x3a0] sm:$0xff]
    %v286 = vld [vmem:[#allocation2 + $0x3a8] sm:$0xff]
    %v287 = vld [vmem:[#allocation2 + $0x3b0] sm:$0xff]
    %v288 = vld [vmem:[#allocation2 + $0x3b8] sm:$0xff]
    %v289 = vld [vmem:[#allocation2 + $0x3c0] sm:$0xff]
    %v290 = vld [vmem:[#allocation2 + $0x3c8] sm:$0xff]
    %v291 = vld [vmem:[#allocation2 + $0x3d0] sm:$0xff]
    %v292 = vld [vmem:[#allocation2 + $0x3d8] sm:$0xff]
    %v293 = vld [vmem:[#allocation2 + $0x3e0] sm:$0xff]
    %v294 = vld [vmem:[#allocation2 + $0x3e8] sm:$0xff]
    %v295 = vld [vmem:[#allocation2 + $0x3f0] sm:$0xff]
    %v296 = vld [vmem:[#allocation2 + $0x3f8] sm:$0xff]
    %v297 = vld [vmem:[#allocation2 + $0x400] sm:$0xff]
    %v298 = vld [vmem:[#allocation2 + $0x408] sm:$0xff]
    %v299 = vld [vmem:[#allocation2 + $0x410] sm:$0xff]
    %v300 = vld [vmem:[#allocation2 + $0x418] sm:$0xff]
    %v301 = vld [vmem:[#allocation2 + $0x420] sm:$0xff]
    %v302 = vld [vmem:[#allocation2 + $0x428] sm:$0xff]
    %v303 = vld [vmem:[#allocation2 + $0x430] sm:$0xff]
    %v304 = vld [vmem:[#allocation2 + $0x438] sm:$0xff]
    %v305 = vld [vmem:[#allocation2 + $0x440] sm:$0xff]
    %v306 = vld [vmem:[#allocation2 + $0x448] sm:$0xff]
    %v307 = vld [vmem:[#allocation2 + $0x450] sm:$0xff]
    %v308 = vld [vmem:[#allocation2 + $0x458] sm:$0xff]
    %v309 = vld [vmem:[#allocation2 + $0x460] sm:$0xff]
    %v310 = vld [vmem:[#allocation2 + $0x468] sm:$0xff]
    %v311 = vld [vmem:[#allocation2 + $0x470] sm:$0xff]
    %v312 = vld [vmem:[#allocation2 + $0x478] sm:$0xff]
    %v313 = vld [vmem:[#allocation2 + $0x480] sm:$0xff]
    %v314 = vld [vmem:[#allocation2 + $0x488] sm:$0xff]
    %v315 = vld [vmem:[#allocation2 + $0x490] sm:$0xff]
    %v316 = vld [vmem:[#allocation2 + $0x498] sm:$0xff]
    %v317 = vld [vmem:[#allocation2 + $0x4a0] sm:$0xff]
    %v318 = vld [vmem:[#allocation2 + $0x4a8] sm:$0xff]
    %v319 = vld [vmem:[#allocation2 + $0x4b0] sm:$0xff]
    %v320 = vld [vmem:[#allocation2 + $0x4b8] sm:$0xff]
    %v321 = vld [vmem:[#allocation2 + $0x4c0] sm:$0xff]
    %v322 = vld [vmem:[#allocation2 + $0x4c8] sm:$0xff]
    %v323 = vld [vmem:[#allocation2 + $0x4d0] sm:$0xff]
    %v324 = vld [vmem:[#allocation2 + $0x4d8] sm:$0xff]
    %v325 = vld [vmem:[#allocation2 + $0x4e0] sm:$0xff]
    %v326 = vld [vmem:[#allocation2 + $0x4e8] sm:$0xff]
    %v327 = vld [vmem:[#allocation2 + $0x4f0] sm:$0xff]
    %v328 = vld [vmem:[#allocation2 + $0x4f8] sm:$0xff]
    %v329 = vld [vmem:[#allocation2 + $0x500] sm:$0xff]
    %v330 = vld [vmem:[#allocation2 + $0x508] sm:$0xff]
    %v331 = vld [vmem:[#allocation2 + $0x510] sm:$0xff]
    %v332 = vld [vmem:[#allocation2 + $0x518] sm:$0xff]
    %v333 = vld [vmem:[#allocation2 + $0x520] sm:$0xff]
    %v334 = vld [vmem:[#allocation2 + $0x528] sm:$0xff]
    %v335 = vld [vmem:[#allocation2 + $0x530] sm:$0xff]
    %v336 = vld [vmem:[#allocation2 + $0x538] sm:$0xff]
    %v337 = vld [vmem:[#allocation2 + $0x540] sm:$0xff]
    %v338 = vld [vmem:[#allocation2 + $0x548] sm:$0xff]
    %v339 = vld [vmem:[#allocation2 + $0x550] sm:$0xff]
    %v340 = vld [vmem:[#allocation2 + $0x558] sm:$0xff]
    %v341 = vld [vmem:[#allocation2 + $0x560] sm:$0xff]
    %v342 = vld [vmem:[#allocation2 + $0x568] sm:$0xff]
    %v343 = vld [vmem:[#allocation2 + $0x570] sm:$0xff]
    %v344 = vld [vmem:[#allocation2 + $0x578] sm:$0xff]
    %v345 = vld [vmem:[#allocation2 + $0x580] sm:$0xff]
    %v346 = vld [vmem:[#allocation2 + $0x588] sm:$0xff]
    %v347 = vld [vmem:[#allocation2 + $0x590] sm:$0xff]
    %v348 = vld [vmem:[#allocation2 + $0x598] sm:$0xff]
    %v349 = vld [vmem:[#allocation2 + $0x5a0] sm:$0xff]
    %v350 = vld [vmem:[#allocation2 + $0x5a8] sm:$0xff]
    %v351 = vld [vmem:[#allocation2 + $0x5b0] sm:$0xff]
    %v352 = vld [vmem:[#allocation2 + $0x5b8] sm:$0xff]
    %v353 = vld [vmem:[#allocation2 + $0x5c0] sm:$0xff]
    %v354 = vld [vmem:[#allocation2 + $0x5c8] sm:$0xff]
    %v355 = vld [vmem:[#allocation2 + $0x5d0] sm:$0xff]
    %v356 = vld [vmem:[#allocation2 + $0x5d8] sm:$0xff]
    %v357 = vld [vmem:[#allocation2 + $0x5e0] sm:$0xff]
    %v358 = vld [vmem:[#allocation2 + $0x5e8] sm:$0xff]
    %v359 = vld [vmem:[#allocation2 + $0x5f0] sm:$0xff]
    %v360 = vld [vmem:[#allocation2 + $0x5f8] sm:$0xff]
    %v361 = vld [vmem:[#allocation2 + $0x600] sm:$0xff]
    %v362 = vld [vmem:[#allocation2 + $0x608] sm:$0xff]
    %v363 = vld [vmem:[#allocation2 + $0x610] sm:$0xff]
    %v364 = vld [vmem:[#allocation2 + $0x618] sm:$0xff]
    %v365 = vld [vmem:[#allocation2 + $0x620] sm:$0xff]
    %v366 = vld [vmem:[#allocation2 + $0x628] sm:$0xff]
    %v367 = vld [vmem:[#allocation2 + $0x630] sm:$0xff]
    %v368 = vld [vmem:[#allocation2 + $0x638] sm:$0xff]
    %v369 = vld [vmem:[#allocation2 + $0x640] sm:$0xff]
    %v370 = vld [vmem:[#allocation2 + $0x648] sm:$0xff]
    %v371 = vld [vmem:[#allocation2 + $0x650] sm:$0xff]
    %v372 = vld [vmem:[#allocation2 + $0x658] sm:$0xff]
    %v373 = vld [vmem:[#allocation2 + $0x660] sm:$0xff]
    %v374 = vld [vmem:[#allocation2 + $0x668] sm:$0xff]
    %v375 = vld [vmem:[#allocation2 + $0x670] sm:$0xff]
    %v376 = vld [vmem:[#allocation2 + $0x678] sm:$0xff]
    %v377 = vld [vmem:[#allocation2 + $0x680] sm:$0xff]
    %v378 = vld [vmem:[#allocation2 + $0x688] sm:$0xff]
    %v379 = vld [vmem:[#allocation2 + $0x690] sm:$0xff]
    %v380 = vld [vmem:[#allocation2 + $0x698] sm:$0xff]
    %v381 = vld [vmem:[#allocation2 + $0x6a0] sm:$0xff]
    %v382 = vld [vmem:[#allocation2 + $0x6a8] sm:$0xff]
    %v383 = vld [vmem:[#allocation2 + $0x6b0] sm:$0xff]
    %v384 = vld [vmem:[#allocation2 + $0x6b8] sm:$0xff]
    %v385 = vld [vmem:[#allocation2 + $0x6c0] sm:$0xff]
    %v386 = vld [vmem:[#allocation2 + $0x6c8] sm:$0xff]
    %v387 = vld [vmem:[#allocation2 + $0x6d0] sm:$0xff]
    %v388 = vld [vmem:[#allocation2 + $0x6d8] sm:$0xff]
    %v389 = vld [vmem:[#allocation2 + $0x6e0] sm:$0xff]
    %v390 = vld [vmem:[#allocation2 + $0x6e8] sm:$0xff]
    %v391 = vld [vmem:[#allocation2 + $0x6f0] sm:$0xff]
    %v392 = vld [vmem:[#allocation2 + $0x6f8] sm:$0xff]
    %v393 = vld [vmem:[%s2] sm:$0xf]
    %v395 = vperm.slane %v393, 0
    %v396 = vperm.slane %v393, 1
    %v397 = vperm.slane %v393, 2
    %v398 = vperm.slane %v393, 3
    %v407 = vunpack.c.l.b16 %v165
    %v408 = vunpack.c.h.b16 %v165
    %v409 = vunpack.c.l.b16 %v166
    %v410 = vunpack.c.h.b16 %v166
    %v411 = vunpack.c.l.b16 %v167
    %v412 = vunpack.c.h.b16 %v167
    %v413 = vunpack.c.l.b16 %v168
    %v414 = vpack.c.b16 %v407, %v407
    %v415 = vpack.c.b16 %v408, %v408
    %v416 = vpack.c.b16 %v409, %v409
    %v417 = vpack.c.b16 %v410, %v410
    %v418 = vpack.c.b16 %v411, %v411
    %v419 = vpack.c.b16 %v412, %v412
    %v420 = vpack.c.b16 %v413, %v413
    %v652 = vunpack.c.l.b16 %v169
    %v653 = vunpack.c.h.b16 %v169
    %v654 = vunpack.c.l.b16 %v170
    %v655 = vunpack.c.h.b16 %v170
    %v656 = vunpack.c.l.b16 %v171
    %v657 = vunpack.c.h.b16 %v171
    %v658 = vunpack.c.l.b16 %v172
    %v659 = vunpack.c.h.b16 %v172
    %v660 = vunpack.c.l.b16 %v173
    %v661 = vunpack.c.h.b16 %v173
    %v662 = vunpack.c.l.b16 %v174
    %v663 = vunpack.c.h.b16 %v174
    %v664 = vunpack.c.l.b16 %v175
    %v665 = vunpack.c.h.b16 %v175
    %v666 = vunpack.c.l.b16 %v176
    %v667 = vunpack.c.h.b16 %v176
    %v668 = vunpack.c.l.b16 %v177
    %v669 = vunpack.c.h.b16 %v177
    %v670 = vunpack.c.l.b16 %v178
    %v671 = vunpack.c.h.b16 %v178
    %v672 = vunpack.c.l.b16 %v179
    %v673 = vunpack.c.h.b16 %v179
    %v674 = vunpack.c.l.b16 %v180
    %v675 = vunpack.c.h.b16 %v180
    %v676 = vunpack.c.l.b16 %v181
    %v677 = vunpack.c.h.b16 %v181
    %v678 = vunpack.c.l.b16 %v182
    %v679 = vunpack.c.h.b16 %v182
    %v680 = vunpack.c.l.b16 %v183
    %v681 = vunpack.c.h.b16 %v183
    %v682 = vunpack.c.l.b16 %v184
    %v683 = vunpack.c.h.b16 %v184
    %v684 = vunpack.c.l.b16 %v185
    %v685 = vunpack.c.h.b16 %v185
    %v686 = vunpack.c.l.b16 %v186
    %v687 = vunpack.c.h.b16 %v186
    %v688 = vunpack.c.l.b16 %v187
    %v689 = vunpack.c.h.b16 %v187
    %v690 = vunpack.c.l.b16 %v188
    %v691 = vunpack.c.h.b16 %v188
    %v692 = vunpack.c.l.b16 %v189
    %v693 = vunpack.c.h.b16 %v189
    %v694 = vunpack.c.l.b16 %v190
    %v695 = vunpack.c.h.b16 %v190
    %v696 = vunpack.c.l.b16 %v191
    %v697 = vunpack.c.h.b16 %v191
    %v698 = vunpack.c.l.b16 %v192
    %v699 = vunpack.c.h.b16 %v192
    %v700 = vunpack.c.l.b16 %v193
    %v701 = vunpack.c.h.b16 %v193
    %v702 = vunpack.c.l.b16 %v194
    %v703 = vunpack.c.h.b16 %v194
    %v704 = vunpack.c.l.b16 %v195
    %v705 = vunpack.c.h.b16 %v195
    %v706 = vunpack.c.l.b16 %v196
    %v707 = vunpack.c.h.b16 %v196
    %v708 = vunpack.c.l.b16 %v197
    %v709 = vunpack.c.h.b16 %v197
    %v710 = vunpack.c.l.b16 %v198
    %v711 = vunpack.c.h.b16 %v198
    %v712 = vunpack.c.l.b16 %v199
    %v713 = vunpack.c.h.b16 %v199
    %v714 = vunpack.c.l.b16 %v200
    %v715 = vunpack.c.h.b16 %v200
    %v716 = vunpack.c.l.b16 %v201
    %v717 = vunpack.c.h.b16 %v201
    %v718 = vunpack.c.l.b16 %v202
    %v719 = vunpack.c.h.b16 %v202
    %v720 = vunpack.c.l.b16 %v203
    %v721 = vunpack.c.h.b16 %v203
    %v722 = vunpack.c.l.b16 %v204
    %v723 = vunpack.c.h.b16 %v204
    %v724 = vunpack.c.l.b16 %v205
    %v725 = vunpack.c.h.b16 %v205
    %v726 = vunpack.c.l.b16 %v206
    %v727 = vunpack.c.h.b16 %v206
    %v728 = vunpack.c.l.b16 %v207
    %v729 = vunpack.c.h.b16 %v207
    %v730 = vunpack.c.l.b16 %v208
    %v731 = vunpack.c.h.b16 %v208
    %v732 = vunpack.c.l.b16 %v209
    %v733 = vunpack.c.h.b16 %v209
    %v734 = vunpack.c.l.b16 %v210
    %v735 = vunpack.c.h.b16 %v210
    %v736 = vunpack.c.l.b16 %v211
    %v737 = vunpack.c.h.b16 %v211
    %v738 = vunpack.c.l.b16 %v212
    %v739 = vunpack.c.h.b16 %v212
    %v740 = vunpack.c.l.b16 %v213
    %v741 = vunpack.c.h.b16 %v213
    %v742 = vunpack.c.l.b16 %v214
    %v743 = vunpack.c.h.b16 %v214
    %v744 = vunpack.c.l.b16 %v215
    %v745 = vunpack.c.h.b16 %v215
    %v746 = vunpack.c.l.b16 %v216
    %v747 = vunpack.c.h.b16 %v216
    %v748 = vunpack.c.l.b16 %v217
    %v749 = vunpack.c.h.b16 %v217
    %v750 = vunpack.c.l.b16 %v218
    %v751 = vunpack.c.h.b16 %v218
    %v752 = vunpack.c.l.b16 %v219
    %v753 = vunpack.c.h.b16 %v219
    %v754 = vunpack.c.l.b16 %v220
    %v755 = vunpack.c.h.b16 %v220
    %v756 = vunpack.c.l.b16 %v221
    %v757 = vunpack.c.h.b16 %v221
    %v758 = vunpack.c.l.b16 %v222
    %v759 = vunpack.c.h.b16 %v222
    %v760 = vunpack.c.l.b16 %v223
    %v761 = vunpack.c.h.b16 %v223
    %v762 = vunpack.c.l.b16 %v224
    %v763 = vunpack.c.h.b16 %v224
    %v764 = vunpack.c.l.b16 %v225
    %v765 = vunpack.c.h.b16 %v225
    %v766 = vunpack.c.l.b16 %v226
    %v767 = vunpack.c.h.b16 %v226
    %v768 = vunpack.c.l.b16 %v227
    %v769 = vunpack.c.h.b16 %v227
    %v770 = vunpack.c.l.b16 %v228
    %v771 = vunpack.c.h.b16 %v228
    %v772 = vunpack.c.l.b16 %v229
    %v773 = vunpack.c.h.b16 %v229
    %v774 = vunpack.c.l.b16 %v230
    %v775 = vunpack.c.h.b16 %v230
    %v776 = vunpack.c.l.b16 %v231
    %v777 = vunpack.c.h.b16 %v231
    %v778 = vunpack.c.l.b16 %v232
    %v779 = vunpack.c.h.b16 %v232
    %v780 = vunpack.c.l.b16 %v233
    %v781 = vunpack.c.h.b16 %v233
    %v782 = vunpack.c.l.b16 %v234
    %v783 = vunpack.c.h.b16 %v234
    %v784 = vunpack.c.l.b16 %v235
    %v785 = vunpack.c.h.b16 %v235
    %v786 = vunpack.c.l.b16 %v236
    %v787 = vunpack.c.h.b16 %v236
    %v788 = vunpack.c.l.b16 %v237
    %v789 = vunpack.c.h.b16 %v237
    %v790 = vunpack.c.l.b16 %v238
    %v791 = vunpack.c.h.b16 %v238
    %v792 = vunpack.c.l.b16 %v239
    %v793 = vunpack.c.h.b16 %v239
    %v794 = vunpack.c.l.b16 %v240
    %v795 = vunpack.c.h.b16 %v240
    %v796 = vunpack.c.l.b16 %v241
    %v797 = vunpack.c.h.b16 %v241
    %v798 = vunpack.c.l.b16 %v242
    %v799 = vunpack.c.h.b16 %v242
    %v800 = vunpack.c.l.b16 %v243
    %v801 = vunpack.c.h.b16 %v243
    %v802 = vunpack.c.l.b16 %v244
    %v803 = vunpack.c.h.b16 %v244
    %v804 = vunpack.c.l.b16 %v245
    %v805 = vunpack.c.h.b16 %v245
    %v806 = vunpack.c.l.b16 %v246
    %v807 = vunpack.c.h.b16 %v246
    %v808 = vunpack.c.l.b16 %v247
    %v809 = vunpack.c.h.b16 %v247
    %v810 = vunpack.c.l.b16 %v248
    %v811 = vunpack.c.h.b16 %v248
    %v812 = vunpack.c.l.b16 %v249
    %v813 = vunpack.c.h.b16 %v249
    %v814 = vunpack.c.l.b16 %v250
    %v815 = vunpack.c.h.b16 %v250
    %v816 = vunpack.c.l.b16 %v251
    %v817 = vunpack.c.h.b16 %v251
    %v818 = vunpack.c.l.b16 %v252
    %v819 = vunpack.c.h.b16 %v252
    %v820 = vunpack.c.l.b16 %v253
    %v821 = vunpack.c.h.b16 %v253
    %v822 = vunpack.c.l.b16 %v254
    %v823 = vunpack.c.h.b16 %v254
    %v824 = vunpack.c.l.b16 %v255
    %v825 = vunpack.c.h.b16 %v255
    %v826 = vunpack.c.l.b16 %v256
    %v827 = vunpack.c.h.b16 %v256
    %v828 = vunpack.c.l.b16 %v257
    %v829 = vunpack.c.h.b16 %v257
    %v830 = vunpack.c.l.b16 %v258
    %v831 = vunpack.c.h.b16 %v258
    %v832 = vunpack.c.l.b16 %v259
    %v833 = vunpack.c.h.b16 %v259
    %v834 = vunpack.c.l.b16 %v260
    %v835 = vunpack.c.h.b16 %v260
    %v836 = vunpack.c.l.b16 %v261
    %v837 = vunpack.c.h.b16 %v261
    %v838 = vunpack.c.l.b16 %v262
    %v839 = vunpack.c.h.b16 %v262
    %v840 = vunpack.c.l.b16 %v263
    %v841 = vunpack.c.h.b16 %v263
    %v842 = vunpack.c.l.b16 %v264
    %v843 = vunpack.c.h.b16 %v264
    %v844 = vunpack.c.l.b16 %v265
    %v845 = vunpack.c.h.b16 %v265
    %v846 = vunpack.c.l.b16 %v266
    %v847 = vunpack.c.h.b16 %v266
    %v848 = vunpack.c.l.b16 %v267
    %v849 = vunpack.c.h.b16 %v267
    %v850 = vunpack.c.l.b16 %v268
    %v851 = vunpack.c.h.b16 %v268
    %v852 = vunpack.c.l.b16 %v269
    %v853 = vunpack.c.h.b16 %v269
    %v854 = vunpack.c.l.b16 %v270
    %v855 = vunpack.c.h.b16 %v270
    %v856 = vunpack.c.l.b16 %v271
    %v857 = vunpack.c.h.b16 %v271
    %v858 = vunpack.c.l.b16 %v272
    %v859 = vunpack.c.h.b16 %v272
    %v860 = vunpack.c.l.b16 %v273
    %v861 = vunpack.c.h.b16 %v273
    %v862 = vunpack.c.l.b16 %v274
    %v863 = vunpack.c.h.b16 %v274
    %v864 = vunpack.c.l.b16 %v275
    %v865 = vunpack.c.h.b16 %v275
    %v866 = vunpack.c.l.b16 %v276
    %v867 = vunpack.c.h.b16 %v276
    %v868 = vunpack.c.l.b16 %v277
    %v869 = vunpack.c.h.b16 %v277
    %v870 = vunpack.c.l.b16 %v278
    %v871 = vunpack.c.h.b16 %v278
    %v872 = vunpack.c.l.b16 %v279
    %v873 = vunpack.c.h.b16 %v279
    %v874 = vunpack.c.l.b16 %v280
    %v875 = vunpack.c.h.b16 %v280
    %v876 = vunpack.c.l.b16 %v281
    %v877 = vunpack.c.h.b16 %v281
    %v878 = vunpack.c.l.b16 %v282
    %v879 = vunpack.c.h.b16 %v282
    %v880 = vunpack.c.l.b16 %v283
    %v881 = vunpack.c.h.b16 %v283
    %v882 = vunpack.c.l.b16 %v284
    %v883 = vunpack.c.h.b16 %v284
    %v884 = vunpack.c.l.b16 %v285
    %v885 = vunpack.c.h.b16 %v285
    %v886 = vunpack.c.l.b16 %v286
    %v887 = vunpack.c.h.b16 %v286
    %v888 = vunpack.c.l.b16 %v287
    %v889 = vunpack.c.h.b16 %v287
    %v890 = vunpack.c.l.b16 %v288
    %v891 = vunpack.c.h.b16 %v288
    %v892 = vunpack.c.l.b16 %v289
    %v893 = vunpack.c.h.b16 %v289
    %v894 = vunpack.c.l.b16 %v290
    %v895 = vunpack.c.h.b16 %v290
    %v896 = vunpack.c.l.b16 %v291
    %v897 = vunpack.c.h.b16 %v291
    %v898 = vunpack.c.l.b16 %v292
    %v899 = vunpack.c.h.b16 %v292
    %v900 = vunpack.c.l.b16 %v293
    %v901 = vunpack.c.h.b16 %v293
    %v902 = vunpack.c.l.b16 %v294
    %v903 = vunpack.c.h.b16 %v294
    %v904 = vunpack.c.l.b16 %v295
    %v905 = vunpack.c.h.b16 %v295
    %v906 = vunpack.c.l.b16 %v296
    %v907 = vunpack.c.h.b16 %v296
    %v908 = vunpack.c.l.b16 %v297
    %v909 = vunpack.c.h.b16 %v297
    %v910 = vunpack.c.l.b16 %v298
    %v911 = vunpack.c.h.b16 %v298
    %v912 = vunpack.c.l.b16 %v299
    %v913 = vunpack.c.h.b16 %v299
    %v914 = vunpack.c.l.b16 %v300
    %v915 = vunpack.c.h.b16 %v300
    %v916 = vunpack.c.l.b16 %v301
    %v917 = vunpack.c.h.b16 %v301
    %v918 = vunpack.c.l.b16 %v302
    %v919 = vunpack.c.h.b16 %v302
    %v920 = vunpack.c.l.b16 %v303
    %v921 = vunpack.c.h.b16 %v303
    %v922 = vunpack.c.l.b16 %v304
    %v923 = vunpack.c.h.b16 %v304
    %v924 = vunpack.c.l.b16 %v305
    %v925 = vunpack.c.h.b16 %v305
    %v926 = vunpack.c.l.b16 %v306
    %v927 = vunpack.c.h.b16 %v306
    %v928 = vunpack.c.l.b16 %v307
    %v929 = vunpack.c.h.b16 %v307
    %v930 = vunpack.c.l.b16 %v308
    %v931 = vunpack.c.h.b16 %v308
    %v932 = vunpack.c.l.b16 %v309
    %v933 = vunpack.c.h.b16 %v309
    %v934 = vunpack.c.l.b16 %v310
    %v935 = vunpack.c.h.b16 %v310
    %v936 = vunpack.c.l.b16 %v311
    %v937 = vunpack.c.h.b16 %v311
    %v938 = vunpack.c.l.b16 %v312
    %v939 = vunpack.c.h.b16 %v312
    %v940 = vunpack.c.l.b16 %v313
    %v941 = vunpack.c.h.b16 %v313
    %v942 = vunpack.c.l.b16 %v314
    %v943 = vunpack.c.h.b16 %v314
    %v944 = vunpack.c.l.b16 %v315
    %v945 = vunpack.c.h.b16 %v315
    %v946 = vunpack.c.l.b16 %v316
    %v947 = vunpack.c.h.b16 %v316
    %v948 = vunpack.c.l.b16 %v317
    %v949 = vunpack.c.h.b16 %v317
    %v950 = vunpack.c.l.b16 %v318
    %v951 = vunpack.c.h.b16 %v318
    %v952 = vunpack.c.l.b16 %v319
    %v953 = vunpack.c.h.b16 %v319
    %v954 = vunpack.c.l.b16 %v320
    %v955 = vunpack.c.h.b16 %v320
    %v956 = vunpack.c.l.b16 %v321
    %v957 = vunpack.c.h.b16 %v321
    %v958 = vunpack.c.l.b16 %v322
    %v959 = vunpack.c.h.b16 %v322
    %v960 = vunpack.c.l.b16 %v323
    %v961 = vunpack.c.h.b16 %v323
    %v962 = vunpack.c.l.b16 %v324
    %v963 = vunpack.c.h.b16 %v324
    %v964 = vunpack.c.l.b16 %v325
    %v965 = vunpack.c.h.b16 %v325
    %v966 = vunpack.c.l.b16 %v326
    %v967 = vunpack.c.h.b16 %v326
    %v968 = vunpack.c.l.b16 %v327
    %v969 = vunpack.c.h.b16 %v327
    %v970 = vunpack.c.l.b16 %v328
    %v971 = vunpack.c.h.b16 %v328
    %v972 = vunpack.c.l.b16 %v329
    %v973 = vunpack.c.h.b16 %v329
    %v974 = vunpack.c.l.b16 %v330
    %v975 = vunpack.c.h.b16 %v330
    %v976 = vunpack.c.l.b16 %v331
    %v977 = vunpack.c.h.b16 %v331
    %v978 = vunpack.c.l.b16 %v332
    %v979 = vunpack.c.h.b16 %v332
    %v980 = vunpack.c.l.b16 %v333
    %v981 = vunpack.c.h.b16 %v333
    %v982 = vunpack.c.l.b16 %v334
    %v983 = vunpack.c.h.b16 %v334
    %v984 = vunpack.c.l.b16 %v335
    %v985 = vunpack.c.h.b16 %v335
    %v986 = vunpack.c.l.b16 %v336
    %v987 = vunpack.c.h.b16 %v336
    %v988 = vunpack.c.l.b16 %v337
    %v989 = vunpack.c.h.b16 %v337
    %v990 = vunpack.c.l.b16 %v338
    %v991 = vunpack.c.h.b16 %v338
    %v992 = vunpack.c.l.b16 %v339
    %v993 = vunpack.c.h.b16 %v339
    %v994 = vunpack.c.l.b16 %v340
    %v995 = vunpack.c.h.b16 %v340
    %v996 = vunpack.c.l.b16 %v341
    %v997 = vunpack.c.h.b16 %v341
    %v998 = vunpack.c.l.b16 %v342
    %v999 = vunpack.c.h.b16 %v342
    %v1000 = vunpack.c.l.b16 %v343
    %v1001 = vunpack.c.h.b16 %v343
    %v1002 = vunpack.c.l.b16 %v344
    %v1003 = vunpack.c.h.b16 %v344
    %v1004 = vunpack.c.l.b16 %v345
    %v1005 = vunpack.c.h.b16 %v345
    %v1006 = vunpack.c.l.b16 %v346
    %v1007 = vunpack.c.h.b16 %v346
    %v1008 = vunpack.c.l.b16 %v347
    %v1009 = vunpack.c.h.b16 %v347
    %v1010 = vunpack.c.l.b16 %v348
    %v1011 = vunpack.c.h.b16 %v348
    %v1012 = vunpack.c.l.b16 %v349
    %v1013 = vunpack.c.h.b16 %v349
    %v1014 = vunpack.c.l.b16 %v350
    %v1015 = vunpack.c.h.b16 %v350
    %v1016 = vunpack.c.l.b16 %v351
    %v1017 = vunpack.c.h.b16 %v351
    %v1018 = vunpack.c.l.b16 %v352
    %v1019 = vunpack.c.h.b16 %v352
    %v1020 = vunpack.c.l.b16 %v353
    %v1021 = vunpack.c.h.b16 %v353
    %v1022 = vunpack.c.l.b16 %v354
    %v1023 = vunpack.c.h.b16 %v354
    %v1024 = vunpack.c.l.b16 %v355
    %v1025 = vunpack.c.h.b16 %v355
    %v1026 = vunpack.c.l.b16 %v356
    %v1027 = vunpack.c.h.b16 %v356
    %v1028 = vunpack.c.l.b16 %v357
    %v1029 = vunpack.c.h.b16 %v357
    %v1030 = vunpack.c.l.b16 %v358
    %v1031 = vunpack.c.h.b16 %v358
    %v1032 = vunpack.c.l.b16 %v359
    %v1033 = vunpack.c.h.b16 %v359
    %v1034 = vunpack.c.l.b16 %v360
    %v1035 = vunpack.c.h.b16 %v360
    %v1036 = vunpack.c.l.b16 %v361
    %v1037 = vunpack.c.h.b16 %v361
    %v1038 = vunpack.c.l.b16 %v362
    %v1039 = vunpack.c.h.b16 %v362
    %v1040 = vunpack.c.l.b16 %v363
    %v1041 = vunpack.c.h.b16 %v363
    %v1042 = vunpack.c.l.b16 %v364
    %v1043 = vunpack.c.h.b16 %v364
    %v1044 = vunpack.c.l.b16 %v365
    %v1045 = vunpack.c.h.b16 %v365
    %v1046 = vunpack.c.l.b16 %v366
    %v1047 = vunpack.c.h.b16 %v366
    %v1048 = vunpack.c.l.b16 %v367
    %v1049 = vunpack.c.h.b16 %v367
    %v1050 = vunpack.c.l.b16 %v368
    %v1051 = vunpack.c.h.b16 %v368
    %v1052 = vunpack.c.l.b16 %v369
    %v1053 = vunpack.c.h.b16 %v369
    %v1054 = vunpack.c.l.b16 %v370
    %v1055 = vunpack.c.h.b16 %v370
    %v1056 = vunpack.c.l.b16 %v371
    %v1057 = vunpack.c.h.b16 %v371
    %v1058 = vunpack.c.l.b16 %v372
    %v1059 = vunpack.c.h.b16 %v372
    %v1060 = vunpack.c.l.b16 %v373
    %v1061 = vunpack.c.h.b16 %v373
    %v1062 = vunpack.c.l.b16 %v374
    %v1063 = vunpack.c.h.b16 %v374
    %v1064 = vunpack.c.l.b16 %v375
    %v1065 = vunpack.c.h.b16 %v375
    %v1066 = vunpack.c.l.b16 %v376
    %v1067 = vunpack.c.h.b16 %v376
    %v1068 = vunpack.c.l.b16 %v377
    %v1069 = vunpack.c.h.b16 %v377
    %v1070 = vunpack.c.l.b16 %v378
    %v1071 = vunpack.c.h.b16 %v378
    %v1072 = vunpack.c.l.b16 %v379
    %v1073 = vunpack.c.h.b16 %v379
    %v1074 = vunpack.c.l.b16 %v380
    %v1075 = vunpack.c.h.b16 %v380
    %v1076 = vunpack.c.l.b16 %v381
    %v1077 = vunpack.c.h.b16 %v381
    %v1078 = vunpack.c.l.b16 %v382
    %v1079 = vunpack.c.h.b16 %v382
    %v1080 = vunpack.c.l.b16 %v383
    %v1081 = vunpack.c.h.b16 %v383
    %v1082 = vunpack.c.l.b16 %v384
    %v1083 = vunpack.c.h.b16 %v384
    %v1084 = vunpack.c.l.b16 %v385
    %v1085 = vunpack.c.h.b16 %v385
    %v1086 = vunpack.c.l.b16 %v386
    %v1087 = vunpack.c.h.b16 %v386
    %v1088 = vunpack.c.l.b16 %v387
    %v1089 = vunpack.c.h.b16 %v387
    %v1090 = vunpack.c.l.b16 %v388
    %v1091 = vunpack.c.h.b16 %v388
    %v1092 = vunpack.c.l.b16 %v389
    %v1093 = vunpack.c.h.b16 %v389
    %v1094 = vunpack.c.l.b16 %v390
    %v1095 = vunpack.c.h.b16 %v390
    %v1096 = vunpack.c.l.b16 %v391
    %v1097 = vunpack.c.h.b16 %v391
    %v1098 = vunpack.c.l.b16 %v392
    %v1099 = vunpack.c.h.b16 %v392
    %v1100 = vpack.c.b16 %v656, %v652
    %v1101 = vpack.c.b16 %v657, %v653
    %v1102 = vpack.c.b16 %v658, %v654
    %v1103 = vpack.c.b16 %v659, %v655
    %v1104 = vpack.c.b16 %v664, %v660
    %v1105 = vpack.c.b16 %v665, %v661
    %v1106 = vpack.c.b16 %v666, %v662
    %v1107 = vpack.c.b16 %v667, %v663
    %v1108 = vpack.c.b16 %v672, %v668
    %v1109 = vpack.c.b16 %v673, %v669
    %v1110 = vpack.c.b16 %v674, %v670
    %v1111 = vpack.c.b16 %v675, %v671
    %v1112 = vpack.c.b16 %v680, %v676
    %v1113 = vpack.c.b16 %v681, %v677
    %v1114 = vpack.c.b16 %v682, %v678
    %v1115 = vpack.c.b16 %v683, %v679
    %v1116 = vpack.c.b16 %v688, %v684
    %v1117 = vpack.c.b16 %v689, %v685
    %v1118 = vpack.c.b16 %v690, %v686
    %v1119 = vpack.c.b16 %v691, %v687
    %v1120 = vpack.c.b16 %v696, %v692
    %v1121 = vpack.c.b16 %v697, %v693
    %v1122 = vpack.c.b16 %v698, %v694
    %v1123 = vpack.c.b16 %v699, %v695
    %v1124 = vpack.c.b16 %v704, %v700
    %v1125 = vpack.c.b16 %v705, %v701
    %v1126 = vpack.c.b16 %v706, %v702
    %v1127 = vpack.c.b16 %v707, %v703
    %v1128 = vpack.c.b16 %v712, %v708
    %v1129 = vpack.c.b16 %v713, %v709
    %v1130 = vpack.c.b16 %v714, %v710
    %v1131 = vpack.c.b16 %v715, %v711
    %v1132 = vpack.c.b16 %v720, %v716
    %v1133 = vpack.c.b16 %v721, %v717
    %v1134 = vpack.c.b16 %v722, %v718
    %v1135 = vpack.c.b16 %v723, %v719
    %v1136 = vpack.c.b16 %v728, %v724
    %v1137 = vpack.c.b16 %v729, %v725
    %v1138 = vpack.c.b16 %v730, %v726
    %v1139 = vpack.c.b16 %v731, %v727
    %v1140 = vpack.c.b16 %v736, %v732
    %v1141 = vpack.c.b16 %v737, %v733
    %v1142 = vpack.c.b16 %v738, %v734
    %v1143 = vpack.c.b16 %v739, %v735
    %v1144 = vpack.c.b16 %v744, %v740
    %v1145 = vpack.c.b16 %v745, %v741
    %v1146 = vpack.c.b16 %v746, %v742
    %v1147 = vpack.c.b16 %v747, %v743
    %v1148 = vpack.c.b16 %v752, %v748
    %v1149 = vpack.c.b16 %v753, %v749
    %v1150 = vpack.c.b16 %v754, %v750
    %v1151 = vpack.c.b16 %v755, %v751
    %v1152 = vpack.c.b16 %v760, %v756
    %v1153 = vpack.c.b16 %v761, %v757
    %v1154 = vpack.c.b16 %v762, %v758
    %v1155 = vpack.c.b16 %v763, %v759
    %v1156 = vpack.c.b16 %v768, %v764
    %v1157 = vpack.c.b16 %v769, %v765
    %v1158 = vpack.c.b16 %v770, %v766
    %v1159 = vpack.c.b16 %v771, %v767
    %v1160 = vpack.c.b16 %v776, %v772
    %v1161 = vpack.c.b16 %v777, %v773
    %v1162 = vpack.c.b16 %v778, %v774
    %v1163 = vpack.c.b16 %v779, %v775
    %v1164 = vpack.c.b16 %v784, %v780
    %v1165 = vpack.c.b16 %v785, %v781
    %v1166 = vpack.c.b16 %v786, %v782
    %v1167 = vpack.c.b16 %v787, %v783
    %v1168 = vpack.c.b16 %v792, %v788
    %v1169 = vpack.c.b16 %v793, %v789
    %v1170 = vpack.c.b16 %v794, %v790
    %v1171 = vpack.c.b16 %v795, %v791
    %v1172 = vpack.c.b16 %v800, %v796
    %v1173 = vpack.c.b16 %v801, %v797
    %v1174 = vpack.c.b16 %v802, %v798
    %v1175 = vpack.c.b16 %v803, %v799
    %v1176 = vpack.c.b16 %v808, %v804
    %v1177 = vpack.c.b16 %v809, %v805
    %v1178 = vpack.c.b16 %v810, %v806
    %v1179 = vpack.c.b16 %v811, %v807
    %v1180 = vpack.c.b16 %v816, %v812
    %v1181 = vpack.c.b16 %v817, %v813
    %v1182 = vpack.c.b16 %v818, %v814
    %v1183 = vpack.c.b16 %v819, %v815
    %v1184 = vpack.c.b16 %v824, %v820
    %v1185 = vpack.c.b16 %v825, %v821
    %v1186 = vpack.c.b16 %v826, %v822
    %v1187 = vpack.c.b16 %v827, %v823
    %v1188 = vpack.c.b16 %v832, %v828
    %v1189 = vpack.c.b16 %v833, %v829
    %v1190 = vpack.c.b16 %v834, %v830
    %v1191 = vpack.c.b16 %v835, %v831
    %v1192 = vpack.c.b16 %v840, %v836
    %v1193 = vpack.c.b16 %v841, %v837
    %v1194 = vpack.c.b16 %v842, %v838
    %v1195 = vpack.c.b16 %v843, %v839
    %v1196 = vpack.c.b16 %v848, %v844
    %v1197 = vpack.c.b16 %v849, %v845
    %v1198 = vpack.c.b16 %v850, %v846
    %v1199 = vpack.c.b16 %v851, %v847
    %v1200 = vpack.c.b16 %v856, %v852
    %v1201 = vpack.c.b16 %v857, %v853
    %v1202 = vpack.c.b16 %v858, %v854
    %v1203 = vpack.c.b16 %v859, %v855
    %v1204 = vpack.c.b16 %v864, %v860
    %v1205 = vpack.c.b16 %v865, %v861
    %v1206 = vpack.c.b16 %v866, %v862
    %v1207 = vpack.c.b16 %v867, %v863
    %v1208 = vpack.c.b16 %v872, %v868
    %v1209 = vpack.c.b16 %v873, %v869
    %v1210 = vpack.c.b16 %v874, %v870
    %v1211 = vpack.c.b16 %v875, %v871
    %v1212 = vpack.c.b16 %v880, %v876
    %v1213 = vpack.c.b16 %v881, %v877
    %v1214 = vpack.c.b16 %v882, %v878
    %v1215 = vpack.c.b16 %v883, %v879
    %v1216 = vpack.c.b16 %v888, %v884
    %v1217 = vpack.c.b16 %v889, %v885
    %v1218 = vpack.c.b16 %v890, %v886
    %v1219 = vpack.c.b16 %v891, %v887
    %v1220 = vpack.c.b16 %v896, %v892
    %v1221 = vpack.c.b16 %v897, %v893
    %v1222 = vpack.c.b16 %v898, %v894
    %v1223 = vpack.c.b16 %v899, %v895
    %v1224 = vpack.c.b16 %v904, %v900
    %v1225 = vpack.c.b16 %v905, %v901
    %v1226 = vpack.c.b16 %v906, %v902
    %v1227 = vpack.c.b16 %v907, %v903
    %v1228 = vpack.c.b16 %v912, %v908
    %v1229 = vpack.c.b16 %v913, %v909
    %v1230 = vpack.c.b16 %v914, %v910
    %v1231 = vpack.c.b16 %v915, %v911
    %v1232 = vpack.c.b16 %v920, %v916
    %v1233 = vpack.c.b16 %v921, %v917
    %v1234 = vpack.c.b16 %v922, %v918
    %v1235 = vpack.c.b16 %v923, %v919
    %v1236 = vpack.c.b16 %v928, %v924
    %v1237 = vpack.c.b16 %v929, %v925
    %v1238 = vpack.c.b16 %v930, %v926
    %v1239 = vpack.c.b16 %v931, %v927
    %v1240 = vpack.c.b16 %v936, %v932
    %v1241 = vpack.c.b16 %v937, %v933
    %v1242 = vpack.c.b16 %v938, %v934
    %v1243 = vpack.c.b16 %v939, %v935
    %v1244 = vpack.c.b16 %v944, %v940
    %v1245 = vpack.c.b16 %v945, %v941
    %v1246 = vpack.c.b16 %v946, %v942
    %v1247 = vpack.c.b16 %v947, %v943
    %v1248 = vpack.c.b16 %v952, %v948
    %v1249 = vpack.c.b16 %v953, %v949
    %v1250 = vpack.c.b16 %v954, %v950
    %v1251 = vpack.c.b16 %v955, %v951
    %v1252 = vpack.c.b16 %v960, %v956
    %v1253 = vpack.c.b16 %v961, %v957
    %v1254 = vpack.c.b16 %v962, %v958
    %v1255 = vpack.c.b16 %v963, %v959
    %v1256 = vpack.c.b16 %v968, %v964
    %v1257 = vpack.c.b16 %v969, %v965
    %v1258 = vpack.c.b16 %v970, %v966
    %v1259 = vpack.c.b16 %v971, %v967
    %v1260 = vpack.c.b16 %v976, %v972
    %v1261 = vpack.c.b16 %v977, %v973
    %v1262 = vpack.c.b16 %v978, %v974
    %v1263 = vpack.c.b16 %v979, %v975
    %v1264 = vpack.c.b16 %v984, %v980
    %v1265 = vpack.c.b16 %v985, %v981
    %v1266 = vpack.c.b16 %v986, %v982
    %v1267 = vpack.c.b16 %v987, %v983
    %v1268 = vpack.c.b16 %v992, %v988
    %v1269 = vpack.c.b16 %v993, %v989
    %v1270 = vpack.c.b16 %v994, %v990
    %v1271 = vpack.c.b16 %v995, %v991
    %v1272 = vpack.c.b16 %v1000, %v996
    %v1273 = vpack.c.b16 %v1001, %v997
    %v1274 = vpack.c.b16 %v1002, %v998
    %v1275 = vpack.c.b16 %v1003, %v999
    %v1276 = vpack.c.b16 %v1008, %v1004
    %v1277 = vpack.c.b16 %v1009, %v1005
    %v1278 = vpack.c.b16 %v1010, %v1006
    %v1279 = vpack.c.b16 %v1011, %v1007
    %v1280 = vpack.c.b16 %v1016, %v1012
    %v1281 = vpack.c.b16 %v1017, %v1013
    %v1282 = vpack.c.b16 %v1018, %v1014
    %v1283 = vpack.c.b16 %v1019, %v1015
    %v1284 = vpack.c.b16 %v1024, %v1020
    %v1285 = vpack.c.b16 %v1025, %v1021
    %v1286 = vpack.c.b16 %v1026, %v1022
    %v1287 = vpack.c.b16 %v1027, %v1023
    %v1288 = vpack.c.b16 %v1032, %v1028
    %v1289 = vpack.c.b16 %v1033, %v1029
    %v1290 = vpack.c.b16 %v1034, %v1030
    %v1291 = vpack.c.b16 %v1035, %v1031
    %v1292 = vpack.c.b16 %v1040, %v1036
    %v1293 = vpack.c.b16 %v1041, %v1037
    %v1294 = vpack.c.b16 %v1042, %v1038
    %v1295 = vpack.c.b16 %v1043, %v1039
    %v1296 = vpack.c.b16 %v1048, %v1044
    %v1297 = vpack.c.b16 %v1049, %v1045
    %v1298 = vpack.c.b16 %v1050, %v1046
    %v1299 = vpack.c.b16 %v1051, %v1047
    %v1300 = vpack.c.b16 %v1056, %v1052
    %v1301 = vpack.c.b16 %v1057, %v1053
    %v1302 = vpack.c.b16 %v1058, %v1054
    %v1303 = vpack.c.b16 %v1059, %v1055
    %v1304 = vpack.c.b16 %v1064, %v1060
    %v1305 = vpack.c.b16 %v1065, %v1061
    %v1306 = vpack.c.b16 %v1066, %v1062
    %v1307 = vpack.c.b16 %v1067, %v1063
    %v1308 = vpack.c.b16 %v1072, %v1068
    %v1309 = vpack.c.b16 %v1073, %v1069
    %v1310 = vpack.c.b16 %v1074, %v1070
    %v1311 = vpack.c.b16 %v1075, %v1071
    %v1312 = vpack.c.b16 %v1080, %v1076
    %v1313 = vpack.c.b16 %v1081, %v1077
    %v1314 = vpack.c.b16 %v1082, %v1078
    %v1315 = vpack.c.b16 %v1083, %v1079
    %v1316 = vpack.c.b16 %v1088, %v1084
    %v1317 = vpack.c.b16 %v1089, %v1085
    %v1318 = vpack.c.b16 %v1090, %v1086
    %v1319 = vpack.c.b16 %v1091, %v1087
    %v1320 = vpack.c.b16 %v1096, %v1092
    %v1321 = vpack.c.b16 %v1097, %v1093
    %v1322 = vpack.c.b16 %v1098, %v1094
    %v1323 = vpack.c.b16 %v1099, %v1095
    %1548 = vmatpush.bf16.msra.mxu0 %v1128
    %1549 = vmatpush.bf16.msra.mxu0 %v1124
    %1550 = vmatpush.bf16.msra.mxu0 %v1120
    %1551 = vmatpush.bf16.msra.mxu0 %v1116
    %1552 = vmatpush.bf16.msra.mxu0 %v1112
    %1553 = vmatpush.bf16.msra.mxu0 %v1108
    %1554 = vmatpush.bf16.msra.mxu0 %v1104
    %1555 = vmatpush.bf16.msra.mxu0 %v1100
    %1556 = vmatmul.bf16.gmra.mxu0 %v414
    %v1557 = vpop.f32.mrf.mxu0
    %v1558 = vadd.f32 %v395, %v1557
    %v1559 = vpop.f32.mrf.mxu0
    %1560 = vdwg.mxu0
    %1561 = vmatpush.bf16.msra.mxu0 %v1160
    %1562 = vmatpush.bf16.msra.mxu0 %v1156
    %1563 = vmatpush.bf16.msra.mxu0 %v1152
    %1564 = vmatpush.bf16.msra.mxu0 %v1148
    %1565 = vmatpush.bf16.msra.mxu0 %v1144
    %1566 = vmatpush.bf16.msra.mxu0 %v1140
    %1567 = vmatpush.bf16.msra.mxu0 %v1136
    %1568 = vmatpush.bf16.msra.mxu0 %v1132
    %1569 = vmatmul.bf16.gmra.mxu0 %v415
    %v1570 = vpop.f32.mrf.mxu0
    %v1571 = vadd.f32 %v1558, %v1570
    %v1572 = vpop.f32.mrf.mxu0
    %1573 = vdwg.mxu0
    %1574 = vmatpush.bf16.msra.mxu0 %v1192
    %1575 = vmatpush.bf16.msra.mxu0 %v1188
    %1576 = vmatpush.bf16.msra.mxu0 %v1184
    %1577 = vmatpush.bf16.msra.mxu0 %v1180
    %1578 = vmatpush.bf16.msra.mxu0 %v1176
    %1579 = vmatpush.bf16.msra.mxu0 %v1172
    %1580 = vmatpush.bf16.msra.mxu0 %v1168
    %1581 = vmatpush.bf16.msra.mxu0 %v1164
    %1582 = vmatmul.bf16.gmra.mxu0 %v416
    %v1583 = vpop.f32.mrf.mxu0
    %v1584 = vadd.f32 %v1571, %v1583
    %v1585 = vpop.f32.mrf.mxu0
    %1586 = vdwg.mxu0
    %1587 = vmatpush.bf16.msra.mxu0 %v1224
    %1588 = vmatpush.bf16.msra.mxu0 %v1220
    %1589 = vmatpush.bf16.msra.mxu0 %v1216
    %1590 = vmatpush.bf16.msra.mxu0 %v1212
    %1591 = vmatpush.bf16.msra.mxu0 %v1208
    %1592 = vmatpush.bf16.msra.mxu0 %v1204
    %1593 = vmatpush.bf16.msra.mxu0 %v1200
    %1594 = vmatpush.bf16.msra.mxu0 %v1196
    %1595 = vmatmul.bf16.gmra.mxu0 %v417
    %v1596 = vpop.f32.mrf.mxu0
    %v1597 = vadd.f32 %v1584, %v1596
    %v1598 = vpop.f32.mrf.mxu0
    %1599 = vdwg.mxu0
    %1600 = vmatpush.bf16.msra.mxu0 %v1256
    %1601 = vmatpush.bf16.msra.mxu0 %v1252
    %1602 = vmatpush.bf16.msra.mxu0 %v1248
    %1603 = vmatpush.bf16.msra.mxu0 %v1244
    %1604 = vmatpush.bf16.msra.mxu0 %v1240
    %1605 = vmatpush.bf16.msra.mxu0 %v1236
    %1606 = vmatpush.bf16.msra.mxu0 %v1232
    %1607 = vmatpush.bf16.msra.mxu0 %v1228
    %1608 = vmatmul.bf16.gmra.mxu0 %v418
    %v1609 = vpop.f32.mrf.mxu0
    %v1610 = vadd.f32 %v1597, %v1609
    %v1611 = vpop.f32.mrf.mxu0
    %1612 = vdwg.mxu0
    %1613 = vmatpush.bf16.msra.mxu0 %v1288
    %1614 = vmatpush.bf16.msra.mxu0 %v1284
    %1615 = vmatpush.bf16.msra.mxu0 %v1280
    %1616 = vmatpush.bf16.msra.mxu0 %v1276
    %1617 = vmatpush.bf16.msra.mxu0 %v1272
    %1618 = vmatpush.bf16.msra.mxu0 %v1268
    %1619 = vmatpush.bf16.msra.mxu0 %v1264
    %1620 = vmatpush.bf16.msra.mxu0 %v1260
    %1621 = vmatmul.bf16.gmra.mxu0 %v419
    %v1622 = vpop.f32.mrf.mxu0
    %v1623 = vadd.f32 %v1610, %v1622
    %v1624 = vpop.f32.mrf.mxu0
    %1625 = vdwg.mxu0
    %1626 = vmatpush.bf16.msra.mxu0 %v1320
    %1627 = vmatpush.bf16.msra.mxu0 %v1316
    %1628 = vmatpush.bf16.msra.mxu0 %v1312
    %1629 = vmatpush.bf16.msra.mxu0 %v1308
    %1630 = vmatpush.bf16.msra.mxu0 %v1304
    %1631 = vmatpush.bf16.msra.mxu0 %v1300
    %1632 = vmatpush.bf16.msra.mxu0 %v1296
    %1633 = vmatpush.bf16.msra.mxu0 %v1292
    %1634 = vmatmul.bf16.gmra.mxu0 %v420
    %v1635 = vpop.f32.mrf.mxu0
    %v1636 = vadd.f32 %v1623, %v1635
    %v1637 = vpop.f32.mrf.mxu0
    %1638 = vdwg.mxu0
    %1639 = vmatpush.bf16.msra.mxu0 %v1129
    %1640 = vmatpush.bf16.msra.mxu0 %v1125
    %1641 = vmatpush.bf16.msra.mxu0 %v1121
    %1642 = vmatpush.bf16.msra.mxu0 %v1117
    %1643 = vmatpush.bf16.msra.mxu0 %v1113
    %1644 = vmatpush.bf16.msra.mxu0 %v1109
    %1645 = vmatpush.bf16.msra.mxu0 %v1105
    %1646 = vmatpush.bf16.msra.mxu0 %v1101
    %1647 = vmatmul.bf16.gmra.mxu0 %v414
    %v1648 = vpop.f32.mrf.mxu0
    %v1649 = vadd.f32 %v396, %v1648
    %v1650 = vpop.f32.mrf.mxu0
    %1651 = vdwg.mxu0
    %1652 = vmatpush.bf16.msra.mxu0 %v1161
    %1653 = vmatpush.bf16.msra.mxu0 %v1157
    %1654 = vmatpush.bf16.msra.mxu0 %v1153
    %1655 = vmatpush.bf16.msra.mxu0 %v1149
    %1656 = vmatpush.bf16.msra.mxu0 %v1145
    %1657 = vmatpush.bf16.msra.mxu0 %v1141
    %1658 = vmatpush.bf16.msra.mxu0 %v1137
    %1659 = vmatpush.bf16.msra.mxu0 %v1133
    %1660 = vmatmul.bf16.gmra.mxu0 %v415
    %v1661 = vpop.f32.mrf.mxu0
    %v1662 = vadd.f32 %v1649, %v1661
    %v1663 = vpop.f32.mrf.mxu0
    %1664 = vdwg.mxu0
    %1665 = vmatpush.bf16.msra.mxu0 %v1193
    %1666 = vmatpush.bf16.msra.mxu0 %v1189
    %1667 = vmatpush.bf16.msra.mxu0 %v1185
    %1668 = vmatpush.bf16.msra.mxu0 %v1181
    %1669 = vmatpush.bf16.msra.mxu0 %v1177
    %1670 = vmatpush.bf16.msra.mxu0 %v1173
    %1671 = vmatpush.bf16.msra.mxu0 %v1169
    %1672 = vmatpush.bf16.msra.mxu0 %v1165
    %1673 = vmatmul.bf16.gmra.mxu0 %v416
    %v1674 = vpop.f32.mrf.mxu0
    %v1675 = vadd.f32 %v1662, %v1674
    %v1676 = vpop.f32.mrf.mxu0
    %1677 = vdwg.mxu0
    %1678 = vmatpush.bf16.msra.mxu0 %v1225
    %1679 = vmatpush.bf16.msra.mxu0 %v1221
    %1680 = vmatpush.bf16.msra.mxu0 %v1217
    %1681 = vmatpush.bf16.msra.mxu0 %v1213
    %1682 = vmatpush.bf16.msra.mxu0 %v1209
    %1683 = vmatpush.bf16.msra.mxu0 %v1205
    %1684 = vmatpush.bf16.msra.mxu0 %v1201
    %1685 = vmatpush.bf16.msra.mxu0 %v1197
    %1686 = vmatmul.bf16.gmra.mxu0 %v417
    %v1687 = vpop.f32.mrf.mxu0
    %v1688 = vadd.f32 %v1675, %v1687
    %v1689 = vpop.f32.mrf.mxu0
    %1690 = vdwg.mxu0
    %1691 = vmatpush.bf16.msra.mxu0 %v1257
    %1692 = vmatpush.bf16.msra.mxu0 %v1253
    %1693 = vmatpush.bf16.msra.mxu0 %v1249
    %1694 = vmatpush.bf16.msra.mxu0 %v1245
    %1695 = vmatpush.bf16.msra.mxu0 %v1241
    %1696 = vmatpush.bf16.msra.mxu0 %v1237
    %1697 = vmatpush.bf16.msra.mxu0 %v1233
    %1698 = vmatpush.bf16.msra.mxu0 %v1229
    %1699 = vmatmul.bf16.gmra.mxu0 %v418
    %v1700 = vpop.f32.mrf.mxu0
    %v1701 = vadd.f32 %v1688, %v1700
    %v1702 = vpop.f32.mrf.mxu0
    %1703 = vdwg.mxu0
    %1704 = vmatpush.bf16.msra.mxu0 %v1289
    %1705 = vmatpush.bf16.msra.mxu0 %v1285
    %1706 = vmatpush.bf16.msra.mxu0 %v1281
    %1707 = vmatpush.bf16.msra.mxu0 %v1277
    %1708 = vmatpush.bf16.msra.mxu0 %v1273
    %1709 = vmatpush.bf16.msra.mxu0 %v1269
    %1710 = vmatpush.bf16.msra.mxu0 %v1265
    %1711 = vmatpush.bf16.msra.mxu0 %v1261
    %1712 = vmatmul.bf16.gmra.mxu0 %v419
    %v1713 = vpop.f32.mrf.mxu0
    %v1714 = vadd.f32 %v1701, %v1713
    %v1715 = vpop.f32.mrf.mxu0
    %1716 = vdwg.mxu0
    %1717 = vmatpush.bf16.msra.mxu0 %v1321
    %1718 = vmatpush.bf16.msra.mxu0 %v1317
    %1719 = vmatpush.bf16.msra.mxu0 %v1313
    %1720 = vmatpush.bf16.msra.mxu0 %v1309
    %1721 = vmatpush.bf16.msra.mxu0 %v1305
    %1722 = vmatpush.bf16.msra.mxu0 %v1301
    %1723 = vmatpush.bf16.msra.mxu0 %v1297
    %1724 = vmatpush.bf16.msra.mxu0 %v1293
    %1725 = vmatmul.bf16.gmra.mxu0 %v420
    %v1726 = vpop.f32.mrf.mxu0
    %v1727 = vadd.f32 %v1714, %v1726
    %v1728 = vpop.f32.mrf.mxu0
    %1729 = vdwg.mxu0
    %1730 = vmatpush.bf16.msra.mxu0 %v1130
    %1731 = vmatpush.bf16.msra.mxu0 %v1126
    %1732 = vmatpush.bf16.msra.mxu0 %v1122
    %1733 = vmatpush.bf16.msra.mxu0 %v1118
    %1734 = vmatpush.bf16.msra.mxu0 %v1114
    %1735 = vmatpush.bf16.msra.mxu0 %v1110
    %1736 = vmatpush.bf16.msra.mxu0 %v1106
    %1737 = vmatpush.bf16.msra.mxu0 %v1102
    %1738 = vmatmul.bf16.gmra.mxu0 %v414
    %v1739 = vpop.f32.mrf.mxu0
    %v1740 = vadd.f32 %v397, %v1739
    %v1741 = vpop.f32.mrf.mxu0
    %1742 = vdwg.mxu0
    %1743 = vmatpush.bf16.msra.mxu0 %v1162
    %1744 = vmatpush.bf16.msra.mxu0 %v1158
    %1745 = vmatpush.bf16.msra.mxu0 %v1154
    %1746 = vmatpush.bf16.msra.mxu0 %v1150
    %1747 = vmatpush.bf16.msra.mxu0 %v1146
    %1748 = vmatpush.bf16.msra.mxu0 %v1142
    %1749 = vmatpush.bf16.msra.mxu0 %v1138
    %1750 = vmatpush.bf16.msra.mxu0 %v1134
    %1751 = vmatmul.bf16.gmra.mxu0 %v415
    %v1752 = vpop.f32.mrf.mxu0
    %v1753 = vadd.f32 %v1740, %v1752
    %v1754 = vpop.f32.mrf.mxu0
    %1755 = vdwg.mxu0
    %1756 = vmatpush.bf16.msra.mxu0 %v1194
    %1757 = vmatpush.bf16.msra.mxu0 %v1190
    %1758 = vmatpush.bf16.msra.mxu0 %v1186
    %1759 = vmatpush.bf16.msra.mxu0 %v1182
    %1760 = vmatpush.bf16.msra.mxu0 %v1178
    %1761 = vmatpush.bf16.msra.mxu0 %v1174
    %1762 = vmatpush.bf16.msra.mxu0 %v1170
    %1763 = vmatpush.bf16.msra.mxu0 %v1166
    %1764 = vmatmul.bf16.gmra.mxu0 %v416
    %v1765 = vpop.f32.mrf.mxu0
    %v1766 = vadd.f32 %v1753, %v1765
    %v1767 = vpop.f32.mrf.mxu0
    %1768 = vdwg.mxu0
    %1769 = vmatpush.bf16.msra.mxu0 %v1226
    %1770 = vmatpush.bf16.msra.mxu0 %v1222
    %1771 = vmatpush.bf16.msra.mxu0 %v1218
    %1772 = vmatpush.bf16.msra.mxu0 %v1214
    %1773 = vmatpush.bf16.msra.mxu0 %v1210
    %1774 = vmatpush.bf16.msra.mxu0 %v1206
    %1775 = vmatpush.bf16.msra.mxu0 %v1202
    %1776 = vmatpush.bf16.msra.mxu0 %v1198
    %1777 = vmatmul.bf16.gmra.mxu0 %v417
    %v1778 = vpop.f32.mrf.mxu0
    %v1779 = vadd.f32 %v1766, %v1778
    %v1780 = vpop.f32.mrf.mxu0
    %1781 = vdwg.mxu0
    %1782 = vmatpush.bf16.msra.mxu0 %v1258
    %1783 = vmatpush.bf16.msra.mxu0 %v1254
    %1784 = vmatpush.bf16.msra.mxu0 %v1250
    %1785 = vmatpush.bf16.msra.mxu0 %v1246
    %1786 = vmatpush.bf16.msra.mxu0 %v1242
    %1787 = vmatpush.bf16.msra.mxu0 %v1238
    %1788 = vmatpush.bf16.msra.mxu0 %v1234
    %1789 = vmatpush.bf16.msra.mxu0 %v1230
    %1790 = vmatmul.bf16.gmra.mxu0 %v418
    %v1791 = vpop.f32.mrf.mxu0
    %v1792 = vadd.f32 %v1779, %v1791
    %v1793 = vpop.f32.mrf.mxu0
    %1794 = vdwg.mxu0
    %1795 = vmatpush.bf16.msra.mxu0 %v1290
    %1796 = vmatpush.bf16.msra.mxu0 %v1286
    %1797 = vmatpush.bf16.msra.mxu0 %v1282
    %1798 = vmatpush.bf16.msra.mxu0 %v1278
    %1799 = vmatpush.bf16.msra.mxu0 %v1274
    %1800 = vmatpush.bf16.msra.mxu0 %v1270
    %1801 = vmatpush.bf16.msra.mxu0 %v1266
    %1802 = vmatpush.bf16.msra.mxu0 %v1262
    %1803 = vmatmul.bf16.gmra.mxu0 %v419
    %v1804 = vpop.f32.mrf.mxu0
    %v1805 = vadd.f32 %v1792, %v1804
    %v1806 = vpop.f32.mrf.mxu0
    %1807 = vdwg.mxu0
    %1808 = vmatpush.bf16.msra.mxu0 %v1322
    %1809 = vmatpush.bf16.msra.mxu0 %v1318
    %1810 = vmatpush.bf16.msra.mxu0 %v1314
    %1811 = vmatpush.bf16.msra.mxu0 %v1310
    %1812 = vmatpush.bf16.msra.mxu0 %v1306
    %1813 = vmatpush.bf16.msra.mxu0 %v1302
    %1814 = vmatpush.bf16.msra.mxu0 %v1298
    %1815 = vmatpush.bf16.msra.mxu0 %v1294
    %1816 = vmatmul.bf16.gmra.mxu0 %v420
    %v1817 = vpop.f32.mrf.mxu0
    %v1818 = vadd.f32 %v1805, %v1817
    %v1819 = vpop.f32.mrf.mxu0
    %1820 = vdwg.mxu0
    %1821 = vmatpush.bf16.msra.mxu0 %v1131
    %1822 = vmatpush.bf16.msra.mxu0 %v1127
    %1823 = vmatpush.bf16.msra.mxu0 %v1123
    %1824 = vmatpush.bf16.msra.mxu0 %v1119
    %1825 = vmatpush.bf16.msra.mxu0 %v1115
    %1826 = vmatpush.bf16.msra.mxu0 %v1111
    %1827 = vmatpush.bf16.msra.mxu0 %v1107
    %1828 = vmatpush.bf16.msra.mxu0 %v1103
    %1829 = vmatmul.bf16.gmra.mxu0 %v414
    %v1830 = vpop.f32.mrf.mxu0
    %v1831 = vadd.f32 %v398, %v1830
    %v1832 = vpop.f32.mrf.mxu0
    %1833 = vdwg.mxu0
    %1834 = vmatpush.bf16.msra.mxu0 %v1163
    %1835 = vmatpush.bf16.msra.mxu0 %v1159
    %1836 = vmatpush.bf16.msra.mxu0 %v1155
    %1837 = vmatpush.bf16.msra.mxu0 %v1151
    %1838 = vmatpush.bf16.msra.mxu0 %v1147
    %1839 = vmatpush.bf16.msra.mxu0 %v1143
    %1840 = vmatpush.bf16.msra.mxu0 %v1139
    %1841 = vmatpush.bf16.msra.mxu0 %v1135
    %1842 = vmatmul.bf16.gmra.mxu0 %v415
    %v1843 = vpop.f32.mrf.mxu0
    %v1844 = vadd.f32 %v1831, %v1843
    %v1845 = vpop.f32.mrf.mxu0
    %1846 = vdwg.mxu0
    %1847 = vmatpush.bf16.msra.mxu0 %v1195
    %1848 = vmatpush.bf16.msra.mxu0 %v1191
    %1849 = vmatpush.bf16.msra.mxu0 %v1187
    %1850 = vmatpush.bf16.msra.mxu0 %v1183
    %1851 = vmatpush.bf16.msra.mxu0 %v1179
    %1852 = vmatpush.bf16.msra.mxu0 %v1175
    %1853 = vmatpush.bf16.msra.mxu0 %v1171
    %1854 = vmatpush.bf16.msra.mxu0 %v1167
    %1855 = vmatmul.bf16.gmra.mxu0 %v416
    %v1856 = vpop.f32.mrf.mxu0
    %v1857 = vadd.f32 %v1844, %v1856
    %v1858 = vpop.f32.mrf.mxu0
    %1859 = vdwg.mxu0
    %1860 = vmatpush.bf16.msra.mxu0 %v1227
    %1861 = vmatpush.bf16.msra.mxu0 %v1223
    %1862 = vmatpush.bf16.msra.mxu0 %v1219
    %1863 = vmatpush.bf16.msra.mxu0 %v1215
    %1864 = vmatpush.bf16.msra.mxu0 %v1211
    %1865 = vmatpush.bf16.msra.mxu0 %v1207
    %1866 = vmatpush.bf16.msra.mxu0 %v1203
    %1867 = vmatpush.bf16.msra.mxu0 %v1199
    %1868 = vmatmul.bf16.gmra.mxu0 %v417
    %v1869 = vpop.f32.mrf.mxu0
    %v1870 = vadd.f32 %v1857, %v1869
    %v1871 = vpop.f32.mrf.mxu0
    %1872 = vdwg.mxu0
    %1873 = vmatpush.bf16.msra.mxu0 %v1259
    %1874 = vmatpush.bf16.msra.mxu0 %v1255
    %1875 = vmatpush.bf16.msra.mxu0 %v1251
    %1876 = vmatpush.bf16.msra.mxu0 %v1247
    %1877 = vmatpush.bf16.msra.mxu0 %v1243
    %1878 = vmatpush.bf16.msra.mxu0 %v1239
    %1879 = vmatpush.bf16.msra.mxu0 %v1235
    %1880 = vmatpush.bf16.msra.mxu0 %v1231
    %1881 = vmatmul.bf16.gmra.mxu0 %v418
    %v1882 = vpop.f32.mrf.mxu0
    %v1883 = vadd.f32 %v1870, %v1882
    %v1884 = vpop.f32.mrf.mxu0
    %1885 = vdwg.mxu0
    %1886 = vmatpush.bf16.msra.mxu0 %v1291
    %1887 = vmatpush.bf16.msra.mxu0 %v1287
    %1888 = vmatpush.bf16.msra.mxu0 %v1283
    %1889 = vmatpush.bf16.msra.mxu0 %v1279
    %1890 = vmatpush.bf16.msra.mxu0 %v1275
    %1891 = vmatpush.bf16.msra.mxu0 %v1271
    %1892 = vmatpush.bf16.msra.mxu0 %v1267
    %1893 = vmatpush.bf16.msra.mxu0 %v1263
    %1894 = vmatmul.bf16.gmra.mxu0 %v419
    %v1895 = vpop.f32.mrf.mxu0
    %v1896 = vadd.f32 %v1883, %v1895
    %v1897 = vpop.f32.mrf.mxu0
    %1898 = vdwg.mxu0
    %1899 = vmatpush.bf16.msra.mxu0 %v1323
    %1900 = vmatpush.bf16.msra.mxu0 %v1319
    %1901 = vmatpush.bf16.msra.mxu0 %v1315
    %1902 = vmatpush.bf16.msra.mxu0 %v1311
    %1903 = vmatpush.bf16.msra.mxu0 %v1307
    %1904 = vmatpush.bf16.msra.mxu0 %v1303
    %1905 = vmatpush.bf16.msra.mxu0 %v1299
    %1906 = vmatpush.bf16.msra.mxu0 %v1295
    %1907 = vmatmul.bf16.gmra.mxu0 %v420
    %v1908 = vpop.f32.mrf.mxu0
    %v1909 = vadd.f32 %v1896, %v1908
    %v1910 = vpop.f32.mrf.mxu0
    %1911 = vdwg.mxu0
    %v1912 = vmax.f32 %v1636, 0.0
    %v1913 = vmax.f32 %v1727, 0.0
    %v1914 = vmax.f32 %v1818, 0.0
    %v1915 = vmax.f32 %v1909, 0.0
    %v1916 = vpack.c.bf16 %v1912, %v1912
    %v1917 = vpack.c.bf16 %v1913, %v1913
    %v1918 = vpack.c.bf16 %v1914, %v1914
    %v1919 = vpack.c.bf16 %v1915, %v1915
    %v1920 = vld [vmem:[#allocation4] sm:$0xff]
    %v1921 = vld [vmem:[#allocation4 + $0x8] sm:$0xff]
    %v1922 = vld [vmem:[#allocation4 + $0x10] sm:$0xff]
    %v1923 = vld [vmem:[#allocation4 + $0x18] sm:$0xff]
    %v1924 = vld [vmem:[#allocation4 + $0x20] sm:$0xff]
    %v1925 = vld [vmem:[#allocation4 + $0x28] sm:$0xff]
    %v1926 = vld [vmem:[#allocation4 + $0x30] sm:$0xff]
    %v1927 = vld [vmem:[#allocation4 + $0x38] sm:$0xff]
    %v1928 = vld [vmem:[#allocation4 + $0x40] sm:$0xff]
    %v1929 = vld [vmem:[#allocation4 + $0x48] sm:$0xff]
    %v1930 = vld [vmem:[#allocation4 + $0x50] sm:$0xff]
    %v1931 = vld [vmem:[#allocation4 + $0x58] sm:$0xff]
    %v1932 = vld [vmem:[#allocation4 + $0x60] sm:$0xff]
    %v1933 = vld [vmem:[#allocation4 + $0x68] sm:$0xff]
    %v1934 = vld [vmem:[#allocation4 + $0x70] sm:$0xff]
    %v1935 = vld [vmem:[#allocation4 + $0x78] sm:$0xff]
    %v1936 = vld [vmem:[#allocation4 + $0x80] sm:$0xff]
    %v1937 = vld [vmem:[#allocation4 + $0x88] sm:$0xff]
    %v1938 = vld [vmem:[#allocation4 + $0x90] sm:$0xff]
    %v1939 = vld [vmem:[#allocation4 + $0x98] sm:$0xff]
    %v1940 = vld [vmem:[#allocation4 + $0xa0] sm:$0xff]
    %v1941 = vld [vmem:[#allocation4 + $0xa8] sm:$0xff]
    %v1942 = vld [vmem:[#allocation4 + $0xb0] sm:$0xff]
    %v1943 = vld [vmem:[#allocation4 + $0xb8] sm:$0xff]
    %v1944 = vld [vmem:[#allocation4 + $0xc0] sm:$0xff]
    %v1945 = vld [vmem:[#allocation4 + $0xc8] sm:$0xff]
    %v1946 = vld [vmem:[#allocation4 + $0xd0] sm:$0xff]
    %v1947 = vld [vmem:[#allocation4 + $0xd8] sm:$0xff]
    %v1948 = vld [vmem:[#allocation4 + $0xe0] sm:$0xff]
    %v1949 = vld [vmem:[#allocation4 + $0xe8] sm:$0xff]
    %v1950 = vld [vmem:[#allocation4 + $0xf0] sm:$0xff]
    %v1951 = vld [vmem:[#allocation4 + $0xf8] sm:$0xff]
    %v1952 = vld [vmem:[#allocation4 + $0x100] sm:$0xff]
    %v1953 = vld [vmem:[#allocation4 + $0x108] sm:$0xff]
    %v1954 = vld [vmem:[#allocation4 + $0x110] sm:$0xff]
    %v1955 = vld [vmem:[#allocation4 + $0x118] sm:$0xff]
    %v1956 = vld [vmem:[#allocation4 + $0x120] sm:$0xff]
    %v1957 = vld [vmem:[#allocation4 + $0x128] sm:$0xff]
    %v1958 = vld [vmem:[#allocation4 + $0x130] sm:$0xff]
    %v1959 = vld [vmem:[#allocation4 + $0x138] sm:$0xff]
    %v1960 = vld [vmem:[#allocation4 + $0x140] sm:$0xff]
    %v1961 = vld [vmem:[#allocation4 + $0x148] sm:$0xff]
    %v1962 = vld [vmem:[#allocation4 + $0x150] sm:$0xff]
    %v1963 = vld [vmem:[#allocation4 + $0x158] sm:$0xff]
    %v1964 = vld [vmem:[#allocation4 + $0x160] sm:$0xff]
    %v1965 = vld [vmem:[#allocation4 + $0x168] sm:$0xff]
    %v1966 = vld [vmem:[#allocation4 + $0x170] sm:$0xff]
    %v1967 = vld [vmem:[#allocation4 + $0x178] sm:$0xff]
    %v1968 = vld [vmem:[#allocation4 + $0x180] sm:$0xff]
    %v1969 = vld [vmem:[#allocation4 + $0x188] sm:$0xff]
    %v1970 = vld [vmem:[#allocation4 + $0x190] sm:$0xff]
    %v1971 = vld [vmem:[#allocation4 + $0x198] sm:$0xff]
    %v1972 = vld [vmem:[#allocation4 + $0x1a0] sm:$0xff]
    %v1973 = vld [vmem:[#allocation4 + $0x1a8] sm:$0xff]
    %v1974 = vld [vmem:[#allocation4 + $0x1b0] sm:$0xff]
    %v1975 = vld [vmem:[#allocation4 + $0x1b8] sm:$0xff]
    %v1976 = vld [vmem:[#allocation4 + $0x1c0] sm:$0xff]
    %v1977 = vld [vmem:[#allocation4 + $0x1c8] sm:$0xff]
    %v1978 = vld [vmem:[#allocation4 + $0x1d0] sm:$0xff]
    %v1979 = vld [vmem:[#allocation4 + $0x1d8] sm:$0xff]
    %v1980 = vld [vmem:[#allocation4 + $0x1e0] sm:$0xff]
    %v1981 = vld [vmem:[#allocation4 + $0x1e8] sm:$0xff]
    %v1982 = vld [vmem:[#allocation4 + $0x1f0] sm:$0xff]
    %v1983 = vld [vmem:[#allocation4 + $0x1f8] sm:$0xff]
    %v1984 = vld [vmem:[%s4] sm:$0x3]
    %v1986 = vperm.slane %v1984, 0
    %v1987 = vperm.slane %v1984, 1
    %v2054 = vunpack.c.l.b16 %v1920
    %v2055 = vunpack.c.h.b16 %v1920
    %v2056 = vunpack.c.l.b16 %v1921
    %v2057 = vunpack.c.h.b16 %v1921
    %v2058 = vunpack.c.l.b16 %v1922
    %v2059 = vunpack.c.h.b16 %v1922
    %v2060 = vunpack.c.l.b16 %v1923
    %v2061 = vunpack.c.h.b16 %v1923
    %v2062 = vunpack.c.l.b16 %v1924
    %v2063 = vunpack.c.h.b16 %v1924
    %v2064 = vunpack.c.l.b16 %v1925
    %v2065 = vunpack.c.h.b16 %v1925
    %v2066 = vunpack.c.l.b16 %v1926
    %v2067 = vunpack.c.h.b16 %v1926
    %v2068 = vunpack.c.l.b16 %v1927
    %v2069 = vunpack.c.h.b16 %v1927
    %v2070 = vunpack.c.l.b16 %v1928
    %v2071 = vunpack.c.h.b16 %v1928
    %v2072 = vunpack.c.l.b16 %v1929
    %v2073 = vunpack.c.h.b16 %v1929
    %v2074 = vunpack.c.l.b16 %v1930
    %v2075 = vunpack.c.h.b16 %v1930
    %v2076 = vunpack.c.l.b16 %v1931
    %v2077 = vunpack.c.h.b16 %v1931
    %v2078 = vunpack.c.l.b16 %v1932
    %v2079 = vunpack.c.h.b16 %v1932
    %v2080 = vunpack.c.l.b16 %v1933
    %v2081 = vunpack.c.h.b16 %v1933
    %v2082 = vunpack.c.l.b16 %v1934
    %v2083 = vunpack.c.h.b16 %v1934
    %v2084 = vunpack.c.l.b16 %v1935
    %v2085 = vunpack.c.h.b16 %v1935
    %v2086 = vunpack.c.l.b16 %v1936
    %v2087 = vunpack.c.h.b16 %v1936
    %v2088 = vunpack.c.l.b16 %v1937
    %v2089 = vunpack.c.h.b16 %v1937
    %v2090 = vunpack.c.l.b16 %v1938
    %v2091 = vunpack.c.h.b16 %v1938
    %v2092 = vunpack.c.l.b16 %v1939
    %v2093 = vunpack.c.h.b16 %v1939
    %v2094 = vunpack.c.l.b16 %v1940
    %v2095 = vunpack.c.h.b16 %v1940
    %v2096 = vunpack.c.l.b16 %v1941
    %v2097 = vunpack.c.h.b16 %v1941
    %v2098 = vunpack.c.l.b16 %v1942
    %v2099 = vunpack.c.h.b16 %v1942
    %v2100 = vunpack.c.l.b16 %v1943
    %v2101 = vunpack.c.h.b16 %v1943
    %v2102 = vunpack.c.l.b16 %v1944
    %v2103 = vunpack.c.h.b16 %v1944
    %v2104 = vunpack.c.l.b16 %v1945
    %v2105 = vunpack.c.h.b16 %v1945
    %v2106 = vunpack.c.l.b16 %v1946
    %v2107 = vunpack.c.h.b16 %v1946
    %v2108 = vunpack.c.l.b16 %v1947
    %v2109 = vunpack.c.h.b16 %v1947
    %v2110 = vunpack.c.l.b16 %v1948
    %v2111 = vunpack.c.h.b16 %v1948
    %v2112 = vunpack.c.l.b16 %v1949
    %v2113 = vunpack.c.h.b16 %v1949
    %v2114 = vunpack.c.l.b16 %v1950
    %v2115 = vunpack.c.h.b16 %v1950
    %v2116 = vunpack.c.l.b16 %v1951
    %v2117 = vunpack.c.h.b16 %v1951
    %v2118 = vunpack.c.l.b16 %v1952
    %v2119 = vunpack.c.h.b16 %v1952
    %v2120 = vunpack.c.l.b16 %v1953
    %v2121 = vunpack.c.h.b16 %v1953
    %v2122 = vunpack.c.l.b16 %v1954
    %v2123 = vunpack.c.h.b16 %v1954
    %v2124 = vunpack.c.l.b16 %v1955
    %v2125 = vunpack.c.h.b16 %v1955
    %v2126 = vunpack.c.l.b16 %v1956
    %v2127 = vunpack.c.h.b16 %v1956
    %v2128 = vunpack.c.l.b16 %v1957
    %v2129 = vunpack.c.h.b16 %v1957
    %v2130 = vunpack.c.l.b16 %v1958
    %v2131 = vunpack.c.h.b16 %v1958
    %v2132 = vunpack.c.l.b16 %v1959
    %v2133 = vunpack.c.h.b16 %v1959
    %v2134 = vunpack.c.l.b16 %v1960
    %v2135 = vunpack.c.h.b16 %v1960
    %v2136 = vunpack.c.l.b16 %v1961
    %v2137 = vunpack.c.h.b16 %v1961
    %v2138 = vunpack.c.l.b16 %v1962
    %v2139 = vunpack.c.h.b16 %v1962
    %v2140 = vunpack.c.l.b16 %v1963
    %v2141 = vunpack.c.h.b16 %v1963
    %v2142 = vunpack.c.l.b16 %v1964
    %v2143 = vunpack.c.h.b16 %v1964
    %v2144 = vunpack.c.l.b16 %v1965
    %v2145 = vunpack.c.h.b16 %v1965
    %v2146 = vunpack.c.l.b16 %v1966
    %v2147 = vunpack.c.h.b16 %v1966
    %v2148 = vunpack.c.l.b16 %v1967
    %v2149 = vunpack.c.h.b16 %v1967
    %v2150 = vunpack.c.l.b16 %v1968
    %v2151 = vunpack.c.h.b16 %v1968
    %v2152 = vunpack.c.l.b16 %v1969
    %v2153 = vunpack.c.h.b16 %v1969
    %v2154 = vunpack.c.l.b16 %v1970
    %v2155 = vunpack.c.h.b16 %v1970
    %v2156 = vunpack.c.l.b16 %v1971
    %v2157 = vunpack.c.h.b16 %v1971
    %v2158 = vunpack.c.l.b16 %v1972
    %v2159 = vunpack.c.h.b16 %v1972
    %v2160 = vunpack.c.l.b16 %v1973
    %v2161 = vunpack.c.h.b16 %v1973
    %v2162 = vunpack.c.l.b16 %v1974
    %v2163 = vunpack.c.h.b16 %v1974
    %v2164 = vunpack.c.l.b16 %v1975
    %v2165 = vunpack.c.h.b16 %v1975
    %v2166 = vunpack.c.l.b16 %v1976
    %v2167 = vunpack.c.h.b16 %v1976
    %v2168 = vunpack.c.l.b16 %v1977
    %v2169 = vunpack.c.h.b16 %v1977
    %v2170 = vunpack.c.l.b16 %v1978
    %v2171 = vunpack.c.h.b16 %v1978
    %v2172 = vunpack.c.l.b16 %v1979
    %v2173 = vunpack.c.h.b16 %v1979
    %v2174 = vunpack.c.l.b16 %v1980
    %v2175 = vunpack.c.h.b16 %v1980
    %v2176 = vunpack.c.l.b16 %v1981
    %v2177 = vunpack.c.h.b16 %v1981
    %v2178 = vunpack.c.l.b16 %v1982
    %v2179 = vunpack.c.h.b16 %v1982
    %v2180 = vunpack.c.l.b16 %v1983
    %v2181 = vunpack.c.h.b16 %v1983
    %v2182 = vpack.c.b16 %v2056, %v2054
    %v2183 = vpack.c.b16 %v2057, %v2055
    %v2184 = vpack.c.b16 %v2060, %v2058
    %v2185 = vpack.c.b16 %v2061, %v2059
    %v2186 = vpack.c.b16 %v2064, %v2062
    %v2187 = vpack.c.b16 %v2065, %v2063
    %v2188 = vpack.c.b16 %v2068, %v2066
    %v2189 = vpack.c.b16 %v2069, %v2067
    %v2190 = vpack.c.b16 %v2072, %v2070
    %v2191 = vpack.c.b16 %v2073, %v2071
    %v2192 = vpack.c.b16 %v2076, %v2074
    %v2193 = vpack.c.b16 %v2077, %v2075
    %v2194 = vpack.c.b16 %v2080, %v2078
    %v2195 = vpack.c.b16 %v2081, %v2079
    %v2196 = vpack.c.b16 %v2084, %v2082
    %v2197 = vpack.c.b16 %v2085, %v2083
    %v2198 = vpack.c.b16 %v2088, %v2086
    %v2199 = vpack.c.b16 %v2089, %v2087
    %v2200 = vpack.c.b16 %v2092, %v2090
    %v2201 = vpack.c.b16 %v2093, %v2091
    %v2202 = vpack.c.b16 %v2096, %v2094
    %v2203 = vpack.c.b16 %v2097, %v2095
    %v2204 = vpack.c.b16 %v2100, %v2098
    %v2205 = vpack.c.b16 %v2101, %v2099
    %v2206 = vpack.c.b16 %v2104, %v2102
    %v2207 = vpack.c.b16 %v2105, %v2103
    %v2208 = vpack.c.b16 %v2108, %v2106
    %v2209 = vpack.c.b16 %v2109, %v2107
    %v2210 = vpack.c.b16 %v2112, %v2110
    %v2211 = vpack.c.b16 %v2113, %v2111
    %v2212 = vpack.c.b16 %v2116, %v2114
    %v2213 = vpack.c.b16 %v2117, %v2115
    %v2214 = vpack.c.b16 %v2120, %v2118
    %v2215 = vpack.c.b16 %v2121, %v2119
    %v2216 = vpack.c.b16 %v2124, %v2122
    %v2217 = vpack.c.b16 %v2125, %v2123
    %v2218 = vpack.c.b16 %v2128, %v2126
    %v2219 = vpack.c.b16 %v2129, %v2127
    %v2220 = vpack.c.b16 %v2132, %v2130
    %v2221 = vpack.c.b16 %v2133, %v2131
    %v2222 = vpack.c.b16 %v2136, %v2134
    %v2223 = vpack.c.b16 %v2137, %v2135
    %v2224 = vpack.c.b16 %v2140, %v2138
    %v2225 = vpack.c.b16 %v2141, %v2139
    %v2226 = vpack.c.b16 %v2144, %v2142
    %v2227 = vpack.c.b16 %v2145, %v2143
    %v2228 = vpack.c.b16 %v2148, %v2146
    %v2229 = vpack.c.b16 %v2149, %v2147
    %v2230 = vpack.c.b16 %v2152, %v2150
    %v2231 = vpack.c.b16 %v2153, %v2151
    %v2232 = vpack.c.b16 %v2156, %v2154
    %v2233 = vpack.c.b16 %v2157, %v2155
    %v2234 = vpack.c.b16 %v2160, %v2158
    %v2235 = vpack.c.b16 %v2161, %v2159
    %v2236 = vpack.c.b16 %v2164, %v2162
    %v2237 = vpack.c.b16 %v2165, %v2163
    %v2238 = vpack.c.b16 %v2168, %v2166
    %v2239 = vpack.c.b16 %v2169, %v2167
    %v2240 = vpack.c.b16 %v2172, %v2170
    %v2241 = vpack.c.b16 %v2173, %v2171
    %v2242 = vpack.c.b16 %v2176, %v2174
    %v2243 = vpack.c.b16 %v2177, %v2175
    %v2244 = vpack.c.b16 %v2180, %v2178
    %v2245 = vpack.c.b16 %v2181, %v2179
    %2310 = vmatpush.bf16.msra.mxu0 %v2196
    %2311 = vmatpush.bf16.msra.mxu0 %v2194
    %2312 = vmatpush.bf16.msra.mxu0 %v2192
    %2313 = vmatpush.bf16.msra.mxu0 %v2190
    %2314 = vmatpush.bf16.msra.mxu0 %v2188
    %2315 = vmatpush.bf16.msra.mxu0 %v2186
    %2316 = vmatpush.bf16.msra.mxu0 %v2184
    %2317 = vmatpush.bf16.msra.mxu0 %v2182
    %2318 = vmatmul.bf16.gmra.mxu0 %v1916
    %v2319 = vpop.f32.mrf.mxu0
    %v2320 = vadd.f32 %v1986, %v2319
    %v2321 = vpop.f32.mrf.mxu0
    %2322 = vdwg.mxu0
    %2323 = vmatpush.bf16.msra.mxu0 %v2212
    %2324 = vmatpush.bf16.msra.mxu0 %v2210
    %2325 = vmatpush.bf16.msra.mxu0 %v2208
    %2326 = vmatpush.bf16.msra.mxu0 %v2206
    %2327 = vmatpush.bf16.msra.mxu0 %v2204
    %2328 = vmatpush.bf16.msra.mxu0 %v2202
    %2329 = vmatpush.bf16.msra.mxu0 %v2200
    %2330 = vmatpush.bf16.msra.mxu0 %v2198
    %2331 = vmatmul.bf16.gmra.mxu0 %v1917
    %v2332 = vpop.f32.mrf.mxu0
    %v2333 = vadd.f32 %v2320, %v2332
    %v2334 = vpop.f32.mrf.mxu0
    %2335 = vdwg.mxu0
    %2336 = vmatpush.bf16.msra.mxu0 %v2228
    %2337 = vmatpush.bf16.msra.mxu0 %v2226
    %2338 = vmatpush.bf16.msra.mxu0 %v2224
    %2339 = vmatpush.bf16.msra.mxu0 %v2222
    %2340 = vmatpush.bf16.msra.mxu0 %v2220
    %2341 = vmatpush.bf16.msra.mxu0 %v2218
    %2342 = vmatpush.bf16.msra.mxu0 %v2216
    %2343 = vmatpush.bf16.msra.mxu0 %v2214
    %2344 = vmatmul.bf16.gmra.mxu0 %v1918
    %v2345 = vpop.f32.mrf.mxu0
    %v2346 = vadd.f32 %v2333, %v2345
    %v2347 = vpop.f32.mrf.mxu0
    %2348 = vdwg.mxu0
    %2349 = vmatpush.bf16.msra.mxu0 %v2244
    %2350 = vmatpush.bf16.msra.mxu0 %v2242
    %2351 = vmatpush.bf16.msra.mxu0 %v2240
    %2352 = vmatpush.bf16.msra.mxu0 %v2238
    %2353 = vmatpush.bf16.msra.mxu0 %v2236
    %2354 = vmatpush.bf16.msra.mxu0 %v2234
    %2355 = vmatpush.bf16.msra.mxu0 %v2232
    %2356 = vmatpush.bf16.msra.mxu0 %v2230
    %2357 = vmatmul.bf16.gmra.mxu0 %v1919
    %v2358 = vpop.f32.mrf.mxu0
    %v2359 = vadd.f32 %v2346, %v2358
    %v2360 = vpop.f32.mrf.mxu0
    %2361 = vdwg.mxu0
    %2362 = vmatpush.bf16.msra.mxu0 %v2197
    %2363 = vmatpush.bf16.msra.mxu0 %v2195
    %2364 = vmatpush.bf16.msra.mxu0 %v2193
    %2365 = vmatpush.bf16.msra.mxu0 %v2191
    %2366 = vmatpush.bf16.msra.mxu0 %v2189
    %2367 = vmatpush.bf16.msra.mxu0 %v2187
    %2368 = vmatpush.bf16.msra.mxu0 %v2185
    %2369 = vmatpush.bf16.msra.mxu0 %v2183
    %2370 = vmatmul.bf16.gmra.mxu0 %v1916
    %v2371 = vpop.f32.mrf.mxu0
    %v2372 = vadd.f32 %v1987, %v2371
    %v2373 = vpop.f32.mrf.mxu0
    %2374 = vdwg.mxu0
    %2375 = vmatpush.bf16.msra.mxu0 %v2213
    %2376 = vmatpush.bf16.msra.mxu0 %v2211
    %2377 = vmatpush.bf16.msra.mxu0 %v2209
    %2378 = vmatpush.bf16.msra.mxu0 %v2207
    %2379 = vmatpush.bf16.msra.mxu0 %v2205
    %2380 = vmatpush.bf16.msra.mxu0 %v2203
    %2381 = vmatpush.bf16.msra.mxu0 %v2201
    %2382 = vmatpush.bf16.msra.mxu0 %v2199
    %2383 = vmatmul.bf16.gmra.mxu0 %v1917
    %v2384 = vpop.f32.mrf.mxu0
    %v2385 = vadd.f32 %v2372, %v2384
    %v2386 = vpop.f32.mrf.mxu0
    %2387 = vdwg.mxu0
    %2388 = vmatpush.bf16.msra.mxu0 %v2229
    %2389 = vmatpush.bf16.msra.mxu0 %v2227
    %2390 = vmatpush.bf16.msra.mxu0 %v2225
    %2391 = vmatpush.bf16.msra.mxu0 %v2223
    %2392 = vmatpush.bf16.msra.mxu0 %v2221
    %2393 = vmatpush.bf16.msra.mxu0 %v2219
    %2394 = vmatpush.bf16.msra.mxu0 %v2217
    %2395 = vmatpush.bf16.msra.mxu0 %v2215
    %2396 = vmatmul.bf16.gmra.mxu0 %v1918
    %v2397 = vpop.f32.mrf.mxu0
    %v2398 = vadd.f32 %v2385, %v2397
    %v2399 = vpop.f32.mrf.mxu0
    %2400 = vdwg.mxu0
    %2401 = vmatpush.bf16.msra.mxu0 %v2245
    %2402 = vmatpush.bf16.msra.mxu0 %v2243
    %2403 = vmatpush.bf16.msra.mxu0 %v2241
    %2404 = vmatpush.bf16.msra.mxu0 %v2239
    %2405 = vmatpush.bf16.msra.mxu0 %v2237
    %2406 = vmatpush.bf16.msra.mxu0 %v2235
    %2407 = vmatpush.bf16.msra.mxu0 %v2233
    %2408 = vmatpush.bf16.msra.mxu0 %v2231
    %2409 = vmatmul.bf16.gmra.mxu0 %v1919
    %v2410 = vpop.f32.mrf.mxu0
    %v2411 = vadd.f32 %v2398, %v2410
    %v2412 = vpop.f32.mrf.mxu0
    %2413 = vdwg.mxu0
    %v2414 = vmax.f32 %v2359, 0.0
    %v2415 = vmax.f32 %v2411, 0.0
    %v2416 = vpack.c.bf16 %v2414, %v2414
    %v2417 = vpack.c.bf16 %v2415, %v2415
    %v2418 = vld [vmem:[%s5] sm:$0xf]
    %v2419 = vld [vmem:[%s5 + $0x4] sm:$0xf]
    %v2420 = vld [vmem:[%s5 + $0x8] sm:$0xf]
    %v2421 = vld [vmem:[%s5 + $0xc] sm:$0xf]
    %v2422 = vld [vmem:[%s5 + $0x10] sm:$0xf]
    %v2423 = vld [vmem:[%s5 + $0x14] sm:$0xf]
    %v2424 = vld [vmem:[%s5 + $0x18] sm:$0xf]
    %v2425 = vld [vmem:[%s5 + $0x1c] sm:$0xf]
    %v2426 = vld [vmem:[%s5 + $0x20] sm:$0xf]
    %v2427 = vld [vmem:[%s5 + $0x24] sm:$0xf]
    %v2428 = vld [vmem:[%s5 + $0x28] sm:$0xf]
    %v2429 = vld [vmem:[%s5 + $0x2c] sm:$0xf]
    %v2430 = vld [vmem:[%s5 + $0x30] sm:$0xf]
    %v2431 = vld [vmem:[%s5 + $0x34] sm:$0xf]
    %v2432 = vld [vmem:[%s5 + $0x38] sm:$0xf]
    %v2433 = vld [vmem:[%s5 + $0x3c] sm:$0xf]
    %v2434 = vld [vmem:[%s5 + $0x40] sm:$0xf]
    %v2435 = vld [vmem:[%s5 + $0x44] sm:$0xf]
    %v2436 = vld [vmem:[%s5 + $0x48] sm:$0xf]
    %v2437 = vld [vmem:[%s5 + $0x4c] sm:$0xf]
    %v2438 = vld [vmem:[%s5 + $0x50] sm:$0xf]
    %v2439 = vld [vmem:[%s5 + $0x54] sm:$0xf]
    %v2440 = vld [vmem:[%s5 + $0x58] sm:$0xf]
    %v2441 = vld [vmem:[%s5 + $0x5c] sm:$0xf]
    %v2442 = vld [vmem:[%s5 + $0x60] sm:$0xf]
    %v2443 = vld [vmem:[%s5 + $0x64] sm:$0xf]
    %v2444 = vld [vmem:[%s5 + $0x68] sm:$0xf]
    %v2445 = vld [vmem:[%s5 + $0x6c] sm:$0xf]
    %v2446 = vld [vmem:[%s5 + $0x70] sm:$0xf]
    %v2447 = vld [vmem:[%s5 + $0x74] sm:$0xf]
    %v2448 = vld [vmem:[%s5 + $0x78] sm:$0xf]
    %v2449 = vld [vmem:[%s5 + $0x7c] sm:$0xf]
    %v2450 = vld [vmem:[%s6] sm:$0x1]
    %v2452 = vperm.slane %v2450, 0
    %v2486 = vunpack.c.l.b16 %v2418
    %v2487 = vunpack.c.l.b16 %v2419
    %v2488 = vunpack.c.l.b16 %v2420
    %v2489 = vunpack.c.l.b16 %v2421
    %v2490 = vunpack.c.l.b16 %v2422
    %v2491 = vunpack.c.l.b16 %v2423
    %v2492 = vunpack.c.l.b16 %v2424
    %v2493 = vunpack.c.l.b16 %v2425
    %v2494 = vunpack.c.l.b16 %v2426
    %v2495 = vunpack.c.l.b16 %v2427
    %v2496 = vunpack.c.l.b16 %v2428
    %v2497 = vunpack.c.l.b16 %v2429
    %v2498 = vunpack.c.l.b16 %v2430
    %v2499 = vunpack.c.l.b16 %v2431
    %v2500 = vunpack.c.l.b16 %v2432
    %v2501 = vunpack.c.l.b16 %v2433
    %v2502 = vunpack.c.l.b16 %v2434
    %v2503 = vunpack.c.l.b16 %v2435
    %v2504 = vunpack.c.l.b16 %v2436
    %v2505 = vunpack.c.l.b16 %v2437
    %v2506 = vunpack.c.l.b16 %v2438
    %v2507 = vunpack.c.l.b16 %v2439
    %v2508 = vunpack.c.l.b16 %v2440
    %v2509 = vunpack.c.l.b16 %v2441
    %v2510 = vunpack.c.l.b16 %v2442
    %v2511 = vunpack.c.l.b16 %v2443
    %v2512 = vunpack.c.l.b16 %v2444
    %v2513 = vunpack.c.l.b16 %v2445
    %v2514 = vunpack.c.l.b16 %v2446
    %v2515 = vunpack.c.l.b16 %v2447
    %v2516 = vunpack.c.l.b16 %v2448
    %v2517 = vunpack.c.l.b16 %v2449
    %v2518 = vpack.c.b16 %v2487, %v2486
    %v2519 = vpack.c.b16 %v2489, %v2488
    %v2520 = vpack.c.b16 %v2491, %v2490
    %v2521 = vpack.c.b16 %v2493, %v2492
    %v2522 = vpack.c.b16 %v2495, %v2494
    %v2523 = vpack.c.b16 %v2497, %v2496
    %v2524 = vpack.c.b16 %v2499, %v2498
    %v2525 = vpack.c.b16 %v2501, %v2500
    %v2526 = vpack.c.b16 %v2503, %v2502
    %v2527 = vpack.c.b16 %v2505, %v2504
    %v2528 = vpack.c.b16 %v2507, %v2506
    %v2529 = vpack.c.b16 %v2509, %v2508
    %v2530 = vpack.c.b16 %v2511, %v2510
    %v2531 = vpack.c.b16 %v2513, %v2512
    %v2532 = vpack.c.b16 %v2515, %v2514
    %v2533 = vpack.c.b16 %v2517, %v2516
    %2550 = vmatpush.bf16.msra.mxu0 %v2525
    %2551 = vmatpush.bf16.msra.mxu0 %v2524
    %2552 = vmatpush.bf16.msra.mxu0 %v2523
    %2553 = vmatpush.bf16.msra.mxu0 %v2522
    %2554 = vmatpush.bf16.msra.mxu0 %v2521
    %2555 = vmatpush.bf16.msra.mxu0 %v2520
    %2556 = vmatpush.bf16.msra.mxu0 %v2519
    %2557 = vmatpush.bf16.msra.mxu0 %v2518
    %2558 = vmatmul.bf16.gmra.mxu0 %v2416
    %v2559 = vpop.f32.mrf.mxu0
    %v2560 = vadd.f32 %v2452, %v2559
    %v2561 = vpop.f32.mrf.mxu0
    %2562 = vdwg.mxu0
    %2563 = vmatpush.bf16.msra.mxu0 %v2533
    %2564 = vmatpush.bf16.msra.mxu0 %v2532
    %2565 = vmatpush.bf16.msra.mxu0 %v2531
    %2566 = vmatpush.bf16.msra.mxu0 %v2530
    %2567 = vmatpush.bf16.msra.mxu0 %v2529
    %2568 = vmatpush.bf16.msra.mxu0 %v2528
    %2569 = vmatpush.bf16.msra.mxu0 %v2527
    %2570 = vmatpush.bf16.msra.mxu0 %v2526
    %2571 = vmatmul.bf16.gmra.mxu0 %v2417
    %v2572 = vpop.f32.mrf.mxu0
    %v2573 = vadd.f32 %v2560, %v2572
    %v2574 = vpop.f32.mrf.mxu0
    %2575 = vdwg.mxu0
    %v2576 = vmax.f32 %v2573, 0.0
    %v2577 = vpack.c.bf16 %v2576, %v2576
    %v2578 = vld [vmem:[#allocation6] sm:$0xf]
    %v2579 = vld [vmem:[#allocation6 + $0x4] sm:$0xf]
    %v2580 = vld [vmem:[#allocation6 + $0x8] sm:$0xf]
    %v2581 = vld [vmem:[#allocation6 + $0xc] sm:$0xf]
    %v2582 = vld [vmem:[#allocation6 + $0x10] sm:$0xf]
    %v2583 = vld [vmem:[#allocation6 + $0x14] sm:$0xf]
    %v2584 = vld [vmem:[#allocation6 + $0x18] sm:$0xf]
    %v2585 = vld [vmem:[#allocation6 + $0x1c] sm:$0xf]
    %v2586 = vld [vmem:[#allocation6 + $0x20] sm:$0xf]
    %v2587 = vld [vmem:[#allocation6 + $0x24] sm:$0xf]
    %v2588 = vld [vmem:[#allocation6 + $0x28] sm:$0xf]
    %v2589 = vld [vmem:[#allocation6 + $0x2c] sm:$0xf]
    %v2590 = vld [vmem:[#allocation6 + $0x30] sm:$0xf]
    %v2591 = vld [vmem:[#allocation6 + $0x34] sm:$0xf]
    %v2592 = vld [vmem:[#allocation6 + $0x38] sm:$0xf]
    %v2593 = vld [vmem:[#allocation6 + $0x3c] sm:$0xf]
    %v2594 = vld [vmem:[%s8] sm:$0x1]
    %v2596 = vperm.slane %v2594, 0
    %v2614 = vunpack.c.l.b16 %v2578
    %v2615 = vunpack.c.l.b16 %v2579
    %v2616 = vunpack.c.l.b16 %v2580
    %v2617 = vunpack.c.l.b16 %v2581
    %v2618 = vunpack.c.l.b16 %v2582
    %v2619 = vunpack.c.l.b16 %v2583
    %v2620 = vunpack.c.l.b16 %v2584
    %v2621 = vunpack.c.l.b16 %v2585
    %v2622 = vunpack.c.l.b16 %v2586
    %v2623 = vunpack.c.l.b16 %v2587
    %v2624 = vunpack.c.l.b16 %v2588
    %v2625 = vunpack.c.l.b16 %v2589
    %v2626 = vunpack.c.l.b16 %v2590
    %v2627 = vunpack.c.l.b16 %v2591
    %v2628 = vunpack.c.l.b16 %v2592
    %v2629 = vunpack.c.l.b16 %v2593
    %v2630 = vpack.c.b16 %v2615, %v2614
    %v2631 = vpack.c.b16 %v2617, %v2616
    %v2632 = vpack.c.b16 %v2619, %v2618
    %v2633 = vpack.c.b16 %v2621, %v2620
    %v2634 = vpack.c.b16 %v2623, %v2622
    %v2635 = vpack.c.b16 %v2625, %v2624
    %v2636 = vpack.c.b16 %v2627, %v2626
    %v2637 = vpack.c.b16 %v2629, %v2628
    %2646 = vmatpush.bf16.msra.mxu0 %v2637
    %2647 = vmatpush.bf16.msra.mxu0 %v2636
    %2648 = vmatpush.bf16.msra.mxu0 %v2635
    %2649 = vmatpush.bf16.msra.mxu0 %v2634
    %2650 = vmatpush.bf16.msra.mxu0 %v2633
    %2651 = vmatpush.bf16.msra.mxu0 %v2632
    %2652 = vmatpush.bf16.msra.mxu0 %v2631
    %2653 = vmatpush.bf16.msra.mxu0 %v2630
    %2654 = vmatmul.bf16.gmra.mxu0 %v2577
    %v2655 = vpop.f32.mrf.mxu0
    %v2656 = vadd.f32 %v2596, %v2655
    %v2657 = vpop.f32.mrf.mxu0
    %2658 = vdwg.mxu0
    %v2659 = vpack.c.bf16 %v2656, %v2656
    %v2660 = vld [vmem:[#allocation7] sm:$0xf]
    %v2661 = vld [vmem:[#allocation7 + $0x4] sm:$0xf]
    %v2662 = vld [vmem:[#allocation7 + $0x8] sm:$0xf]
    %v2663 = vld [vmem:[#allocation7 + $0xc] sm:$0xf]
    %v2664 = vld [vmem:[#allocation7 + $0x10] sm:$0xf]
    %v2665 = vld [vmem:[#allocation7 + $0x14] sm:$0xf]
    %v2666 = vld [vmem:[#allocation7 + $0x18] sm:$0xf]
    %v2667 = vld [vmem:[#allocation7 + $0x1c] sm:$0xf]
    %v2668 = vld [vmem:[#allocation7 + $0x20] sm:$0xf]
    %v2669 = vld [vmem:[#allocation7 + $0x24] sm:$0xf]
    %v2670 = vld [vmem:[#allocation7 + $0x28] sm:$0xf]
    %v2671 = vld [vmem:[#allocation7 + $0x2c] sm:$0xf]
    %v2672 = vld [vmem:[#allocation7 + $0x30] sm:$0xf]
    %v2673 = vld [vmem:[#allocation7 + $0x34] sm:$0xf]
    %v2674 = vld [vmem:[#allocation7 + $0x38] sm:$0xf]
    %v2675 = vld [vmem:[#allocation7 + $0x3c] sm:$0xf]
    %v2676 = vld [vmem:[%s10] sm:$0x1]
    %v2678 = vperm.slane %v2676, 0
    %v2696 = vunpack.c.l.b16 %v2660
    %v2697 = vunpack.c.l.b16 %v2661
    %v2698 = vunpack.c.l.b16 %v2662
    %v2699 = vunpack.c.l.b16 %v2663
    %v2700 = vunpack.c.l.b16 %v2664
    %v2701 = vunpack.c.l.b16 %v2665
    %v2702 = vunpack.c.l.b16 %v2666
    %v2703 = vunpack.c.l.b16 %v2667
    %v2704 = vunpack.c.l.b16 %v2668
    %v2705 = vunpack.c.l.b16 %v2669
    %v2706 = vunpack.c.l.b16 %v2670
    %v2707 = vunpack.c.l.b16 %v2671
    %v2708 = vunpack.c.l.b16 %v2672
    %v2709 = vunpack.c.l.b16 %v2673
    %v2710 = vunpack.c.l.b16 %v2674
    %v2711 = vunpack.c.l.b16 %v2675
    %v2712 = vpack.c.b16 %v2697, %v2696
    %v2713 = vpack.c.b16 %v2699, %v2698
    %v2714 = vpack.c.b16 %v2701, %v2700
    %v2715 = vpack.c.b16 %v2703, %v2702
    %v2716 = vpack.c.b16 %v2705, %v2704
    %v2717 = vpack.c.b16 %v2707, %v2706
    %v2718 = vpack.c.b16 %v2709, %v2708
    %v2719 = vpack.c.b16 %v2711, %v2710
    %2728 = vmatpush.bf16.msra.mxu0 %v2719
    %2729 = vmatpush.bf16.msra.mxu0 %v2718
    %2730 = vmatpush.bf16.msra.mxu0 %v2717
    %2731 = vmatpush.bf16.msra.mxu0 %v2716
    %2732 = vmatpush.bf16.msra.mxu0 %v2715
    %2733 = vmatpush.bf16.msra.mxu0 %v2714
    %2734 = vmatpush.bf16.msra.mxu0 %v2713
    %2735 = vmatpush.bf16.msra.mxu0 %v2712
    %2736 = vmatmul.bf16.gmra.mxu0 %v2659
    %v2737 = vpop.f32.mrf.mxu0
    %v2738 = vadd.f32 %v2678, %v2737
    %v2739 = vpop.f32.mrf.mxu0
    %2740 = vdwg.mxu0
    %v2741 = vmax.f32 %v2738, 0.0
    %v2742 = vpack.c.bf16 %v2741, %v2741
    %v2743 = vld [vmem:[#allocation9] sm:$0xff]
    %v2744 = vld [vmem:[#allocation9 + $0x8] sm:$0xff]
    %v2745 = vld [vmem:[#allocation9 + $0x10] sm:$0xff]
    %v2746 = vld [vmem:[#allocation9 + $0x18] sm:$0xff]
    %v2747 = vld [vmem:[#allocation9 + $0x20] sm:$0xff]
    %v2748 = vld [vmem:[#allocation9 + $0x28] sm:$0xff]
    %v2749 = vld [vmem:[#allocation9 + $0x30] sm:$0xff]
    %v2750 = vld [vmem:[#allocation9 + $0x38] sm:$0xff]
    %v2751 = vld [vmem:[#allocation9 + $0x40] sm:$0xff]
    %v2752 = vld [vmem:[#allocation9 + $0x48] sm:$0xff]
    %v2753 = vld [vmem:[#allocation9 + $0x50] sm:$0xff]
    %v2754 = vld [vmem:[#allocation9 + $0x58] sm:$0xff]
    %v2755 = vld [vmem:[#allocation9 + $0x60] sm:$0xff]
    %v2756 = vld [vmem:[#allocation9 + $0x68] sm:$0xff]
    %v2757 = vld [vmem:[#allocation9 + $0x70] sm:$0xff]
    %v2758 = vld [vmem:[#allocation9 + $0x78] sm:$0xff]
    %v2759 = vld [vmem:[%s12] sm:$0x3]
    %v2761 = vperm.slane %v2759, 0
    %v2762 = vperm.slane %v2759, 1
    %v2781 = vunpack.c.l.b16 %v2743
    %v2782 = vunpack.c.h.b16 %v2743
    %v2783 = vunpack.c.l.b16 %v2744
    %v2784 = vunpack.c.h.b16 %v2744
    %v2785 = vunpack.c.l.b16 %v2745
    %v2786 = vunpack.c.h.b16 %v2745
    %v2787 = vunpack.c.l.b16 %v2746
    %v2788 = vunpack.c.h.b16 %v2746
    %v2789 = vunpack.c.l.b16 %v2747
    %v2790 = vunpack.c.h.b16 %v2747
    %v2791 = vunpack.c.l.b16 %v2748
    %v2792 = vunpack.c.h.b16 %v2748
    %v2793 = vunpack.c.l.b16 %v2749
    %v2794 = vunpack.c.h.b16 %v2749
    %v2795 = vunpack.c.l.b16 %v2750
    %v2796 = vunpack.c.h.b16 %v2750
    %v2797 = vunpack.c.l.b16 %v2751
    %v2798 = vunpack.c.h.b16 %v2751
    %v2799 = vunpack.c.l.b16 %v2752
    %v2800 = vunpack.c.h.b16 %v2752
    %v2801 = vunpack.c.l.b16 %v2753
    %v2802 = vunpack.c.h.b16 %v2753
    %v2803 = vunpack.c.l.b16 %v2754
    %v2804 = vunpack.c.h.b16 %v2754
    %v2805 = vunpack.c.l.b16 %v2755
    %v2806 = vunpack.c.h.b16 %v2755
    %v2807 = vunpack.c.l.b16 %v2756
    %v2808 = vunpack.c.h.b16 %v2756
    %v2809 = vunpack.c.l.b16 %v2757
    %v2810 = vunpack.c.h.b16 %v2757
    %v2811 = vunpack.c.l.b16 %v2758
    %v2812 = vunpack.c.h.b16 %v2758
    %v2813 = vpack.c.b16 %v2783, %v2781
    %v2814 = vpack.c.b16 %v2784, %v2782
    %v2815 = vpack.c.b16 %v2787, %v2785
    %v2816 = vpack.c.b16 %v2788, %v2786
    %v2817 = vpack.c.b16 %v2791, %v2789
    %v2818 = vpack.c.b16 %v2792, %v2790
    %v2819 = vpack.c.b16 %v2795, %v2793
    %v2820 = vpack.c.b16 %v2796, %v2794
    %v2821 = vpack.c.b16 %v2799, %v2797
    %v2822 = vpack.c.b16 %v2800, %v2798
    %v2823 = vpack.c.b16 %v2803, %v2801
    %v2824 = vpack.c.b16 %v2804, %v2802
    %v2825 = vpack.c.b16 %v2807, %v2805
    %v2826 = vpack.c.b16 %v2808, %v2806
    %v2827 = vpack.c.b16 %v2811, %v2809
    %v2828 = vpack.c.b16 %v2812, %v2810
    %2845 = vmatpush.bf16.msra.mxu0 %v2827
    %2846 = vmatpush.bf16.msra.mxu0 %v2825
    %2847 = vmatpush.bf16.msra.mxu0 %v2823
    %2848 = vmatpush.bf16.msra.mxu0 %v2821
    %2849 = vmatpush.bf16.msra.mxu0 %v2819
    %2850 = vmatpush.bf16.msra.mxu0 %v2817
    %2851 = vmatpush.bf16.msra.mxu0 %v2815
    %2852 = vmatpush.bf16.msra.mxu0 %v2813
    %2853 = vmatmul.bf16.gmra.mxu0 %v2742
    %v2854 = vpop.f32.mrf.mxu0
    %v2855 = vadd.f32 %v2761, %v2854
    %v2856 = vpop.f32.mrf.mxu0
    %2857 = vdwg.mxu0
    %2858 = vmatpush.bf16.msra.mxu0 %v2828
    %2859 = vmatpush.bf16.msra.mxu0 %v2826
    %2860 = vmatpush.bf16.msra.mxu0 %v2824
    %2861 = vmatpush.bf16.msra.mxu0 %v2822
    %2862 = vmatpush.bf16.msra.mxu0 %v2820
    %2863 = vmatpush.bf16.msra.mxu0 %v2818
    %2864 = vmatpush.bf16.msra.mxu0 %v2816
    %2865 = vmatpush.bf16.msra.mxu0 %v2814
    %2866 = vmatmul.bf16.gmra.mxu0 %v2742
    %v2867 = vpop.f32.mrf.mxu0
    %v2868 = vadd.f32 %v2762, %v2867
    %v2869 = vpop.f32.mrf.mxu0
    %2870 = vdwg.mxu0
    %v2871 = vmax.f32 %v2855, 0.0
    %v2872 = vmax.f32 %v2868, 0.0
    %v2873 = vpack.c.bf16 %v2871, %v2871
    %v2874 = vpack.c.bf16 %v2872, %v2872
    %v2875 = vld [vmem:[#allocation10] sm:$0xff]
    %v2876 = vld [vmem:[#allocation10 + $0x8] sm:$0xff]
    %v2877 = vld [vmem:[#allocation10 + $0x10] sm:$0xff]
    %v2878 = vld [vmem:[#allocation10 + $0x18] sm:$0xff]
    %v2879 = vld [vmem:[#allocation10 + $0x20] sm:$0xff]
    %v2880 = vld [vmem:[#allocation10 + $0x28] sm:$0xff]
    %v2881 = vld [vmem:[#allocation10 + $0x30] sm:$0xff]
    %v2882 = vld [vmem:[#allocation10 + $0x38] sm:$0xff]
    %v2883 = vld [vmem:[#allocation10 + $0x40] sm:$0xff]
    %v2884 = vld [vmem:[#allocation10 + $0x48] sm:$0xff]
    %v2885 = vld [vmem:[#allocation10 + $0x50] sm:$0xff]
    %v2886 = vld [vmem:[#allocation10 + $0x58] sm:$0xff]
    %v2887 = vld [vmem:[#allocation10 + $0x60] sm:$0xff]
    %v2888 = vld [vmem:[#allocation10 + $0x68] sm:$0xff]
    %v2889 = vld [vmem:[#allocation10 + $0x70] sm:$0xff]
    %v2890 = vld [vmem:[#allocation10 + $0x78] sm:$0xff]
    %v2891 = vld [vmem:[#allocation10 + $0x80] sm:$0xff]
    %v2892 = vld [vmem:[#allocation10 + $0x88] sm:$0xff]
    %v2893 = vld [vmem:[#allocation10 + $0x90] sm:$0xff]
    %v2894 = vld [vmem:[#allocation10 + $0x98] sm:$0xff]
    %v2895 = vld [vmem:[#allocation10 + $0xa0] sm:$0xff]
    %v2896 = vld [vmem:[#allocation10 + $0xa8] sm:$0xff]
    %v2897 = vld [vmem:[#allocation10 + $0xb0] sm:$0xff]
    %v2898 = vld [vmem:[#allocation10 + $0xb8] sm:$0xff]
    %v2899 = vld [vmem:[#allocation10 + $0xc0] sm:$0xff]
    %v2900 = vld [vmem:[#allocation10 + $0xc8] sm:$0xff]
    %v2901 = vld [vmem:[#allocation10 + $0xd0] sm:$0xff]
    %v2902 = vld [vmem:[#allocation10 + $0xd8] sm:$0xff]
    %v2903 = vld [vmem:[#allocation10 + $0xe0] sm:$0xff]
    %v2904 = vld [vmem:[#allocation10 + $0xe8] sm:$0xff]
    %v2905 = vld [vmem:[#allocation10 + $0xf0] sm:$0xff]
    %v2906 = vld [vmem:[#allocation10 + $0xf8] sm:$0xff]
    %v2907 = vld [vmem:[#allocation10 + $0x100] sm:$0xff]
    %v2908 = vld [vmem:[#allocation10 + $0x108] sm:$0xff]
    %v2909 = vld [vmem:[#allocation10 + $0x110] sm:$0xff]
    %v2910 = vld [vmem:[#allocation10 + $0x118] sm:$0xff]
    %v2911 = vld [vmem:[#allocation10 + $0x120] sm:$0xff]
    %v2912 = vld [vmem:[#allocation10 + $0x128] sm:$0xff]
    %v2913 = vld [vmem:[#allocation10 + $0x130] sm:$0xff]
    %v2914 = vld [vmem:[#allocation10 + $0x138] sm:$0xff]
    %v2915 = vld [vmem:[#allocation10 + $0x140] sm:$0xff]
    %v2916 = vld [vmem:[#allocation10 + $0x148] sm:$0xff]
    %v2917 = vld [vmem:[#allocation10 + $0x150] sm:$0xff]
    %v2918 = vld [vmem:[#allocation10 + $0x158] sm:$0xff]
    %v2919 = vld [vmem:[#allocation10 + $0x160] sm:$0xff]
    %v2920 = vld [vmem:[#allocation10 + $0x168] sm:$0xff]
    %v2921 = vld [vmem:[#allocation10 + $0x170] sm:$0xff]
    %v2922 = vld [vmem:[#allocation10 + $0x178] sm:$0xff]
    %v2923 = vld [vmem:[#allocation10 + $0x180] sm:$0xff]
    %v2924 = vld [vmem:[#allocation10 + $0x188] sm:$0xff]
    %v2925 = vld [vmem:[#allocation10 + $0x190] sm:$0xff]
    %v2926 = vld [vmem:[#allocation10 + $0x198] sm:$0xff]
    %v2927 = vld [vmem:[#allocation10 + $0x1a0] sm:$0xff]
    %v2928 = vld [vmem:[#allocation10 + $0x1a8] sm:$0xff]
    %v2929 = vld [vmem:[#allocation10 + $0x1b0] sm:$0xff]
    %v2930 = vld [vmem:[#allocation10 + $0x1b8] sm:$0xff]
    %v2931 = vld [vmem:[#allocation10 + $0x1c0] sm:$0xff]
    %v2932 = vld [vmem:[#allocation10 + $0x1c8] sm:$0xff]
    %v2933 = vld [vmem:[#allocation10 + $0x1d0] sm:$0xff]
    %v2934 = vld [vmem:[#allocation10 + $0x1d8] sm:$0xff]
    %v2935 = vld [vmem:[#allocation10 + $0x1e0] sm:$0xff]
    %v2936 = vld [vmem:[#allocation10 + $0x1e8] sm:$0xff]
    %v2937 = vld [vmem:[#allocation10 + $0x1f0] sm:$0xff]
    %v2938 = vld [vmem:[#allocation10 + $0x1f8] sm:$0xff]
    %v2939 = vld [vmem:[%s14] sm:$0xf]
    %v2941 = vperm.slane %v2939, 0
    %v2942 = vperm.slane %v2939, 1
    %v2943 = vperm.slane %v2939, 2
    %v2944 = vperm.slane %v2939, 3
    %v3013 = vunpack.c.l.b16 %v2875
    %v3014 = vunpack.c.h.b16 %v2875
    %v3015 = vunpack.c.l.b16 %v2876
    %v3016 = vunpack.c.h.b16 %v2876
    %v3017 = vunpack.c.l.b16 %v2877
    %v3018 = vunpack.c.h.b16 %v2877
    %v3019 = vunpack.c.l.b16 %v2878
    %v3020 = vunpack.c.h.b16 %v2878
    %v3021 = vunpack.c.l.b16 %v2879
    %v3022 = vunpack.c.h.b16 %v2879
    %v3023 = vunpack.c.l.b16 %v2880
    %v3024 = vunpack.c.h.b16 %v2880
    %v3025 = vunpack.c.l.b16 %v2881
    %v3026 = vunpack.c.h.b16 %v2881
    %v3027 = vunpack.c.l.b16 %v2882
    %v3028 = vunpack.c.h.b16 %v2882
    %v3029 = vunpack.c.l.b16 %v2883
    %v3030 = vunpack.c.h.b16 %v2883
    %v3031 = vunpack.c.l.b16 %v2884
    %v3032 = vunpack.c.h.b16 %v2884
    %v3033 = vunpack.c.l.b16 %v2885
    %v3034 = vunpack.c.h.b16 %v2885
    %v3035 = vunpack.c.l.b16 %v2886
    %v3036 = vunpack.c.h.b16 %v2886
    %v3037 = vunpack.c.l.b16 %v2887
    %v3038 = vunpack.c.h.b16 %v2887
    %v3039 = vunpack.c.l.b16 %v2888
    %v3040 = vunpack.c.h.b16 %v2888
    %v3041 = vunpack.c.l.b16 %v2889
    %v3042 = vunpack.c.h.b16 %v2889
    %v3043 = vunpack.c.l.b16 %v2890
    %v3044 = vunpack.c.h.b16 %v2890
    %v3045 = vunpack.c.l.b16 %v2891
    %v3046 = vunpack.c.h.b16 %v2891
    %v3047 = vunpack.c.l.b16 %v2892
    %v3048 = vunpack.c.h.b16 %v2892
    %v3049 = vunpack.c.l.b16 %v2893
    %v3050 = vunpack.c.h.b16 %v2893
    %v3051 = vunpack.c.l.b16 %v2894
    %v3052 = vunpack.c.h.b16 %v2894
    %v3053 = vunpack.c.l.b16 %v2895
    %v3054 = vunpack.c.h.b16 %v2895
    %v3055 = vunpack.c.l.b16 %v2896
    %v3056 = vunpack.c.h.b16 %v2896
    %v3057 = vunpack.c.l.b16 %v2897
    %v3058 = vunpack.c.h.b16 %v2897
    %v3059 = vunpack.c.l.b16 %v2898
    %v3060 = vunpack.c.h.b16 %v2898
    %v3061 = vunpack.c.l.b16 %v2899
    %v3062 = vunpack.c.h.b16 %v2899
    %v3063 = vunpack.c.l.b16 %v2900
    %v3064 = vunpack.c.h.b16 %v2900
    %v3065 = vunpack.c.l.b16 %v2901
    %v3066 = vunpack.c.h.b16 %v2901
    %v3067 = vunpack.c.l.b16 %v2902
    %v3068 = vunpack.c.h.b16 %v2902
    %v3069 = vunpack.c.l.b16 %v2903
    %v3070 = vunpack.c.h.b16 %v2903
    %v3071 = vunpack.c.l.b16 %v2904
    %v3072 = vunpack.c.h.b16 %v2904
    %v3073 = vunpack.c.l.b16 %v2905
    %v3074 = vunpack.c.h.b16 %v2905
    %v3075 = vunpack.c.l.b16 %v2906
    %v3076 = vunpack.c.h.b16 %v2906
    %v3077 = vunpack.c.l.b16 %v2907
    %v3078 = vunpack.c.h.b16 %v2907
    %v3079 = vunpack.c.l.b16 %v2908
    %v3080 = vunpack.c.h.b16 %v2908
    %v3081 = vunpack.c.l.b16 %v2909
    %v3082 = vunpack.c.h.b16 %v2909
    %v3083 = vunpack.c.l.b16 %v2910
    %v3084 = vunpack.c.h.b16 %v2910
    %v3085 = vunpack.c.l.b16 %v2911
    %v3086 = vunpack.c.h.b16 %v2911
    %v3087 = vunpack.c.l.b16 %v2912
    %v3088 = vunpack.c.h.b16 %v2912
    %v3089 = vunpack.c.l.b16 %v2913
    %v3090 = vunpack.c.h.b16 %v2913
    %v3091 = vunpack.c.l.b16 %v2914
    %v3092 = vunpack.c.h.b16 %v2914
    %v3093 = vunpack.c.l.b16 %v2915
    %v3094 = vunpack.c.h.b16 %v2915
    %v3095 = vunpack.c.l.b16 %v2916
    %v3096 = vunpack.c.h.b16 %v2916
    %v3097 = vunpack.c.l.b16 %v2917
    %v3098 = vunpack.c.h.b16 %v2917
    %v3099 = vunpack.c.l.b16 %v2918
    %v3100 = vunpack.c.h.b16 %v2918
    %v3101 = vunpack.c.l.b16 %v2919
    %v3102 = vunpack.c.h.b16 %v2919
    %v3103 = vunpack.c.l.b16 %v2920
    %v3104 = vunpack.c.h.b16 %v2920
    %v3105 = vunpack.c.l.b16 %v2921
    %v3106 = vunpack.c.h.b16 %v2921
    %v3107 = vunpack.c.l.b16 %v2922
    %v3108 = vunpack.c.h.b16 %v2922
    %v3109 = vunpack.c.l.b16 %v2923
    %v3110 = vunpack.c.h.b16 %v2923
    %v3111 = vunpack.c.l.b16 %v2924
    %v3112 = vunpack.c.h.b16 %v2924
    %v3113 = vunpack.c.l.b16 %v2925
    %v3114 = vunpack.c.h.b16 %v2925
    %v3115 = vunpack.c.l.b16 %v2926
    %v3116 = vunpack.c.h.b16 %v2926
    %v3117 = vunpack.c.l.b16 %v2927
    %v3118 = vunpack.c.h.b16 %v2927
    %v3119 = vunpack.c.l.b16 %v2928
    %v3120 = vunpack.c.h.b16 %v2928
    %v3121 = vunpack.c.l.b16 %v2929
    %v3122 = vunpack.c.h.b16 %v2929
    %v3123 = vunpack.c.l.b16 %v2930
    %v3124 = vunpack.c.h.b16 %v2930
    %v3125 = vunpack.c.l.b16 %v2931
    %v3126 = vunpack.c.h.b16 %v2931
    %v3127 = vunpack.c.l.b16 %v2932
    %v3128 = vunpack.c.h.b16 %v2932
    %v3129 = vunpack.c.l.b16 %v2933
    %v3130 = vunpack.c.h.b16 %v2933
    %v3131 = vunpack.c.l.b16 %v2934
    %v3132 = vunpack.c.h.b16 %v2934
    %v3133 = vunpack.c.l.b16 %v2935
    %v3134 = vunpack.c.h.b16 %v2935
    %v3135 = vunpack.c.l.b16 %v2936
    %v3136 = vunpack.c.h.b16 %v2936
    %v3137 = vunpack.c.l.b16 %v2937
    %v3138 = vunpack.c.h.b16 %v2937
    %v3139 = vunpack.c.l.b16 %v2938
    %v3140 = vunpack.c.h.b16 %v2938
    %v3141 = vpack.c.b16 %v3017, %v3013
    %v3142 = vpack.c.b16 %v3018, %v3014
    %v3143 = vpack.c.b16 %v3019, %v3015
    %v3144 = vpack.c.b16 %v3020, %v3016
    %v3145 = vpack.c.b16 %v3025, %v3021
    %v3146 = vpack.c.b16 %v3026, %v3022
    %v3147 = vpack.c.b16 %v3027, %v3023
    %v3148 = vpack.c.b16 %v3028, %v3024
    %v3149 = vpack.c.b16 %v3033, %v3029
    %v3150 = vpack.c.b16 %v3034, %v3030
    %v3151 = vpack.c.b16 %v3035, %v3031
    %v3152 = vpack.c.b16 %v3036, %v3032
    %v3153 = vpack.c.b16 %v3041, %v3037
    %v3154 = vpack.c.b16 %v3042, %v3038
    %v3155 = vpack.c.b16 %v3043, %v3039
    %v3156 = vpack.c.b16 %v3044, %v3040
    %v3157 = vpack.c.b16 %v3049, %v3045
    %v3158 = vpack.c.b16 %v3050, %v3046
    %v3159 = vpack.c.b16 %v3051, %v3047
    %v3160 = vpack.c.b16 %v3052, %v3048
    %v3161 = vpack.c.b16 %v3057, %v3053
    %v3162 = vpack.c.b16 %v3058, %v3054
    %v3163 = vpack.c.b16 %v3059, %v3055
    %v3164 = vpack.c.b16 %v3060, %v3056
    %v3165 = vpack.c.b16 %v3065, %v3061
    %v3166 = vpack.c.b16 %v3066, %v3062
    %v3167 = vpack.c.b16 %v3067, %v3063
    %v3168 = vpack.c.b16 %v3068, %v3064
    %v3169 = vpack.c.b16 %v3073, %v3069
    %v3170 = vpack.c.b16 %v3074, %v3070
    %v3171 = vpack.c.b16 %v3075, %v3071
    %v3172 = vpack.c.b16 %v3076, %v3072
    %v3173 = vpack.c.b16 %v3081, %v3077
    %v3174 = vpack.c.b16 %v3082, %v3078
    %v3175 = vpack.c.b16 %v3083, %v3079
    %v3176 = vpack.c.b16 %v3084, %v3080
    %v3177 = vpack.c.b16 %v3089, %v3085
    %v3178 = vpack.c.b16 %v3090, %v3086
    %v3179 = vpack.c.b16 %v3091, %v3087
    %v3180 = vpack.c.b16 %v3092, %v3088
    %v3181 = vpack.c.b16 %v3097, %v3093
    %v3182 = vpack.c.b16 %v3098, %v3094
    %v3183 = vpack.c.b16 %v3099, %v3095
    %v3184 = vpack.c.b16 %v3100, %v3096
    %v3185 = vpack.c.b16 %v3105, %v3101
    %v3186 = vpack.c.b16 %v3106, %v3102
    %v3187 = vpack.c.b16 %v3107, %v3103
    %v3188 = vpack.c.b16 %v3108, %v3104
    %v3189 = vpack.c.b16 %v3113, %v3109
    %v3190 = vpack.c.b16 %v3114, %v3110
    %v3191 = vpack.c.b16 %v3115, %v3111
    %v3192 = vpack.c.b16 %v3116, %v3112
    %v3193 = vpack.c.b16 %v3121, %v3117
    %v3194 = vpack.c.b16 %v3122, %v3118
    %v3195 = vpack.c.b16 %v3123, %v3119
    %v3196 = vpack.c.b16 %v3124, %v3120
    %v3197 = vpack.c.b16 %v3129, %v3125
    %v3198 = vpack.c.b16 %v3130, %v3126
    %v3199 = vpack.c.b16 %v3131, %v3127
    %v3200 = vpack.c.b16 %v3132, %v3128
    %v3201 = vpack.c.b16 %v3137, %v3133
    %v3202 = vpack.c.b16 %v3138, %v3134
    %v3203 = vpack.c.b16 %v3139, %v3135
    %v3204 = vpack.c.b16 %v3140, %v3136
    %3269 = vmatpush.bf16.msra.mxu0 %v3169
    %3270 = vmatpush.bf16.msra.mxu0 %v3165
    %3271 = vmatpush.bf16.msra.mxu0 %v3161
    %3272 = vmatpush.bf16.msra.mxu0 %v3157
    %3273 = vmatpush.bf16.msra.mxu0 %v3153
    %3274 = vmatpush.bf16.msra.mxu0 %v3149
    %3275 = vmatpush.bf16.msra.mxu0 %v3145
    %3276 = vmatpush.bf16.msra.mxu0 %v3141
    %3277 = vmatmul.bf16.gmra.mxu0 %v2873
    %v3278 = vpop.f32.mrf.mxu0
    %v3279 = vadd.f32 %v2941, %v3278
    %v3280 = vpop.f32.mrf.mxu0
    %3281 = vdwg.mxu0
    %3282 = vmatpush.bf16.msra.mxu0 %v3201
    %3283 = vmatpush.bf16.msra.mxu0 %v3197
    %3284 = vmatpush.bf16.msra.mxu0 %v3193
    %3285 = vmatpush.bf16.msra.mxu0 %v3189
    %3286 = vmatpush.bf16.msra.mxu0 %v3185
    %3287 = vmatpush.bf16.msra.mxu0 %v3181
    %3288 = vmatpush.bf16.msra.mxu0 %v3177
    %3289 = vmatpush.bf16.msra.mxu0 %v3173
    %3290 = vmatmul.bf16.gmra.mxu0 %v2874
    %v3291 = vpop.f32.mrf.mxu0
    %v3292 = vadd.f32 %v3279, %v3291
    %v3293 = vpop.f32.mrf.mxu0
    %3294 = vdwg.mxu0
    %3295 = vmatpush.bf16.msra.mxu0 %v3170
    %3296 = vmatpush.bf16.msra.mxu0 %v3166
    %3297 = vmatpush.bf16.msra.mxu0 %v3162
    %3298 = vmatpush.bf16.msra.mxu0 %v3158
    %3299 = vmatpush.bf16.msra.mxu0 %v3154
    %3300 = vmatpush.bf16.msra.mxu0 %v3150
    %3301 = vmatpush.bf16.msra.mxu0 %v3146
    %3302 = vmatpush.bf16.msra.mxu0 %v3142
    %3303 = vmatmul.bf16.gmra.mxu0 %v2873
    %v3304 = vpop.f32.mrf.mxu0
    %v3305 = vadd.f32 %v2942, %v3304
    %v3306 = vpop.f32.mrf.mxu0
    %3307 = vdwg.mxu0
    %3308 = vmatpush.bf16.msra.mxu0 %v3202
    %3309 = vmatpush.bf16.msra.mxu0 %v3198
    %3310 = vmatpush.bf16.msra.mxu0 %v3194
    %3311 = vmatpush.bf16.msra.mxu0 %v3190
    %3312 = vmatpush.bf16.msra.mxu0 %v3186
    %3313 = vmatpush.bf16.msra.mxu0 %v3182
    %3314 = vmatpush.bf16.msra.mxu0 %v3178
    %3315 = vmatpush.bf16.msra.mxu0 %v3174
    %3316 = vmatmul.bf16.gmra.mxu0 %v2874
    %v3317 = vpop.f32.mrf.mxu0
    %v3318 = vadd.f32 %v3305, %v3317
    %v3319 = vpop.f32.mrf.mxu0
    %3320 = vdwg.mxu0
    %3321 = vmatpush.bf16.msra.mxu0 %v3171
    %3322 = vmatpush.bf16.msra.mxu0 %v3167
    %3323 = vmatpush.bf16.msra.mxu0 %v3163
    %3324 = vmatpush.bf16.msra.mxu0 %v3159
    %3325 = vmatpush.bf16.msra.mxu0 %v3155
    %3326 = vmatpush.bf16.msra.mxu0 %v3151
    %3327 = vmatpush.bf16.msra.mxu0 %v3147
    %3328 = vmatpush.bf16.msra.mxu0 %v3143
    %3329 = vmatmul.bf16.gmra.mxu0 %v2873
    %v3330 = vpop.f32.mrf.mxu0
    %v3331 = vadd.f32 %v2943, %v3330
    %v3332 = vpop.f32.mrf.mxu0
    %3333 = vdwg.mxu0
    %3334 = vmatpush.bf16.msra.mxu0 %v3203
    %3335 = vmatpush.bf16.msra.mxu0 %v3199
    %3336 = vmatpush.bf16.msra.mxu0 %v3195
    %3337 = vmatpush.bf16.msra.mxu0 %v3191
    %3338 = vmatpush.bf16.msra.mxu0 %v3187
    %3339 = vmatpush.bf16.msra.mxu0 %v3183
    %3340 = vmatpush.bf16.msra.mxu0 %v3179
    %3341 = vmatpush.bf16.msra.mxu0 %v3175
    %3342 = vmatmul.bf16.gmra.mxu0 %v2874
    %v3343 = vpop.f32.mrf.mxu0
    %v3344 = vadd.f32 %v3331, %v3343
    %v3345 = vpop.f32.mrf.mxu0
    %3346 = vdwg.mxu0
    %3347 = vmatpush.bf16.msra.mxu0 %v3172
    %3348 = vmatpush.bf16.msra.mxu0 %v3168
    %3349 = vmatpush.bf16.msra.mxu0 %v3164
    %3350 = vmatpush.bf16.msra.mxu0 %v3160
    %3351 = vmatpush.bf16.msra.mxu0 %v3156
    %3352 = vmatpush.bf16.msra.mxu0 %v3152
    %3353 = vmatpush.bf16.msra.mxu0 %v3148
    %3354 = vmatpush.bf16.msra.mxu0 %v3144
    %3355 = vmatmul.bf16.gmra.mxu0 %v2873
    %v3356 = vpop.f32.mrf.mxu0
    %v3357 = vadd.f32 %v2944, %v3356
    %v3358 = vpop.f32.mrf.mxu0
    %3359 = vdwg.mxu0
    %3360 = vmatpush.bf16.msra.mxu0 %v3204
    %3361 = vmatpush.bf16.msra.mxu0 %v3200
    %3362 = vmatpush.bf16.msra.mxu0 %v3196
    %3363 = vmatpush.bf16.msra.mxu0 %v3192
    %3364 = vmatpush.bf16.msra.mxu0 %v3188
    %3365 = vmatpush.bf16.msra.mxu0 %v3184
    %3366 = vmatpush.bf16.msra.mxu0 %v3180
    %3367 = vmatpush.bf16.msra.mxu0 %v3176
    %3368 = vmatmul.bf16.gmra.mxu0 %v2874
    %v3369 = vpop.f32.mrf.mxu0
    %v3370 = vadd.f32 %v3357, %v3369
    %v3371 = vpop.f32.mrf.mxu0
    %3372 = vdwg.mxu0
    %v3373 = vmax.f32 %v3292, 0.0
    %v3374 = vmax.f32 %v3318, 0.0
    %v3375 = vmax.f32 %v3344, 0.0
    %v3376 = vmax.f32 %v3370, 0.0
    %v3377 = vpack.c.bf16 %v3373, %v3373
    %v3378 = vpack.c.bf16 %v3374, %v3374
    %v3379 = vpack.c.bf16 %v3375, %v3375
    %v3380 = vpack.c.bf16 %v3376, %v3376
    %v3381 = vld [vmem:[#allocation12] sm:$0xff]
    %v3382 = vld [vmem:[#allocation12 + $0x8] sm:$0xff]
    %v3383 = vld [vmem:[#allocation12 + $0x10] sm:$0xff]
    %v3384 = vld [vmem:[#allocation12 + $0x18] sm:$0xf]
    %v3385 = vld [vmem:[#allocation12 + $0x1c] sm:$0xff]
    %v3386 = vld [vmem:[#allocation12 + $0x24] sm:$0xff]
    %v3387 = vld [vmem:[#allocation12 + $0x2c] sm:$0xff]
    %v3388 = vld [vmem:[#allocation12 + $0x34] sm:$0xf]
    %v3389 = vld [vmem:[#allocation12 + $0x38] sm:$0xff]
    %v3390 = vld [vmem:[#allocation12 + $0x40] sm:$0xff]
    %v3391 = vld [vmem:[#allocation12 + $0x48] sm:$0xff]
    %v3392 = vld [vmem:[#allocation12 + $0x50] sm:$0xf]
    %v3393 = vld [vmem:[#allocation12 + $0x54] sm:$0xff]
    %v3394 = vld [vmem:[#allocation12 + $0x5c] sm:$0xff]
    %v3395 = vld [vmem:[#allocation12 + $0x64] sm:$0xff]
    %v3396 = vld [vmem:[#allocation12 + $0x6c] sm:$0xf]
    %v3397 = vld [vmem:[#allocation12 + $0x70] sm:$0xff]
    %v3398 = vld [vmem:[#allocation12 + $0x78] sm:$0xff]
    %v3399 = vld [vmem:[#allocation12 + $0x80] sm:$0xff]
    %v3400 = vld [vmem:[#allocation12 + $0x88] sm:$0xf]
    %v3401 = vld [vmem:[#allocation12 + $0x8c] sm:$0xff]
    %v3402 = vld [vmem:[#allocation12 + $0x94] sm:$0xff]
    %v3403 = vld [vmem:[#allocation12 + $0x9c] sm:$0xff]
    %v3404 = vld [vmem:[#allocation12 + $0xa4] sm:$0xf]
    %v3405 = vld [vmem:[#allocation12 + $0xa8] sm:$0xff]
    %v3406 = vld [vmem:[#allocation12 + $0xb0] sm:$0xff]
    %v3407 = vld [vmem:[#allocation12 + $0xb8] sm:$0xff]
    %v3408 = vld [vmem:[#allocation12 + $0xc0] sm:$0xf]
    %v3409 = vld [vmem:[#allocation12 + $0xc4] sm:$0xff]
    %v3410 = vld [vmem:[#allocation12 + $0xcc] sm:$0xff]
    %v3411 = vld [vmem:[#allocation12 + $0xd4] sm:$0xff]
    %v3412 = vld [vmem:[#allocation12 + $0xdc] sm:$0xf]
    %v3413 = vld [vmem:[#allocation12 + $0xe0] sm:$0xff]
    %v3414 = vld [vmem:[#allocation12 + $0xe8] sm:$0xff]
    %v3415 = vld [vmem:[#allocation12 + $0xf0] sm:$0xff]
    %v3416 = vld [vmem:[#allocation12 + $0xf8] sm:$0xf]
    %v3417 = vld [vmem:[#allocation12 + $0xfc] sm:$0xff]
    %v3418 = vld [vmem:[#allocation12 + $0x104] sm:$0xff]
    %v3419 = vld [vmem:[#allocation12 + $0x10c] sm:$0xff]
    %v3420 = vld [vmem:[#allocation12 + $0x114] sm:$0xf]
    %v3421 = vld [vmem:[#allocation12 + $0x118] sm:$0xff]
    %v3422 = vld [vmem:[#allocation12 + $0x120] sm:$0xff]
    %v3423 = vld [vmem:[#allocation12 + $0x128] sm:$0xff]
    %v3424 = vld [vmem:[#allocation12 + $0x130] sm:$0xf]
    %v3425 = vld [vmem:[#allocation12 + $0x134] sm:$0xff]
    %v3426 = vld [vmem:[#allocation12 + $0x13c] sm:$0xff]
    %v3427 = vld [vmem:[#allocation12 + $0x144] sm:$0xff]
    %v3428 = vld [vmem:[#allocation12 + $0x14c] sm:$0xf]
    %v3429 = vld [vmem:[#allocation12 + $0x150] sm:$0xff]
    %v3430 = vld [vmem:[#allocation12 + $0x158] sm:$0xff]
    %v3431 = vld [vmem:[#allocation12 + $0x160] sm:$0xff]
    %v3432 = vld [vmem:[#allocation12 + $0x168] sm:$0xf]
    %v3433 = vld [vmem:[#allocation12 + $0x16c] sm:$0xff]
    %v3434 = vld [vmem:[#allocation12 + $0x174] sm:$0xff]
    %v3435 = vld [vmem:[#allocation12 + $0x17c] sm:$0xff]
    %v3436 = vld [vmem:[#allocation12 + $0x184] sm:$0xf]
    %v3437 = vld [vmem:[#allocation12 + $0x188] sm:$0xff]
    %v3438 = vld [vmem:[#allocation12 + $0x190] sm:$0xff]
    %v3439 = vld [vmem:[#allocation12 + $0x198] sm:$0xff]
    %v3440 = vld [vmem:[#allocation12 + $0x1a0] sm:$0xf]
    %v3441 = vld [vmem:[#allocation12 + $0x1a4] sm:$0xff]
    %v3442 = vld [vmem:[#allocation12 + $0x1ac] sm:$0xff]
    %v3443 = vld [vmem:[#allocation12 + $0x1b4] sm:$0xff]
    %v3444 = vld [vmem:[#allocation12 + $0x1bc] sm:$0xf]
    %v3445 = vld [vmem:[#allocation12 + $0x1c0] sm:$0xff]
    %v3446 = vld [vmem:[#allocation12 + $0x1c8] sm:$0xff]
    %v3447 = vld [vmem:[#allocation12 + $0x1d0] sm:$0xff]
    %v3448 = vld [vmem:[#allocation12 + $0x1d8] sm:$0xf]
    %v3449 = vld [vmem:[#allocation12 + $0x1dc] sm:$0xff]
    %v3450 = vld [vmem:[#allocation12 + $0x1e4] sm:$0xff]
    %v3451 = vld [vmem:[#allocation12 + $0x1ec] sm:$0xff]
    %v3452 = vld [vmem:[#allocation12 + $0x1f4] sm:$0xf]
    %v3453 = vld [vmem:[#allocation12 + $0x1f8] sm:$0xff]
    %v3454 = vld [vmem:[#allocation12 + $0x200] sm:$0xff]
    %v3455 = vld [vmem:[#allocation12 + $0x208] sm:$0xff]
    %v3456 = vld [vmem:[#allocation12 + $0x210] sm:$0xf]
    %v3457 = vld [vmem:[#allocation12 + $0x214] sm:$0xff]
    %v3458 = vld [vmem:[#allocation12 + $0x21c] sm:$0xff]
    %v3459 = vld [vmem:[#allocation12 + $0x224] sm:$0xff]
    %v3460 = vld [vmem:[#allocation12 + $0x22c] sm:$0xf]
    %v3461 = vld [vmem:[#allocation12 + $0x230] sm:$0xff]
    %v3462 = vld [vmem:[#allocation12 + $0x238] sm:$0xff]
    %v3463 = vld [vmem:[#allocation12 + $0x240] sm:$0xff]
    %v3464 = vld [vmem:[#allocation12 + $0x248] sm:$0xf]
    %v3465 = vld [vmem:[#allocation12 + $0x24c] sm:$0xff]
    %v3466 = vld [vmem:[#allocation12 + $0x254] sm:$0xff]
    %v3467 = vld [vmem:[#allocation12 + $0x25c] sm:$0xff]
    %v3468 = vld [vmem:[#allocation12 + $0x264] sm:$0xf]
    %v3469 = vld [vmem:[#allocation12 + $0x268] sm:$0xff]
    %v3470 = vld [vmem:[#allocation12 + $0x270] sm:$0xff]
    %v3471 = vld [vmem:[#allocation12 + $0x278] sm:$0xff]
    %v3472 = vld [vmem:[#allocation12 + $0x280] sm:$0xf]
    %v3473 = vld [vmem:[#allocation12 + $0x284] sm:$0xff]
    %v3474 = vld [vmem:[#allocation12 + $0x28c] sm:$0xff]
    %v3475 = vld [vmem:[#allocation12 + $0x294] sm:$0xff]
    %v3476 = vld [vmem:[#allocation12 + $0x29c] sm:$0xf]
    %v3477 = vld [vmem:[#allocation12 + $0x2a0] sm:$0xff]
    %v3478 = vld [vmem:[#allocation12 + $0x2a8] sm:$0xff]
    %v3479 = vld [vmem:[#allocation12 + $0x2b0] sm:$0xff]
    %v3480 = vld [vmem:[#allocation12 + $0x2b8] sm:$0xf]
    %v3481 = vld [vmem:[#allocation12 + $0x2bc] sm:$0xff]
    %v3482 = vld [vmem:[#allocation12 + $0x2c4] sm:$0xff]
    %v3483 = vld [vmem:[#allocation12 + $0x2cc] sm:$0xff]
    %v3484 = vld [vmem:[#allocation12 + $0x2d4] sm:$0xf]
    %v3485 = vld [vmem:[#allocation12 + $0x2d8] sm:$0xff]
    %v3486 = vld [vmem:[#allocation12 + $0x2e0] sm:$0xff]
    %v3487 = vld [vmem:[#allocation12 + $0x2e8] sm:$0xff]
    %v3488 = vld [vmem:[#allocation12 + $0x2f0] sm:$0xf]
    %v3489 = vld [vmem:[#allocation12 + $0x2f4] sm:$0xff]
    %v3490 = vld [vmem:[#allocation12 + $0x2fc] sm:$0xff]
    %v3491 = vld [vmem:[#allocation12 + $0x304] sm:$0xff]
    %v3492 = vld [vmem:[#allocation12 + $0x30c] sm:$0xf]
    %v3493 = vld [vmem:[#allocation12 + $0x310] sm:$0xff]
    %v3494 = vld [vmem:[#allocation12 + $0x318] sm:$0xff]
    %v3495 = vld [vmem:[#allocation12 + $0x320] sm:$0xff]
    %v3496 = vld [vmem:[#allocation12 + $0x328] sm:$0xf]
    %v3497 = vld [vmem:[#allocation12 + $0x32c] sm:$0xff]
    %v3498 = vld [vmem:[#allocation12 + $0x334] sm:$0xff]
    %v3499 = vld [vmem:[#allocation12 + $0x33c] sm:$0xff]
    %v3500 = vld [vmem:[#allocation12 + $0x344] sm:$0xf]
    %v3501 = vld [vmem:[#allocation12 + $0x348] sm:$0xff]
    %v3502 = vld [vmem:[#allocation12 + $0x350] sm:$0xff]
    %v3503 = vld [vmem:[#allocation12 + $0x358] sm:$0xff]
    %v3504 = vld [vmem:[#allocation12 + $0x360] sm:$0xf]
    %v3505 = vld [vmem:[#allocation12 + $0x364] sm:$0xff]
    %v3506 = vld [vmem:[#allocation12 + $0x36c] sm:$0xff]
    %v3507 = vld [vmem:[#allocation12 + $0x374] sm:$0xff]
    %v3508 = vld [vmem:[#allocation12 + $0x37c] sm:$0xf]
    %v3509 = vld [vmem:[#allocation12 + $0x380] sm:$0xff]
    %v3510 = vld [vmem:[#allocation12 + $0x388] sm:$0xff]
    %v3511 = vld [vmem:[#allocation12 + $0x390] sm:$0xff]
    %v3512 = vld [vmem:[#allocation12 + $0x398] sm:$0xf]
    %v3513 = vld [vmem:[#allocation12 + $0x39c] sm:$0xff]
    %v3514 = vld [vmem:[#allocation12 + $0x3a4] sm:$0xff]
    %v3515 = vld [vmem:[#allocation12 + $0x3ac] sm:$0xff]
    %v3516 = vld [vmem:[#allocation12 + $0x3b4] sm:$0xf]
    %v3517 = vld [vmem:[#allocation12 + $0x3b8] sm:$0xff]
    %v3518 = vld [vmem:[#allocation12 + $0x3c0] sm:$0xff]
    %v3519 = vld [vmem:[#allocation12 + $0x3c8] sm:$0xff]
    %v3520 = vld [vmem:[#allocation12 + $0x3d0] sm:$0xf]
    %v3521 = vld [vmem:[#allocation12 + $0x3d4] sm:$0xff]
    %v3522 = vld [vmem:[#allocation12 + $0x3dc] sm:$0xff]
    %v3523 = vld [vmem:[#allocation12 + $0x3e4] sm:$0xff]
    %v3524 = vld [vmem:[#allocation12 + $0x3ec] sm:$0xf]
    %v3525 = vld [vmem:[#allocation12 + $0x3f0] sm:$0xff]
    %v3526 = vld [vmem:[#allocation12 + $0x3f8] sm:$0xff]
    %v3527 = vld [vmem:[#allocation12 + $0x400] sm:$0xff]
    %v3528 = vld [vmem:[#allocation12 + $0x408] sm:$0xf]
    %v3529 = vld [vmem:[#allocation12 + $0x40c] sm:$0xff]
    %v3530 = vld [vmem:[#allocation12 + $0x414] sm:$0xff]
    %v3531 = vld [vmem:[#allocation12 + $0x41c] sm:$0xff]
    %v3532 = vld [vmem:[#allocation12 + $0x424] sm:$0xf]
    %v3533 = vld [vmem:[#allocation12 + $0x428] sm:$0xff]
    %v3534 = vld [vmem:[#allocation12 + $0x430] sm:$0xff]
    %v3535 = vld [vmem:[#allocation12 + $0x438] sm:$0xff]
    %v3536 = vld [vmem:[#allocation12 + $0x440] sm:$0xf]
    %v3537 = vld [vmem:[#allocation12 + $0x444] sm:$0xff]
    %v3538 = vld [vmem:[#allocation12 + $0x44c] sm:$0xff]
    %v3539 = vld [vmem:[#allocation12 + $0x454] sm:$0xff]
    %v3540 = vld [vmem:[#allocation12 + $0x45c] sm:$0xf]
    %v3541 = vld [vmem:[#allocation12 + $0x460] sm:$0xff]
    %v3542 = vld [vmem:[#allocation12 + $0x468] sm:$0xff]
    %v3543 = vld [vmem:[#allocation12 + $0x470] sm:$0xff]
    %v3544 = vld [vmem:[#allocation12 + $0x478] sm:$0xf]
    %v3545 = vld [vmem:[#allocation12 + $0x47c] sm:$0xff]
    %v3546 = vld [vmem:[#allocation12 + $0x484] sm:$0xff]
    %v3547 = vld [vmem:[#allocation12 + $0x48c] sm:$0xff]
    %v3548 = vld [vmem:[#allocation12 + $0x494] sm:$0xf]
    %v3549 = vld [vmem:[#allocation12 + $0x498] sm:$0xff]
    %v3550 = vld [vmem:[#allocation12 + $0x4a0] sm:$0xff]
    %v3551 = vld [vmem:[#allocation12 + $0x4a8] sm:$0xff]
    %v3552 = vld [vmem:[#allocation12 + $0x4b0] sm:$0xf]
    %v3553 = vld [vmem:[#allocation12 + $0x4b4] sm:$0xff]
    %v3554 = vld [vmem:[#allocation12 + $0x4bc] sm:$0xff]
    %v3555 = vld [vmem:[#allocation12 + $0x4c4] sm:$0xff]
    %v3556 = vld [vmem:[#allocation12 + $0x4cc] sm:$0xf]
    %v3557 = vld [vmem:[#allocation12 + $0x4d0] sm:$0xff]
    %v3558 = vld [vmem:[#allocation12 + $0x4d8] sm:$0xff]
    %v3559 = vld [vmem:[#allocation12 + $0x4e0] sm:$0xff]
    %v3560 = vld [vmem:[#allocation12 + $0x4e8] sm:$0xf]
    %v3561 = vld [vmem:[#allocation12 + $0x4ec] sm:$0xff]
    %v3562 = vld [vmem:[#allocation12 + $0x4f4] sm:$0xff]
    %v3563 = vld [vmem:[#allocation12 + $0x4fc] sm:$0xff]
    %v3564 = vld [vmem:[#allocation12 + $0x504] sm:$0xf]
    %v3565 = vld [vmem:[#allocation12 + $0x508] sm:$0xff]
    %v3566 = vld [vmem:[#allocation12 + $0x510] sm:$0xff]
    %v3567 = vld [vmem:[#allocation12 + $0x518] sm:$0xff]
    %v3568 = vld [vmem:[#allocation12 + $0x520] sm:$0xf]
    %v3569 = vld [vmem:[#allocation12 + $0x524] sm:$0xff]
    %v3570 = vld [vmem:[#allocation12 + $0x52c] sm:$0xff]
    %v3571 = vld [vmem:[#allocation12 + $0x534] sm:$0xff]
    %v3572 = vld [vmem:[#allocation12 + $0x53c] sm:$0xf]
    %v3573 = vld [vmem:[#allocation12 + $0x540] sm:$0xff]
    %v3574 = vld [vmem:[#allocation12 + $0x548] sm:$0xff]
    %v3575 = vld [vmem:[#allocation12 + $0x550] sm:$0xff]
    %v3576 = vld [vmem:[#allocation12 + $0x558] sm:$0xf]
    %v3577 = vld [vmem:[#allocation12 + $0x55c] sm:$0xff]
    %v3578 = vld [vmem:[#allocation12 + $0x564] sm:$0xff]
    %v3579 = vld [vmem:[#allocation12 + $0x56c] sm:$0xff]
    %v3580 = vld [vmem:[#allocation12 + $0x574] sm:$0xf]
    %v3581 = vld [vmem:[#allocation12 + $0x578] sm:$0xff]
    %v3582 = vld [vmem:[#allocation12 + $0x580] sm:$0xff]
    %v3583 = vld [vmem:[#allocation12 + $0x588] sm:$0xff]
    %v3584 = vld [vmem:[#allocation12 + $0x590] sm:$0xf]
    %v3585 = vld [vmem:[#allocation12 + $0x594] sm:$0xff]
    %v3586 = vld [vmem:[#allocation12 + $0x59c] sm:$0xff]
    %v3587 = vld [vmem:[#allocation12 + $0x5a4] sm:$0xff]
    %v3588 = vld [vmem:[#allocation12 + $0x5ac] sm:$0xf]
    %v3589 = vld [vmem:[#allocation12 + $0x5b0] sm:$0xff]
    %v3590 = vld [vmem:[#allocation12 + $0x5b8] sm:$0xff]
    %v3591 = vld [vmem:[#allocation12 + $0x5c0] sm:$0xff]
    %v3592 = vld [vmem:[#allocation12 + $0x5c8] sm:$0xf]
    %v3593 = vld [vmem:[#allocation12 + $0x5cc] sm:$0xff]
    %v3594 = vld [vmem:[#allocation12 + $0x5d4] sm:$0xff]
    %v3595 = vld [vmem:[#allocation12 + $0x5dc] sm:$0xff]
    %v3596 = vld [vmem:[#allocation12 + $0x5e4] sm:$0xf]
    %v3597 = vld [vmem:[#allocation12 + $0x5e8] sm:$0xff]
    %v3598 = vld [vmem:[#allocation12 + $0x5f0] sm:$0xff]
    %v3599 = vld [vmem:[#allocation12 + $0x5f8] sm:$0xff]
    %v3600 = vld [vmem:[#allocation12 + $0x600] sm:$0xf]
    %v3601 = vld [vmem:[#allocation12 + $0x604] sm:$0xff]
    %v3602 = vld [vmem:[#allocation12 + $0x60c] sm:$0xff]
    %v3603 = vld [vmem:[#allocation12 + $0x614] sm:$0xff]
    %v3604 = vld [vmem:[#allocation12 + $0x61c] sm:$0xf]
    %v3605 = vld [vmem:[#allocation12 + $0x620] sm:$0xff]
    %v3606 = vld [vmem:[#allocation12 + $0x628] sm:$0xff]
    %v3607 = vld [vmem:[#allocation12 + $0x630] sm:$0xff]
    %v3608 = vld [vmem:[#allocation12 + $0x638] sm:$0xf]
    %v3609 = vld [vmem:[#allocation12 + $0x63c] sm:$0xff]
    %v3610 = vld [vmem:[#allocation12 + $0x644] sm:$0xff]
    %v3611 = vld [vmem:[#allocation12 + $0x64c] sm:$0xff]
    %v3612 = vld [vmem:[#allocation12 + $0x654] sm:$0xf]
    %v3613 = vld [vmem:[#allocation12 + $0x658] sm:$0xff]
    %v3614 = vld [vmem:[#allocation12 + $0x660] sm:$0xff]
    %v3615 = vld [vmem:[#allocation12 + $0x668] sm:$0xff]
    %v3616 = vld [vmem:[#allocation12 + $0x670] sm:$0xf]
    %v3617 = vld [vmem:[#allocation12 + $0x674] sm:$0xff]
    %v3618 = vld [vmem:[#allocation12 + $0x67c] sm:$0xff]
    %v3619 = vld [vmem:[#allocation12 + $0x684] sm:$0xff]
    %v3620 = vld [vmem:[#allocation12 + $0x68c] sm:$0xf]
    %v3621 = vld [vmem:[#allocation12 + $0x690] sm:$0xff]
    %v3622 = vld [vmem:[#allocation12 + $0x698] sm:$0xff]
    %v3623 = vld [vmem:[#allocation12 + $0x6a0] sm:$0xff]
    %v3624 = vld [vmem:[#allocation12 + $0x6a8] sm:$0xf]
    %v3625 = vld [vmem:[#allocation12 + $0x6ac] sm:$0xff]
    %v3626 = vld [vmem:[#allocation12 + $0x6b4] sm:$0xff]
    %v3627 = vld [vmem:[#allocation12 + $0x6bc] sm:$0xff]
    %v3628 = vld [vmem:[#allocation12 + $0x6c4] sm:$0xf]
    %v3629 = vld [vmem:[#allocation12 + $0x6c8] sm:$0xff]
    %v3630 = vld [vmem:[#allocation12 + $0x6d0] sm:$0xff]
    %v3631 = vld [vmem:[#allocation12 + $0x6d8] sm:$0xff]
    %v3632 = vld [vmem:[#allocation12 + $0x6e0] sm:$0xf]
    %v3633 = vld [vmem:[#allocation12 + $0x6e4] sm:$0xff]
    %v3634 = vld [vmem:[#allocation12 + $0x6ec] sm:$0xff]
    %v3635 = vld [vmem:[#allocation12 + $0x6f4] sm:$0xff]
    %v3636 = vld [vmem:[#allocation12 + $0x6fc] sm:$0xf]
    %v3637 = vld [vmem:[%s16] sm:$0xff]
    %v3639 = vperm.slane %v3637, 0
    %v3640 = vperm.slane %v3637, 1
    %v3641 = vperm.slane %v3637, 2
    %v3642 = vperm.slane %v3637, 3
    %v3643 = vperm.slane %v3637, 4
    %v3644 = vperm.slane %v3637, 5
    %v3645 = vperm.slane %v3637, 6
    %v3909 = vunpack.c.l.b16 %v3381
    %v3910 = vunpack.c.h.b16 %v3381
    %v3911 = vunpack.c.l.b16 %v3382
    %v3912 = vunpack.c.h.b16 %v3382
    %v3913 = vunpack.c.l.b16 %v3383
    %v3914 = vunpack.c.h.b16 %v3383
    %v3915 = vunpack.c.l.b16 %v3384
    %v3916 = vunpack.c.l.b16 %v3385
    %v3917 = vunpack.c.h.b16 %v3385
    %v3918 = vunpack.c.l.b16 %v3386
    %v3919 = vunpack.c.h.b16 %v3386
    %v3920 = vunpack.c.l.b16 %v3387
    %v3921 = vunpack.c.h.b16 %v3387
    %v3922 = vunpack.c.l.b16 %v3388
    %v3923 = vunpack.c.l.b16 %v3389
    %v3924 = vunpack.c.h.b16 %v3389
    %v3925 = vunpack.c.l.b16 %v3390
    %v3926 = vunpack.c.h.b16 %v3390
    %v3927 = vunpack.c.l.b16 %v3391
    %v3928 = vunpack.c.h.b16 %v3391
    %v3929 = vunpack.c.l.b16 %v3392
    %v3930 = vunpack.c.l.b16 %v3393
    %v3931 = vunpack.c.h.b16 %v3393
    %v3932 = vunpack.c.l.b16 %v3394
    %v3933 = vunpack.c.h.b16 %v3394
    %v3934 = vunpack.c.l.b16 %v3395
    %v3935 = vunpack.c.h.b16 %v3395
    %v3936 = vunpack.c.l.b16 %v3396
    %v3937 = vunpack.c.l.b16 %v3397
    %v3938 = vunpack.c.h.b16 %v3397
    %v3939 = vunpack.c.l.b16 %v3398
    %v3940 = vunpack.c.h.b16 %v3398
    %v3941 = vunpack.c.l.b16 %v3399
    %v3942 = vunpack.c.h.b16 %v3399
    %v3943 = vunpack.c.l.b16 %v3400
    %v3944 = vunpack.c.l.b16 %v3401
    %v3945 = vunpack.c.h.b16 %v3401
    %v3946 = vunpack.c.l.b16 %v3402
    %v3947 = vunpack.c.h.b16 %v3402
    %v3948 = vunpack.c.l.b16 %v3403
    %v3949 = vunpack.c.h.b16 %v3403
    %v3950 = vunpack.c.l.b16 %v3404
    %v3951 = vunpack.c.l.b16 %v3405
    %v3952 = vunpack.c.h.b16 %v3405
    %v3953 = vunpack.c.l.b16 %v3406
    %v3954 = vunpack.c.h.b16 %v3406
    %v3955 = vunpack.c.l.b16 %v3407
    %v3956 = vunpack.c.h.b16 %v3407
    %v3957 = vunpack.c.l.b16 %v3408
    %v3958 = vunpack.c.l.b16 %v3409
    %v3959 = vunpack.c.h.b16 %v3409
    %v3960 = vunpack.c.l.b16 %v3410
    %v3961 = vunpack.c.h.b16 %v3410
    %v3962 = vunpack.c.l.b16 %v3411
    %v3963 = vunpack.c.h.b16 %v3411
    %v3964 = vunpack.c.l.b16 %v3412
    %v3965 = vunpack.c.l.b16 %v3413
    %v3966 = vunpack.c.h.b16 %v3413
    %v3967 = vunpack.c.l.b16 %v3414
    %v3968 = vunpack.c.h.b16 %v3414
    %v3969 = vunpack.c.l.b16 %v3415
    %v3970 = vunpack.c.h.b16 %v3415
    %v3971 = vunpack.c.l.b16 %v3416
    %v3972 = vunpack.c.l.b16 %v3417
    %v3973 = vunpack.c.h.b16 %v3417
    %v3974 = vunpack.c.l.b16 %v3418
    %v3975 = vunpack.c.h.b16 %v3418
    %v3976 = vunpack.c.l.b16 %v3419
    %v3977 = vunpack.c.h.b16 %v3419
    %v3978 = vunpack.c.l.b16 %v3420
    %v3979 = vunpack.c.l.b16 %v3421
    %v3980 = vunpack.c.h.b16 %v3421
    %v3981 = vunpack.c.l.b16 %v3422
    %v3982 = vunpack.c.h.b16 %v3422
    %v3983 = vunpack.c.l.b16 %v3423
    %v3984 = vunpack.c.h.b16 %v3423
    %v3985 = vunpack.c.l.b16 %v3424
    %v3986 = vunpack.c.l.b16 %v3425
    %v3987 = vunpack.c.h.b16 %v3425
    %v3988 = vunpack.c.l.b16 %v3426
    %v3989 = vunpack.c.h.b16 %v3426
    %v3990 = vunpack.c.l.b16 %v3427
    %v3991 = vunpack.c.h.b16 %v3427
    %v3992 = vunpack.c.l.b16 %v3428
    %v3993 = vunpack.c.l.b16 %v3429
    %v3994 = vunpack.c.h.b16 %v3429
    %v3995 = vunpack.c.l.b16 %v3430
    %v3996 = vunpack.c.h.b16 %v3430
    %v3997 = vunpack.c.l.b16 %v3431
    %v3998 = vunpack.c.h.b16 %v3431
    %v3999 = vunpack.c.l.b16 %v3432
    %v4000 = vunpack.c.l.b16 %v3433
    %v4001 = vunpack.c.h.b16 %v3433
    %v4002 = vunpack.c.l.b16 %v3434
    %v4003 = vunpack.c.h.b16 %v3434
    %v4004 = vunpack.c.l.b16 %v3435
    %v4005 = vunpack.c.h.b16 %v3435
    %v4006 = vunpack.c.l.b16 %v3436
    %v4007 = vunpack.c.l.b16 %v3437
    %v4008 = vunpack.c.h.b16 %v3437
    %v4009 = vunpack.c.l.b16 %v3438
    %v4010 = vunpack.c.h.b16 %v3438
    %v4011 = vunpack.c.l.b16 %v3439
    %v4012 = vunpack.c.h.b16 %v3439
    %v4013 = vunpack.c.l.b16 %v3440
    %v4014 = vunpack.c.l.b16 %v3441
    %v4015 = vunpack.c.h.b16 %v3441
    %v4016 = vunpack.c.l.b16 %v3442
    %v4017 = vunpack.c.h.b16 %v3442
    %v4018 = vunpack.c.l.b16 %v3443
    %v4019 = vunpack.c.h.b16 %v3443
    %v4020 = vunpack.c.l.b16 %v3444
    %v4021 = vunpack.c.l.b16 %v3445
    %v4022 = vunpack.c.h.b16 %v3445
    %v4023 = vunpack.c.l.b16 %v3446
    %v4024 = vunpack.c.h.b16 %v3446
    %v4025 = vunpack.c.l.b16 %v3447
    %v4026 = vunpack.c.h.b16 %v3447
    %v4027 = vunpack.c.l.b16 %v3448
    %v4028 = vunpack.c.l.b16 %v3449
    %v4029 = vunpack.c.h.b16 %v3449
    %v4030 = vunpack.c.l.b16 %v3450
    %v4031 = vunpack.c.h.b16 %v3450
    %v4032 = vunpack.c.l.b16 %v3451
    %v4033 = vunpack.c.h.b16 %v3451
    %v4034 = vunpack.c.l.b16 %v3452
    %v4035 = vunpack.c.l.b16 %v3453
    %v4036 = vunpack.c.h.b16 %v3453
    %v4037 = vunpack.c.l.b16 %v3454
    %v4038 = vunpack.c.h.b16 %v3454
    %v4039 = vunpack.c.l.b16 %v3455
    %v4040 = vunpack.c.h.b16 %v3455
    %v4041 = vunpack.c.l.b16 %v3456
    %v4042 = vunpack.c.l.b16 %v3457
    %v4043 = vunpack.c.h.b16 %v3457
    %v4044 = vunpack.c.l.b16 %v3458
    %v4045 = vunpack.c.h.b16 %v3458
    %v4046 = vunpack.c.l.b16 %v3459
    %v4047 = vunpack.c.h.b16 %v3459
    %v4048 = vunpack.c.l.b16 %v3460
    %v4049 = vunpack.c.l.b16 %v3461
    %v4050 = vunpack.c.h.b16 %v3461
    %v4051 = vunpack.c.l.b16 %v3462
    %v4052 = vunpack.c.h.b16 %v3462
    %v4053 = vunpack.c.l.b16 %v3463
    %v4054 = vunpack.c.h.b16 %v3463
    %v4055 = vunpack.c.l.b16 %v3464
    %v4056 = vunpack.c.l.b16 %v3465
    %v4057 = vunpack.c.h.b16 %v3465
    %v4058 = vunpack.c.l.b16 %v3466
    %v4059 = vunpack.c.h.b16 %v3466
    %v4060 = vunpack.c.l.b16 %v3467
    %v4061 = vunpack.c.h.b16 %v3467
    %v4062 = vunpack.c.l.b16 %v3468
    %v4063 = vunpack.c.l.b16 %v3469
    %v4064 = vunpack.c.h.b16 %v3469
    %v4065 = vunpack.c.l.b16 %v3470
    %v4066 = vunpack.c.h.b16 %v3470
    %v4067 = vunpack.c.l.b16 %v3471
    %v4068 = vunpack.c.h.b16 %v3471
    %v4069 = vunpack.c.l.b16 %v3472
    %v4070 = vunpack.c.l.b16 %v3473
    %v4071 = vunpack.c.h.b16 %v3473
    %v4072 = vunpack.c.l.b16 %v3474
    %v4073 = vunpack.c.h.b16 %v3474
    %v4074 = vunpack.c.l.b16 %v3475
    %v4075 = vunpack.c.h.b16 %v3475
    %v4076 = vunpack.c.l.b16 %v3476
    %v4077 = vunpack.c.l.b16 %v3477
    %v4078 = vunpack.c.h.b16 %v3477
    %v4079 = vunpack.c.l.b16 %v3478
    %v4080 = vunpack.c.h.b16 %v3478
    %v4081 = vunpack.c.l.b16 %v3479
    %v4082 = vunpack.c.h.b16 %v3479
    %v4083 = vunpack.c.l.b16 %v3480
    %v4084 = vunpack.c.l.b16 %v3481
    %v4085 = vunpack.c.h.b16 %v3481
    %v4086 = vunpack.c.l.b16 %v3482
    %v4087 = vunpack.c.h.b16 %v3482
    %v4088 = vunpack.c.l.b16 %v3483
    %v4089 = vunpack.c.h.b16 %v3483
    %v4090 = vunpack.c.l.b16 %v3484
    %v4091 = vunpack.c.l.b16 %v3485
    %v4092 = vunpack.c.h.b16 %v3485
    %v4093 = vunpack.c.l.b16 %v3486
    %v4094 = vunpack.c.h.b16 %v3486
    %v4095 = vunpack.c.l.b16 %v3487
    %v4096 = vunpack.c.h.b16 %v3487
    %v4097 = vunpack.c.l.b16 %v3488
    %v4098 = vunpack.c.l.b16 %v3489
    %v4099 = vunpack.c.h.b16 %v3489
    %v4100 = vunpack.c.l.b16 %v3490
    %v4101 = vunpack.c.h.b16 %v3490
    %v4102 = vunpack.c.l.b16 %v3491
    %v4103 = vunpack.c.h.b16 %v3491
    %v4104 = vunpack.c.l.b16 %v3492
    %v4105 = vunpack.c.l.b16 %v3493
    %v4106 = vunpack.c.h.b16 %v3493
    %v4107 = vunpack.c.l.b16 %v3494
    %v4108 = vunpack.c.h.b16 %v3494
    %v4109 = vunpack.c.l.b16 %v3495
    %v4110 = vunpack.c.h.b16 %v3495
    %v4111 = vunpack.c.l.b16 %v3496
    %v4112 = vunpack.c.l.b16 %v3497
    %v4113 = vunpack.c.h.b16 %v3497
    %v4114 = vunpack.c.l.b16 %v3498
    %v4115 = vunpack.c.h.b16 %v3498
    %v4116 = vunpack.c.l.b16 %v3499
    %v4117 = vunpack.c.h.b16 %v3499
    %v4118 = vunpack.c.l.b16 %v3500
    %v4119 = vunpack.c.l.b16 %v3501
    %v4120 = vunpack.c.h.b16 %v3501
    %v4121 = vunpack.c.l.b16 %v3502
    %v4122 = vunpack.c.h.b16 %v3502
    %v4123 = vunpack.c.l.b16 %v3503
    %v4124 = vunpack.c.h.b16 %v3503
    %v4125 = vunpack.c.l.b16 %v3504
    %v4126 = vunpack.c.l.b16 %v3505
    %v4127 = vunpack.c.h.b16 %v3505
    %v4128 = vunpack.c.l.b16 %v3506
    %v4129 = vunpack.c.h.b16 %v3506
    %v4130 = vunpack.c.l.b16 %v3507
    %v4131 = vunpack.c.h.b16 %v3507
    %v4132 = vunpack.c.l.b16 %v3508
    %v4133 = vunpack.c.l.b16 %v3509
    %v4134 = vunpack.c.h.b16 %v3509
    %v4135 = vunpack.c.l.b16 %v3510
    %v4136 = vunpack.c.h.b16 %v3510
    %v4137 = vunpack.c.l.b16 %v3511
    %v4138 = vunpack.c.h.b16 %v3511
    %v4139 = vunpack.c.l.b16 %v3512
    %v4140 = vunpack.c.l.b16 %v3513
    %v4141 = vunpack.c.h.b16 %v3513
    %v4142 = vunpack.c.l.b16 %v3514
    %v4143 = vunpack.c.h.b16 %v3514
    %v4144 = vunpack.c.l.b16 %v3515
    %v4145 = vunpack.c.h.b16 %v3515
    %v4146 = vunpack.c.l.b16 %v3516
    %v4147 = vunpack.c.l.b16 %v3517
    %v4148 = vunpack.c.h.b16 %v3517
    %v4149 = vunpack.c.l.b16 %v3518
    %v4150 = vunpack.c.h.b16 %v3518
    %v4151 = vunpack.c.l.b16 %v3519
    %v4152 = vunpack.c.h.b16 %v3519
    %v4153 = vunpack.c.l.b16 %v3520
    %v4154 = vunpack.c.l.b16 %v3521
    %v4155 = vunpack.c.h.b16 %v3521
    %v4156 = vunpack.c.l.b16 %v3522
    %v4157 = vunpack.c.h.b16 %v3522
    %v4158 = vunpack.c.l.b16 %v3523
    %v4159 = vunpack.c.h.b16 %v3523
    %v4160 = vunpack.c.l.b16 %v3524
    %v4161 = vunpack.c.l.b16 %v3525
    %v4162 = vunpack.c.h.b16 %v3525
    %v4163 = vunpack.c.l.b16 %v3526
    %v4164 = vunpack.c.h.b16 %v3526
    %v4165 = vunpack.c.l.b16 %v3527
    %v4166 = vunpack.c.h.b16 %v3527
    %v4167 = vunpack.c.l.b16 %v3528
    %v4168 = vunpack.c.l.b16 %v3529
    %v4169 = vunpack.c.h.b16 %v3529
    %v4170 = vunpack.c.l.b16 %v3530
    %v4171 = vunpack.c.h.b16 %v3530
    %v4172 = vunpack.c.l.b16 %v3531
    %v4173 = vunpack.c.h.b16 %v3531
    %v4174 = vunpack.c.l.b16 %v3532
    %v4175 = vunpack.c.l.b16 %v3533
    %v4176 = vunpack.c.h.b16 %v3533
    %v4177 = vunpack.c.l.b16 %v3534
    %v4178 = vunpack.c.h.b16 %v3534
    %v4179 = vunpack.c.l.b16 %v3535
    %v4180 = vunpack.c.h.b16 %v3535
    %v4181 = vunpack.c.l.b16 %v3536
    %v4182 = vunpack.c.l.b16 %v3537
    %v4183 = vunpack.c.h.b16 %v3537
    %v4184 = vunpack.c.l.b16 %v3538
    %v4185 = vunpack.c.h.b16 %v3538
    %v4186 = vunpack.c.l.b16 %v3539
    %v4187 = vunpack.c.h.b16 %v3539
    %v4188 = vunpack.c.l.b16 %v3540
    %v4189 = vunpack.c.l.b16 %v3541
    %v4190 = vunpack.c.h.b16 %v3541
    %v4191 = vunpack.c.l.b16 %v3542
    %v4192 = vunpack.c.h.b16 %v3542
    %v4193 = vunpack.c.l.b16 %v3543
    %v4194 = vunpack.c.h.b16 %v3543
    %v4195 = vunpack.c.l.b16 %v3544
    %v4196 = vunpack.c.l.b16 %v3545
    %v4197 = vunpack.c.h.b16 %v3545
    %v4198 = vunpack.c.l.b16 %v3546
    %v4199 = vunpack.c.h.b16 %v3546
    %v4200 = vunpack.c.l.b16 %v3547
    %v4201 = vunpack.c.h.b16 %v3547
    %v4202 = vunpack.c.l.b16 %v3548
    %v4203 = vunpack.c.l.b16 %v3549
    %v4204 = vunpack.c.h.b16 %v3549
    %v4205 = vunpack.c.l.b16 %v3550
    %v4206 = vunpack.c.h.b16 %v3550
    %v4207 = vunpack.c.l.b16 %v3551
    %v4208 = vunpack.c.h.b16 %v3551
    %v4209 = vunpack.c.l.b16 %v3552
    %v4210 = vunpack.c.l.b16 %v3553
    %v4211 = vunpack.c.h.b16 %v3553
    %v4212 = vunpack.c.l.b16 %v3554
    %v4213 = vunpack.c.h.b16 %v3554
    %v4214 = vunpack.c.l.b16 %v3555
    %v4215 = vunpack.c.h.b16 %v3555
    %v4216 = vunpack.c.l.b16 %v3556
    %v4217 = vunpack.c.l.b16 %v3557
    %v4218 = vunpack.c.h.b16 %v3557
    %v4219 = vunpack.c.l.b16 %v3558
    %v4220 = vunpack.c.h.b16 %v3558
    %v4221 = vunpack.c.l.b16 %v3559
    %v4222 = vunpack.c.h.b16 %v3559
    %v4223 = vunpack.c.l.b16 %v3560
    %v4224 = vunpack.c.l.b16 %v3561
    %v4225 = vunpack.c.h.b16 %v3561
    %v4226 = vunpack.c.l.b16 %v3562
    %v4227 = vunpack.c.h.b16 %v3562
    %v4228 = vunpack.c.l.b16 %v3563
    %v4229 = vunpack.c.h.b16 %v3563
    %v4230 = vunpack.c.l.b16 %v3564
    %v4231 = vunpack.c.l.b16 %v3565
    %v4232 = vunpack.c.h.b16 %v3565
    %v4233 = vunpack.c.l.b16 %v3566
    %v4234 = vunpack.c.h.b16 %v3566
    %v4235 = vunpack.c.l.b16 %v3567
    %v4236 = vunpack.c.h.b16 %v3567
    %v4237 = vunpack.c.l.b16 %v3568
    %v4238 = vunpack.c.l.b16 %v3569
    %v4239 = vunpack.c.h.b16 %v3569
    %v4240 = vunpack.c.l.b16 %v3570
    %v4241 = vunpack.c.h.b16 %v3570
    %v4242 = vunpack.c.l.b16 %v3571
    %v4243 = vunpack.c.h.b16 %v3571
    %v4244 = vunpack.c.l.b16 %v3572
    %v4245 = vunpack.c.l.b16 %v3573
    %v4246 = vunpack.c.h.b16 %v3573
    %v4247 = vunpack.c.l.b16 %v3574
    %v4248 = vunpack.c.h.b16 %v3574
    %v4249 = vunpack.c.l.b16 %v3575
    %v4250 = vunpack.c.h.b16 %v3575
    %v4251 = vunpack.c.l.b16 %v3576
    %v4252 = vunpack.c.l.b16 %v3577
    %v4253 = vunpack.c.h.b16 %v3577
    %v4254 = vunpack.c.l.b16 %v3578
    %v4255 = vunpack.c.h.b16 %v3578
    %v4256 = vunpack.c.l.b16 %v3579
    %v4257 = vunpack.c.h.b16 %v3579
    %v4258 = vunpack.c.l.b16 %v3580
    %v4259 = vunpack.c.l.b16 %v3581
    %v4260 = vunpack.c.h.b16 %v3581
    %v4261 = vunpack.c.l.b16 %v3582
    %v4262 = vunpack.c.h.b16 %v3582
    %v4263 = vunpack.c.l.b16 %v3583
    %v4264 = vunpack.c.h.b16 %v3583
    %v4265 = vunpack.c.l.b16 %v3584
    %v4266 = vunpack.c.l.b16 %v3585
    %v4267 = vunpack.c.h.b16 %v3585
    %v4268 = vunpack.c.l.b16 %v3586
    %v4269 = vunpack.c.h.b16 %v3586
    %v4270 = vunpack.c.l.b16 %v3587
    %v4271 = vunpack.c.h.b16 %v3587
    %v4272 = vunpack.c.l.b16 %v3588
    %v4273 = vunpack.c.l.b16 %v3589
    %v4274 = vunpack.c.h.b16 %v3589
    %v4275 = vunpack.c.l.b16 %v3590
    %v4276 = vunpack.c.h.b16 %v3590
    %v4277 = vunpack.c.l.b16 %v3591
    %v4278 = vunpack.c.h.b16 %v3591
    %v4279 = vunpack.c.l.b16 %v3592
    %v4280 = vunpack.c.l.b16 %v3593
    %v4281 = vunpack.c.h.b16 %v3593
    %v4282 = vunpack.c.l.b16 %v3594
    %v4283 = vunpack.c.h.b16 %v3594
    %v4284 = vunpack.c.l.b16 %v3595
    %v4285 = vunpack.c.h.b16 %v3595
    %v4286 = vunpack.c.l.b16 %v3596
    %v4287 = vunpack.c.l.b16 %v3597
    %v4288 = vunpack.c.h.b16 %v3597
    %v4289 = vunpack.c.l.b16 %v3598
    %v4290 = vunpack.c.h.b16 %v3598
    %v4291 = vunpack.c.l.b16 %v3599
    %v4292 = vunpack.c.h.b16 %v3599
    %v4293 = vunpack.c.l.b16 %v3600
    %v4294 = vunpack.c.l.b16 %v3601
    %v4295 = vunpack.c.h.b16 %v3601
    %v4296 = vunpack.c.l.b16 %v3602
    %v4297 = vunpack.c.h.b16 %v3602
    %v4298 = vunpack.c.l.b16 %v3603
    %v4299 = vunpack.c.h.b16 %v3603
    %v4300 = vunpack.c.l.b16 %v3604
    %v4301 = vunpack.c.l.b16 %v3605
    %v4302 = vunpack.c.h.b16 %v3605
    %v4303 = vunpack.c.l.b16 %v3606
    %v4304 = vunpack.c.h.b16 %v3606
    %v4305 = vunpack.c.l.b16 %v3607
    %v4306 = vunpack.c.h.b16 %v3607
    %v4307 = vunpack.c.l.b16 %v3608
    %v4308 = vunpack.c.l.b16 %v3609
    %v4309 = vunpack.c.h.b16 %v3609
    %v4310 = vunpack.c.l.b16 %v3610
    %v4311 = vunpack.c.h.b16 %v3610
    %v4312 = vunpack.c.l.b16 %v3611
    %v4313 = vunpack.c.h.b16 %v3611
    %v4314 = vunpack.c.l.b16 %v3612
    %v4315 = vunpack.c.l.b16 %v3613
    %v4316 = vunpack.c.h.b16 %v3613
    %v4317 = vunpack.c.l.b16 %v3614
    %v4318 = vunpack.c.h.b16 %v3614
    %v4319 = vunpack.c.l.b16 %v3615
    %v4320 = vunpack.c.h.b16 %v3615
    %v4321 = vunpack.c.l.b16 %v3616
    %v4322 = vunpack.c.l.b16 %v3617
    %v4323 = vunpack.c.h.b16 %v3617
    %v4324 = vunpack.c.l.b16 %v3618
    %v4325 = vunpack.c.h.b16 %v3618
    %v4326 = vunpack.c.l.b16 %v3619
    %v4327 = vunpack.c.h.b16 %v3619
    %v4328 = vunpack.c.l.b16 %v3620
    %v4329 = vunpack.c.l.b16 %v3621
    %v4330 = vunpack.c.h.b16 %v3621
    %v4331 = vunpack.c.l.b16 %v3622
    %v4332 = vunpack.c.h.b16 %v3622
    %v4333 = vunpack.c.l.b16 %v3623
    %v4334 = vunpack.c.h.b16 %v3623
    %v4335 = vunpack.c.l.b16 %v3624
    %v4336 = vunpack.c.l.b16 %v3625
    %v4337 = vunpack.c.h.b16 %v3625
    %v4338 = vunpack.c.l.b16 %v3626
    %v4339 = vunpack.c.h.b16 %v3626
    %v4340 = vunpack.c.l.b16 %v3627
    %v4341 = vunpack.c.h.b16 %v3627
    %v4342 = vunpack.c.l.b16 %v3628
    %v4343 = vunpack.c.l.b16 %v3629
    %v4344 = vunpack.c.h.b16 %v3629
    %v4345 = vunpack.c.l.b16 %v3630
    %v4346 = vunpack.c.h.b16 %v3630
    %v4347 = vunpack.c.l.b16 %v3631
    %v4348 = vunpack.c.h.b16 %v3631
    %v4349 = vunpack.c.l.b16 %v3632
    %v4350 = vunpack.c.l.b16 %v3633
    %v4351 = vunpack.c.h.b16 %v3633
    %v4352 = vunpack.c.l.b16 %v3634
    %v4353 = vunpack.c.h.b16 %v3634
    %v4354 = vunpack.c.l.b16 %v3635
    %v4355 = vunpack.c.h.b16 %v3635
    %v4356 = vunpack.c.l.b16 %v3636
    %v4357 = vpack.c.b16 %v3916, %v3909
    %v4358 = vpack.c.b16 %v3917, %v3910
    %v4359 = vpack.c.b16 %v3918, %v3911
    %v4360 = vpack.c.b16 %v3919, %v3912
    %v4361 = vpack.c.b16 %v3920, %v3913
    %v4362 = vpack.c.b16 %v3921, %v3914
    %v4363 = vpack.c.b16 %v3922, %v3915
    %v4364 = vpack.c.b16 %v3930, %v3923
    %v4365 = vpack.c.b16 %v3931, %v3924
    %v4366 = vpack.c.b16 %v3932, %v3925
    %v4367 = vpack.c.b16 %v3933, %v3926
    %v4368 = vpack.c.b16 %v3934, %v3927
    %v4369 = vpack.c.b16 %v3935, %v3928
    %v4370 = vpack.c.b16 %v3936, %v3929
    %v4371 = vpack.c.b16 %v3944, %v3937
    %v4372 = vpack.c.b16 %v3945, %v3938
    %v4373 = vpack.c.b16 %v3946, %v3939
    %v4374 = vpack.c.b16 %v3947, %v3940
    %v4375 = vpack.c.b16 %v3948, %v3941
    %v4376 = vpack.c.b16 %v3949, %v3942
    %v4377 = vpack.c.b16 %v3950, %v3943
    %v4378 = vpack.c.b16 %v3958, %v3951
    %v4379 = vpack.c.b16 %v3959, %v3952
    %v4380 = vpack.c.b16 %v3960, %v3953
    %v4381 = vpack.c.b16 %v3961, %v3954
    %v4382 = vpack.c.b16 %v3962, %v3955
    %v4383 = vpack.c.b16 %v3963, %v3956
    %v4384 = vpack.c.b16 %v3964, %v3957
    %v4385 = vpack.c.b16 %v3972, %v3965
    %v4386 = vpack.c.b16 %v3973, %v3966
    %v4387 = vpack.c.b16 %v3974, %v3967
    %v4388 = vpack.c.b16 %v3975, %v3968
    %v4389 = vpack.c.b16 %v3976, %v3969
    %v4390 = vpack.c.b16 %v3977, %v3970
    %v4391 = vpack.c.b16 %v3978, %v3971
    %v4392 = vpack.c.b16 %v3986, %v3979
    %v4393 = vpack.c.b16 %v3987, %v3980
    %v4394 = vpack.c.b16 %v3988, %v3981
    %v4395 = vpack.c.b16 %v3989, %v3982
    %v4396 = vpack.c.b16 %v3990, %v3983
    %v4397 = vpack.c.b16 %v3991, %v3984
    %v4398 = vpack.c.b16 %v3992, %v3985
    %v4399 = vpack.c.b16 %v4000, %v3993
    %v4400 = vpack.c.b16 %v4001, %v3994
    %v4401 = vpack.c.b16 %v4002, %v3995
    %v4402 = vpack.c.b16 %v4003, %v3996
    %v4403 = vpack.c.b16 %v4004, %v3997
    %v4404 = vpack.c.b16 %v4005, %v3998
    %v4405 = vpack.c.b16 %v4006, %v3999
    %v4406 = vpack.c.b16 %v4014, %v4007
    %v4407 = vpack.c.b16 %v4015, %v4008
    %v4408 = vpack.c.b16 %v4016, %v4009
    %v4409 = vpack.c.b16 %v4017, %v4010
    %v4410 = vpack.c.b16 %v4018, %v4011
    %v4411 = vpack.c.b16 %v4019, %v4012
    %v4412 = vpack.c.b16 %v4020, %v4013
    %v4413 = vpack.c.b16 %v4028, %v4021
    %v4414 = vpack.c.b16 %v4029, %v4022
    %v4415 = vpack.c.b16 %v4030, %v4023
    %v4416 = vpack.c.b16 %v4031, %v4024
    %v4417 = vpack.c.b16 %v4032, %v4025
    %v4418 = vpack.c.b16 %v4033, %v4026
    %v4419 = vpack.c.b16 %v4034, %v4027
    %v4420 = vpack.c.b16 %v4042, %v4035
    %v4421 = vpack.c.b16 %v4043, %v4036
    %v4422 = vpack.c.b16 %v4044, %v4037
    %v4423 = vpack.c.b16 %v4045, %v4038
    %v4424 = vpack.c.b16 %v4046, %v4039
    %v4425 = vpack.c.b16 %v4047, %v4040
    %v4426 = vpack.c.b16 %v4048, %v4041
    %v4427 = vpack.c.b16 %v4056, %v4049
    %v4428 = vpack.c.b16 %v4057, %v4050
    %v4429 = vpack.c.b16 %v4058, %v4051
    %v4430 = vpack.c.b16 %v4059, %v4052
    %v4431 = vpack.c.b16 %v4060, %v4053
    %v4432 = vpack.c.b16 %v4061, %v4054
    %v4433 = vpack.c.b16 %v4062, %v4055
    %v4434 = vpack.c.b16 %v4070, %v4063
    %v4435 = vpack.c.b16 %v4071, %v4064
    %v4436 = vpack.c.b16 %v4072, %v4065
    %v4437 = vpack.c.b16 %v4073, %v4066
    %v4438 = vpack.c.b16 %v4074, %v4067
    %v4439 = vpack.c.b16 %v4075, %v4068
    %v4440 = vpack.c.b16 %v4076, %v4069
    %v4441 = vpack.c.b16 %v4084, %v4077
    %v4442 = vpack.c.b16 %v4085, %v4078
    %v4443 = vpack.c.b16 %v4086, %v4079
    %v4444 = vpack.c.b16 %v4087, %v4080
    %v4445 = vpack.c.b16 %v4088, %v4081
    %v4446 = vpack.c.b16 %v4089, %v4082
    %v4447 = vpack.c.b16 %v4090, %v4083
    %v4448 = vpack.c.b16 %v4098, %v4091
    %v4449 = vpack.c.b16 %v4099, %v4092
    %v4450 = vpack.c.b16 %v4100, %v4093
    %v4451 = vpack.c.b16 %v4101, %v4094
    %v4452 = vpack.c.b16 %v4102, %v4095
    %v4453 = vpack.c.b16 %v4103, %v4096
    %v4454 = vpack.c.b16 %v4104, %v4097
    %v4455 = vpack.c.b16 %v4112, %v4105
    %v4456 = vpack.c.b16 %v4113, %v4106
    %v4457 = vpack.c.b16 %v4114, %v4107
    %v4458 = vpack.c.b16 %v4115, %v4108
    %v4459 = vpack.c.b16 %v4116, %v4109
    %v4460 = vpack.c.b16 %v4117, %v4110
    %v4461 = vpack.c.b16 %v4118, %v4111
    %v4462 = vpack.c.b16 %v4126, %v4119
    %v4463 = vpack.c.b16 %v4127, %v4120
    %v4464 = vpack.c.b16 %v4128, %v4121
    %v4465 = vpack.c.b16 %v4129, %v4122
    %v4466 = vpack.c.b16 %v4130, %v4123
    %v4467 = vpack.c.b16 %v4131, %v4124
    %v4468 = vpack.c.b16 %v4132, %v4125
    %v4469 = vpack.c.b16 %v4140, %v4133
    %v4470 = vpack.c.b16 %v4141, %v4134
    %v4471 = vpack.c.b16 %v4142, %v4135
    %v4472 = vpack.c.b16 %v4143, %v4136
    %v4473 = vpack.c.b16 %v4144, %v4137
    %v4474 = vpack.c.b16 %v4145, %v4138
    %v4475 = vpack.c.b16 %v4146, %v4139
    %v4476 = vpack.c.b16 %v4154, %v4147
    %v4477 = vpack.c.b16 %v4155, %v4148
    %v4478 = vpack.c.b16 %v4156, %v4149
    %v4479 = vpack.c.b16 %v4157, %v4150
    %v4480 = vpack.c.b16 %v4158, %v4151
    %v4481 = vpack.c.b16 %v4159, %v4152
    %v4482 = vpack.c.b16 %v4160, %v4153
    %v4483 = vpack.c.b16 %v4168, %v4161
    %v4484 = vpack.c.b16 %v4169, %v4162
    %v4485 = vpack.c.b16 %v4170, %v4163
    %v4486 = vpack.c.b16 %v4171, %v4164
    %v4487 = vpack.c.b16 %v4172, %v4165
    %v4488 = vpack.c.b16 %v4173, %v4166
    %v4489 = vpack.c.b16 %v4174, %v4167
    %v4490 = vpack.c.b16 %v4182, %v4175
    %v4491 = vpack.c.b16 %v4183, %v4176
    %v4492 = vpack.c.b16 %v4184, %v4177
    %v4493 = vpack.c.b16 %v4185, %v4178
    %v4494 = vpack.c.b16 %v4186, %v4179
    %v4495 = vpack.c.b16 %v4187, %v4180
    %v4496 = vpack.c.b16 %v4188, %v4181
    %v4497 = vpack.c.b16 %v4196, %v4189
    %v4498 = vpack.c.b16 %v4197, %v4190
    %v4499 = vpack.c.b16 %v4198, %v4191
    %v4500 = vpack.c.b16 %v4199, %v4192
    %v4501 = vpack.c.b16 %v4200, %v4193
    %v4502 = vpack.c.b16 %v4201, %v4194
    %v4503 = vpack.c.b16 %v4202, %v4195
    %v4504 = vpack.c.b16 %v4210, %v4203
    %v4505 = vpack.c.b16 %v4211, %v4204
    %v4506 = vpack.c.b16 %v4212, %v4205
    %v4507 = vpack.c.b16 %v4213, %v4206
    %v4508 = vpack.c.b16 %v4214, %v4207
    %v4509 = vpack.c.b16 %v4215, %v4208
    %v4510 = vpack.c.b16 %v4216, %v4209
    %v4511 = vpack.c.b16 %v4224, %v4217
    %v4512 = vpack.c.b16 %v4225, %v4218
    %v4513 = vpack.c.b16 %v4226, %v4219
    %v4514 = vpack.c.b16 %v4227, %v4220
    %v4515 = vpack.c.b16 %v4228, %v4221
    %v4516 = vpack.c.b16 %v4229, %v4222
    %v4517 = vpack.c.b16 %v4230, %v4223
    %v4518 = vpack.c.b16 %v4238, %v4231
    %v4519 = vpack.c.b16 %v4239, %v4232
    %v4520 = vpack.c.b16 %v4240, %v4233
    %v4521 = vpack.c.b16 %v4241, %v4234
    %v4522 = vpack.c.b16 %v4242, %v4235
    %v4523 = vpack.c.b16 %v4243, %v4236
    %v4524 = vpack.c.b16 %v4244, %v4237
    %v4525 = vpack.c.b16 %v4252, %v4245
    %v4526 = vpack.c.b16 %v4253, %v4246
    %v4527 = vpack.c.b16 %v4254, %v4247
    %v4528 = vpack.c.b16 %v4255, %v4248
    %v4529 = vpack.c.b16 %v4256, %v4249
    %v4530 = vpack.c.b16 %v4257, %v4250
    %v4531 = vpack.c.b16 %v4258, %v4251
    %v4532 = vpack.c.b16 %v4266, %v4259
    %v4533 = vpack.c.b16 %v4267, %v4260
    %v4534 = vpack.c.b16 %v4268, %v4261
    %v4535 = vpack.c.b16 %v4269, %v4262
    %v4536 = vpack.c.b16 %v4270, %v4263
    %v4537 = vpack.c.b16 %v4271, %v4264
    %v4538 = vpack.c.b16 %v4272, %v4265
    %v4539 = vpack.c.b16 %v4280, %v4273
    %v4540 = vpack.c.b16 %v4281, %v4274
    %v4541 = vpack.c.b16 %v4282, %v4275
    %v4542 = vpack.c.b16 %v4283, %v4276
    %v4543 = vpack.c.b16 %v4284, %v4277
    %v4544 = vpack.c.b16 %v4285, %v4278
    %v4545 = vpack.c.b16 %v4286, %v4279
    %v4546 = vpack.c.b16 %v4294, %v4287
    %v4547 = vpack.c.b16 %v4295, %v4288
    %v4548 = vpack.c.b16 %v4296, %v4289
    %v4549 = vpack.c.b16 %v4297, %v4290
    %v4550 = vpack.c.b16 %v4298, %v4291
    %v4551 = vpack.c.b16 %v4299, %v4292
    %v4552 = vpack.c.b16 %v4300, %v4293
    %v4553 = vpack.c.b16 %v4308, %v4301
    %v4554 = vpack.c.b16 %v4309, %v4302
    %v4555 = vpack.c.b16 %v4310, %v4303
    %v4556 = vpack.c.b16 %v4311, %v4304
    %v4557 = vpack.c.b16 %v4312, %v4305
    %v4558 = vpack.c.b16 %v4313, %v4306
    %v4559 = vpack.c.b16 %v4314, %v4307
    %v4560 = vpack.c.b16 %v4322, %v4315
    %v4561 = vpack.c.b16 %v4323, %v4316
    %v4562 = vpack.c.b16 %v4324, %v4317
    %v4563 = vpack.c.b16 %v4325, %v4318
    %v4564 = vpack.c.b16 %v4326, %v4319
    %v4565 = vpack.c.b16 %v4327, %v4320
    %v4566 = vpack.c.b16 %v4328, %v4321
    %v4567 = vpack.c.b16 %v4336, %v4329
    %v4568 = vpack.c.b16 %v4337, %v4330
    %v4569 = vpack.c.b16 %v4338, %v4331
    %v4570 = vpack.c.b16 %v4339, %v4332
    %v4571 = vpack.c.b16 %v4340, %v4333
    %v4572 = vpack.c.b16 %v4341, %v4334
    %v4573 = vpack.c.b16 %v4342, %v4335
    %v4574 = vpack.c.b16 %v4350, %v4343
    %v4575 = vpack.c.b16 %v4351, %v4344
    %v4576 = vpack.c.b16 %v4352, %v4345
    %v4577 = vpack.c.b16 %v4353, %v4346
    %v4578 = vpack.c.b16 %v4354, %v4347
    %v4579 = vpack.c.b16 %v4355, %v4348
    %v4580 = vpack.c.b16 %v4356, %v4349
    %4805 = vmatpush.bf16.msra.mxu0 %v4406
    %4806 = vmatpush.bf16.msra.mxu0 %v4399
    %4807 = vmatpush.bf16.msra.mxu0 %v4392
    %4808 = vmatpush.bf16.msra.mxu0 %v4385
    %4809 = vmatpush.bf16.msra.mxu0 %v4378
    %4810 = vmatpush.bf16.msra.mxu0 %v4371
    %4811 = vmatpush.bf16.msra.mxu0 %v4364
    %4812 = vmatpush.bf16.msra.mxu0 %v4357
    %4813 = vmatmul.bf16.gmra.mxu0 %v3377
    %v4814 = vpop.f32.mrf.mxu0
    %v4815 = vadd.f32 %v3639, %v4814
    %v4816 = vpop.f32.mrf.mxu0
    %4817 = vdwg.mxu0
    %4818 = vmatpush.bf16.msra.mxu0 %v4462
    %4819 = vmatpush.bf16.msra.mxu0 %v4455
    %4820 = vmatpush.bf16.msra.mxu0 %v4448
    %4821 = vmatpush.bf16.msra.mxu0 %v4441
    %4822 = vmatpush.bf16.msra.mxu0 %v4434
    %4823 = vmatpush.bf16.msra.mxu0 %v4427
    %4824 = vmatpush.bf16.msra.mxu0 %v4420
    %4825 = vmatpush.bf16.msra.mxu0 %v4413
    %4826 = vmatmul.bf16.gmra.mxu0 %v3378
    %v4827 = vpop.f32.mrf.mxu0
    %v4828 = vadd.f32 %v4815, %v4827
    %v4829 = vpop.f32.mrf.mxu0
    %4830 = vdwg.mxu0
    %4831 = vmatpush.bf16.msra.mxu0 %v4518
    %4832 = vmatpush.bf16.msra.mxu0 %v4511
    %4833 = vmatpush.bf16.msra.mxu0 %v4504
    %4834 = vmatpush.bf16.msra.mxu0 %v4497
    %4835 = vmatpush.bf16.msra.mxu0 %v4490
    %4836 = vmatpush.bf16.msra.mxu0 %v4483
    %4837 = vmatpush.bf16.msra.mxu0 %v4476
    %4838 = vmatpush.bf16.msra.mxu0 %v4469
    %4839 = vmatmul.bf16.gmra.mxu0 %v3379
    %v4840 = vpop.f32.mrf.mxu0
    %v4841 = vadd.f32 %v4828, %v4840
    %v4842 = vpop.f32.mrf.mxu0
    %4843 = vdwg.mxu0
    %4844 = vmatpush.bf16.msra.mxu0 %v4574
    %4845 = vmatpush.bf16.msra.mxu0 %v4567
    %4846 = vmatpush.bf16.msra.mxu0 %v4560
    %4847 = vmatpush.bf16.msra.mxu0 %v4553
    %4848 = vmatpush.bf16.msra.mxu0 %v4546
    %4849 = vmatpush.bf16.msra.mxu0 %v4539
    %4850 = vmatpush.bf16.msra.mxu0 %v4532
    %4851 = vmatpush.bf16.msra.mxu0 %v4525
    %4852 = vmatmul.bf16.gmra.mxu0 %v3380
    %v4853 = vpop.f32.mrf.mxu0
    %v4854 = vadd.f32 %v4841, %v4853
    %v4855 = vpop.f32.mrf.mxu0
    %4856 = vdwg.mxu0
    %4857 = vmatpush.bf16.msra.mxu0 %v4407
    %4858 = vmatpush.bf16.msra.mxu0 %v4400
    %4859 = vmatpush.bf16.msra.mxu0 %v4393
    %4860 = vmatpush.bf16.msra.mxu0 %v4386
    %4861 = vmatpush.bf16.msra.mxu0 %v4379
    %4862 = vmatpush.bf16.msra.mxu0 %v4372
    %4863 = vmatpush.bf16.msra.mxu0 %v4365
    %4864 = vmatpush.bf16.msra.mxu0 %v4358
    %4865 = vmatmul.bf16.gmra.mxu0 %v3377
    %v4866 = vpop.f32.mrf.mxu0
    %v4867 = vadd.f32 %v3640, %v4866
    %v4868 = vpop.f32.mrf.mxu0
    %4869 = vdwg.mxu0
    %4870 = vmatpush.bf16.msra.mxu0 %v4463
    %4871 = vmatpush.bf16.msra.mxu0 %v4456
    %4872 = vmatpush.bf16.msra.mxu0 %v4449
    %4873 = vmatpush.bf16.msra.mxu0 %v4442
    %4874 = vmatpush.bf16.msra.mxu0 %v4435
    %4875 = vmatpush.bf16.msra.mxu0 %v4428
    %4876 = vmatpush.bf16.msra.mxu0 %v4421
    %4877 = vmatpush.bf16.msra.mxu0 %v4414
    %4878 = vmatmul.bf16.gmra.mxu0 %v3378
    %v4879 = vpop.f32.mrf.mxu0
    %v4880 = vadd.f32 %v4867, %v4879
    %v4881 = vpop.f32.mrf.mxu0
    %4882 = vdwg.mxu0
    %4883 = vmatpush.bf16.msra.mxu0 %v4519
    %4884 = vmatpush.bf16.msra.mxu0 %v4512
    %4885 = vmatpush.bf16.msra.mxu0 %v4505
    %4886 = vmatpush.bf16.msra.mxu0 %v4498
    %4887 = vmatpush.bf16.msra.mxu0 %v4491
    %4888 = vmatpush.bf16.msra.mxu0 %v4484
    %4889 = vmatpush.bf16.msra.mxu0 %v4477
    %4890 = vmatpush.bf16.msra.mxu0 %v4470
    %4891 = vmatmul.bf16.gmra.mxu0 %v3379
    %v4892 = vpop.f32.mrf.mxu0
    %v4893 = vadd.f32 %v4880, %v4892
    %v4894 = vpop.f32.mrf.mxu0
    %4895 = vdwg.mxu0
    %4896 = vmatpush.bf16.msra.mxu0 %v4575
    %4897 = vmatpush.bf16.msra.mxu0 %v4568
    %4898 = vmatpush.bf16.msra.mxu0 %v4561
    %4899 = vmatpush.bf16.msra.mxu0 %v4554
    %4900 = vmatpush.bf16.msra.mxu0 %v4547
    %4901 = vmatpush.bf16.msra.mxu0 %v4540
    %4902 = vmatpush.bf16.msra.mxu0 %v4533
    %4903 = vmatpush.bf16.msra.mxu0 %v4526
    %4904 = vmatmul.bf16.gmra.mxu0 %v3380
    %v4905 = vpop.f32.mrf.mxu0
    %v4906 = vadd.f32 %v4893, %v4905
    %v4907 = vpop.f32.mrf.mxu0
    %4908 = vdwg.mxu0
    %4909 = vmatpush.bf16.msra.mxu0 %v4408
    %4910 = vmatpush.bf16.msra.mxu0 %v4401
    %4911 = vmatpush.bf16.msra.mxu0 %v4394
    %4912 = vmatpush.bf16.msra.mxu0 %v4387
    %4913 = vmatpush.bf16.msra.mxu0 %v4380
    %4914 = vmatpush.bf16.msra.mxu0 %v4373
    %4915 = vmatpush.bf16.msra.mxu0 %v4366
    %4916 = vmatpush.bf16.msra.mxu0 %v4359
    %4917 = vmatmul.bf16.gmra.mxu0 %v3377
    %v4918 = vpop.f32.mrf.mxu0
    %v4919 = vadd.f32 %v3641, %v4918
    %v4920 = vpop.f32.mrf.mxu0
    %4921 = vdwg.mxu0
    %4922 = vmatpush.bf16.msra.mxu0 %v4464
    %4923 = vmatpush.bf16.msra.mxu0 %v4457
    %4924 = vmatpush.bf16.msra.mxu0 %v4450
    %4925 = vmatpush.bf16.msra.mxu0 %v4443
    %4926 = vmatpush.bf16.msra.mxu0 %v4436
    %4927 = vmatpush.bf16.msra.mxu0 %v4429
    %4928 = vmatpush.bf16.msra.mxu0 %v4422
    %4929 = vmatpush.bf16.msra.mxu0 %v4415
    %4930 = vmatmul.bf16.gmra.mxu0 %v3378
    %v4931 = vpop.f32.mrf.mxu0
    %v4932 = vadd.f32 %v4919, %v4931
    %v4933 = vpop.f32.mrf.mxu0
    %4934 = vdwg.mxu0
    %4935 = vmatpush.bf16.msra.mxu0 %v4520
    %4936 = vmatpush.bf16.msra.mxu0 %v4513
    %4937 = vmatpush.bf16.msra.mxu0 %v4506
    %4938 = vmatpush.bf16.msra.mxu0 %v4499
    %4939 = vmatpush.bf16.msra.mxu0 %v4492
    %4940 = vmatpush.bf16.msra.mxu0 %v4485
    %4941 = vmatpush.bf16.msra.mxu0 %v4478
    %4942 = vmatpush.bf16.msra.mxu0 %v4471
    %4943 = vmatmul.bf16.gmra.mxu0 %v3379
    %v4944 = vpop.f32.mrf.mxu0
    %v4945 = vadd.f32 %v4932, %v4944
    %v4946 = vpop.f32.mrf.mxu0
    %4947 = vdwg.mxu0
    %4948 = vmatpush.bf16.msra.mxu0 %v4576
    %4949 = vmatpush.bf16.msra.mxu0 %v4569
    %4950 = vmatpush.bf16.msra.mxu0 %v4562
    %4951 = vmatpush.bf16.msra.mxu0 %v4555
    %4952 = vmatpush.bf16.msra.mxu0 %v4548
    %4953 = vmatpush.bf16.msra.mxu0 %v4541
    %4954 = vmatpush.bf16.msra.mxu0 %v4534
    %4955 = vmatpush.bf16.msra.mxu0 %v4527
    %4956 = vmatmul.bf16.gmra.mxu0 %v3380
    %v4957 = vpop.f32.mrf.mxu0
    %v4958 = vadd.f32 %v4945, %v4957
    %v4959 = vpop.f32.mrf.mxu0
    %4960 = vdwg.mxu0
    %4961 = vmatpush.bf16.msra.mxu0 %v4409
    %4962 = vmatpush.bf16.msra.mxu0 %v4402
    %4963 = vmatpush.bf16.msra.mxu0 %v4395
    %4964 = vmatpush.bf16.msra.mxu0 %v4388
    %4965 = vmatpush.bf16.msra.mxu0 %v4381
    %4966 = vmatpush.bf16.msra.mxu0 %v4374
    %4967 = vmatpush.bf16.msra.mxu0 %v4367
    %4968 = vmatpush.bf16.msra.mxu0 %v4360
    %4969 = vmatmul.bf16.gmra.mxu0 %v3377
    %v4970 = vpop.f32.mrf.mxu0
    %v4971 = vadd.f32 %v3642, %v4970
    %v4972 = vpop.f32.mrf.mxu0
    %4973 = vdwg.mxu0
    %4974 = vmatpush.bf16.msra.mxu0 %v4465
    %4975 = vmatpush.bf16.msra.mxu0 %v4458
    %4976 = vmatpush.bf16.msra.mxu0 %v4451
    %4977 = vmatpush.bf16.msra.mxu0 %v4444
    %4978 = vmatpush.bf16.msra.mxu0 %v4437
    %4979 = vmatpush.bf16.msra.mxu0 %v4430
    %4980 = vmatpush.bf16.msra.mxu0 %v4423
    %4981 = vmatpush.bf16.msra.mxu0 %v4416
    %4982 = vmatmul.bf16.gmra.mxu0 %v3378
    %v4983 = vpop.f32.mrf.mxu0
    %v4984 = vadd.f32 %v4971, %v4983
    %v4985 = vpop.f32.mrf.mxu0
    %4986 = vdwg.mxu0
    %4987 = vmatpush.bf16.msra.mxu0 %v4521
    %4988 = vmatpush.bf16.msra.mxu0 %v4514
    %4989 = vmatpush.bf16.msra.mxu0 %v4507
    %4990 = vmatpush.bf16.msra.mxu0 %v4500
    %4991 = vmatpush.bf16.msra.mxu0 %v4493
    %4992 = vmatpush.bf16.msra.mxu0 %v4486
    %4993 = vmatpush.bf16.msra.mxu0 %v4479
    %4994 = vmatpush.bf16.msra.mxu0 %v4472
    %4995 = vmatmul.bf16.gmra.mxu0 %v3379
    %v4996 = vpop.f32.mrf.mxu0
    %v4997 = vadd.f32 %v4984, %v4996
    %v4998 = vpop.f32.mrf.mxu0
    %4999 = vdwg.mxu0
    %5000 = vmatpush.bf16.msra.mxu0 %v4577
    %5001 = vmatpush.bf16.msra.mxu0 %v4570
    %5002 = vmatpush.bf16.msra.mxu0 %v4563
    %5003 = vmatpush.bf16.msra.mxu0 %v4556
    %5004 = vmatpush.bf16.msra.mxu0 %v4549
    %5005 = vmatpush.bf16.msra.mxu0 %v4542
    %5006 = vmatpush.bf16.msra.mxu0 %v4535
    %5007 = vmatpush.bf16.msra.mxu0 %v4528
    %5008 = vmatmul.bf16.gmra.mxu0 %v3380
    %v5009 = vpop.f32.mrf.mxu0
    %v5010 = vadd.f32 %v4997, %v5009
    %v5011 = vpop.f32.mrf.mxu0
    %5012 = vdwg.mxu0
    %5013 = vmatpush.bf16.msra.mxu0 %v4410
    %5014 = vmatpush.bf16.msra.mxu0 %v4403
    %5015 = vmatpush.bf16.msra.mxu0 %v4396
    %5016 = vmatpush.bf16.msra.mxu0 %v4389
    %5017 = vmatpush.bf16.msra.mxu0 %v4382
    %5018 = vmatpush.bf16.msra.mxu0 %v4375
    %5019 = vmatpush.bf16.msra.mxu0 %v4368
    %5020 = vmatpush.bf16.msra.mxu0 %v4361
    %5021 = vmatmul.bf16.gmra.mxu0 %v3377
    %v5022 = vpop.f32.mrf.mxu0
    %v5023 = vadd.f32 %v3643, %v5022
    %v5024 = vpop.f32.mrf.mxu0
    %5025 = vdwg.mxu0
    %5026 = vmatpush.bf16.msra.mxu0 %v4466
    %5027 = vmatpush.bf16.msra.mxu0 %v4459
    %5028 = vmatpush.bf16.msra.mxu0 %v4452
    %5029 = vmatpush.bf16.msra.mxu0 %v4445
    %5030 = vmatpush.bf16.msra.mxu0 %v4438
    %5031 = vmatpush.bf16.msra.mxu0 %v4431
    %5032 = vmatpush.bf16.msra.mxu0 %v4424
    %5033 = vmatpush.bf16.msra.mxu0 %v4417
    %5034 = vmatmul.bf16.gmra.mxu0 %v3378
    %v5035 = vpop.f32.mrf.mxu0
    %v5036 = vadd.f32 %v5023, %v5035
    %v5037 = vpop.f32.mrf.mxu0
    %5038 = vdwg.mxu0
    %5039 = vmatpush.bf16.msra.mxu0 %v4522
    %5040 = vmatpush.bf16.msra.mxu0 %v4515
    %5041 = vmatpush.bf16.msra.mxu0 %v4508
    %5042 = vmatpush.bf16.msra.mxu0 %v4501
    %5043 = vmatpush.bf16.msra.mxu0 %v4494
    %5044 = vmatpush.bf16.msra.mxu0 %v4487
    %5045 = vmatpush.bf16.msra.mxu0 %v4480
    %5046 = vmatpush.bf16.msra.mxu0 %v4473
    %5047 = vmatmul.bf16.gmra.mxu0 %v3379
    %v5048 = vpop.f32.mrf.mxu0
    %v5049 = vadd.f32 %v5036, %v5048
    %v5050 = vpop.f32.mrf.mxu0
    %5051 = vdwg.mxu0
    %5052 = vmatpush.bf16.msra.mxu0 %v4578
    %5053 = vmatpush.bf16.msra.mxu0 %v4571
    %5054 = vmatpush.bf16.msra.mxu0 %v4564
    %5055 = vmatpush.bf16.msra.mxu0 %v4557
    %5056 = vmatpush.bf16.msra.mxu0 %v4550
    %5057 = vmatpush.bf16.msra.mxu0 %v4543
    %5058 = vmatpush.bf16.msra.mxu0 %v4536
    %5059 = vmatpush.bf16.msra.mxu0 %v4529
    %5060 = vmatmul.bf16.gmra.mxu0 %v3380
    %v5061 = vpop.f32.mrf.mxu0
    %v5062 = vadd.f32 %v5049, %v5061
    %v5063 = vpop.f32.mrf.mxu0
    %5064 = vdwg.mxu0
    %5065 = vmatpush.bf16.msra.mxu0 %v4411
    %5066 = vmatpush.bf16.msra.mxu0 %v4404
    %5067 = vmatpush.bf16.msra.mxu0 %v4397
    %5068 = vmatpush.bf16.msra.mxu0 %v4390
    %5069 = vmatpush.bf16.msra.mxu0 %v4383
    %5070 = vmatpush.bf16.msra.mxu0 %v4376
    %5071 = vmatpush.bf16.msra.mxu0 %v4369
    %5072 = vmatpush.bf16.msra.mxu0 %v4362
    %5073 = vmatmul.bf16.gmra.mxu0 %v3377
    %v5074 = vpop.f32.mrf.mxu0
    %v5075 = vadd.f32 %v3644, %v5074
    %v5076 = vpop.f32.mrf.mxu0
    %5077 = vdwg.mxu0
    %5078 = vmatpush.bf16.msra.mxu0 %v4467
    %5079 = vmatpush.bf16.msra.mxu0 %v4460
    %5080 = vmatpush.bf16.msra.mxu0 %v4453
    %5081 = vmatpush.bf16.msra.mxu0 %v4446
    %5082 = vmatpush.bf16.msra.mxu0 %v4439
    %5083 = vmatpush.bf16.msra.mxu0 %v4432
    %5084 = vmatpush.bf16.msra.mxu0 %v4425
    %5085 = vmatpush.bf16.msra.mxu0 %v4418
    %5086 = vmatmul.bf16.gmra.mxu0 %v3378
    %v5087 = vpop.f32.mrf.mxu0
    %v5088 = vadd.f32 %v5075, %v5087
    %v5089 = vpop.f32.mrf.mxu0
    %5090 = vdwg.mxu0
    %5091 = vmatpush.bf16.msra.mxu0 %v4523
    %5092 = vmatpush.bf16.msra.mxu0 %v4516
    %5093 = vmatpush.bf16.msra.mxu0 %v4509
    %5094 = vmatpush.bf16.msra.mxu0 %v4502
    %5095 = vmatpush.bf16.msra.mxu0 %v4495
    %5096 = vmatpush.bf16.msra.mxu0 %v4488
    %5097 = vmatpush.bf16.msra.mxu0 %v4481
    %5098 = vmatpush.bf16.msra.mxu0 %v4474
    %5099 = vmatmul.bf16.gmra.mxu0 %v3379
    %v5100 = vpop.f32.mrf.mxu0
    %v5101 = vadd.f32 %v5088, %v5100
    %v5102 = vpop.f32.mrf.mxu0
    %5103 = vdwg.mxu0
    %5104 = vmatpush.bf16.msra.mxu0 %v4579
    %5105 = vmatpush.bf16.msra.mxu0 %v4572
    %5106 = vmatpush.bf16.msra.mxu0 %v4565
    %5107 = vmatpush.bf16.msra.mxu0 %v4558
    %5108 = vmatpush.bf16.msra.mxu0 %v4551
    %5109 = vmatpush.bf16.msra.mxu0 %v4544
    %5110 = vmatpush.bf16.msra.mxu0 %v4537
    %5111 = vmatpush.bf16.msra.mxu0 %v4530
    %5112 = vmatmul.bf16.gmra.mxu0 %v3380
    %v5113 = vpop.f32.mrf.mxu0
    %v5114 = vadd.f32 %v5101, %v5113
    %v5115 = vpop.f32.mrf.mxu0
    %5116 = vdwg.mxu0
    %5117 = vmatpush.bf16.msra.mxu0 %v4412
    %5118 = vmatpush.bf16.msra.mxu0 %v4405
    %5119 = vmatpush.bf16.msra.mxu0 %v4398
    %5120 = vmatpush.bf16.msra.mxu0 %v4391
    %5121 = vmatpush.bf16.msra.mxu0 %v4384
    %5122 = vmatpush.bf16.msra.mxu0 %v4377
    %5123 = vmatpush.bf16.msra.mxu0 %v4370
    %5124 = vmatpush.bf16.msra.mxu0 %v4363
    %5125 = vmatmul.bf16.gmra.mxu0 %v3377
    %v5126 = vpop.f32.mrf.mxu0
    %v5127 = vadd.f32 %v3645, %v5126
    %v5128 = vpop.f32.mrf.mxu0
    %5129 = vdwg.mxu0
    %5130 = vmatpush.bf16.msra.mxu0 %v4468
    %5131 = vmatpush.bf16.msra.mxu0 %v4461
    %5132 = vmatpush.bf16.msra.mxu0 %v4454
    %5133 = vmatpush.bf16.msra.mxu0 %v4447
    %5134 = vmatpush.bf16.msra.mxu0 %v4440
    %5135 = vmatpush.bf16.msra.mxu0 %v4433
    %5136 = vmatpush.bf16.msra.mxu0 %v4426
    %5137 = vmatpush.bf16.msra.mxu0 %v4419
    %5138 = vmatmul.bf16.gmra.mxu0 %v3378
    %v5139 = vpop.f32.mrf.mxu0
    %v5140 = vadd.f32 %v5127, %v5139
    %v5141 = vpop.f32.mrf.mxu0
    %5142 = vdwg.mxu0
    %5143 = vmatpush.bf16.msra.mxu0 %v4524
    %5144 = vmatpush.bf16.msra.mxu0 %v4517
    %5145 = vmatpush.bf16.msra.mxu0 %v4510
    %5146 = vmatpush.bf16.msra.mxu0 %v4503
    %5147 = vmatpush.bf16.msra.mxu0 %v4496
    %5148 = vmatpush.bf16.msra.mxu0 %v4489
    %5149 = vmatpush.bf16.msra.mxu0 %v4482
    %5150 = vmatpush.bf16.msra.mxu0 %v4475
    %5151 = vmatmul.bf16.gmra.mxu0 %v3379
    %v5152 = vpop.f32.mrf.mxu0
    %v5153 = vadd.f32 %v5140, %v5152
    %v5154 = vpop.f32.mrf.mxu0
    %5155 = vdwg.mxu0
    %5156 = vmatpush.bf16.msra.mxu0 %v4580
    %5157 = vmatpush.bf16.msra.mxu0 %v4573
    %5158 = vmatpush.bf16.msra.mxu0 %v4566
    %5159 = vmatpush.bf16.msra.mxu0 %v4559
    %5160 = vmatpush.bf16.msra.mxu0 %v4552
    %5161 = vmatpush.bf16.msra.mxu0 %v4545
    %5162 = vmatpush.bf16.msra.mxu0 %v4538
    %5163 = vmatpush.bf16.msra.mxu0 %v4531
    %5164 = vmatmul.bf16.gmra.mxu0 %v3380
    %v5165 = vpop.f32.mrf.mxu0
    %v5166 = vadd.f32 %v5153, %v5165
    %v5167 = vpop.f32.mrf.mxu0
    %5168 = vdwg.mxu0
    %v5169 = vxor.u32 %v4854, 2147483648
    %v5170 = vxor.u32 %v4906, 2147483648
    %v5171 = vxor.u32 %v4958, 2147483648
    %v5172 = vxor.u32 %v5010, 2147483648
    %v5173 = vxor.u32 %v5062, 2147483648
    %v5174 = vxor.u32 %v5114, 2147483648
    %v5175 = vxor.u32 %v5166, 2147483648
    %v5176 = vmul.f32 %v5169, 1.442695
    %v5177 = vpow.pop %v5176
    %v5178 = vmul.f32 %v5170, 1.442695
    %v5179 = vpow.pop %v5178
    %v5180 = vmul.f32 %v5171, 1.442695
    %v5181 = vpow.pop %v5180
    %v5182 = vmul.f32 %v5172, 1.442695
    %v5183 = vpow.pop %v5182
    %v5184 = vmul.f32 %v5173, 1.442695
    %v5185 = vpow.pop %v5184
    %v5186 = vmul.f32 %v5174, 1.442695
    %v5187 = vpow.pop %v5186
    %v5188 = vmul.f32 %v5175, 1.442695
    %v5189 = vpow.pop %v5188
    %v5190 = vadd.f32 %v5177, 1.0
    %v5191 = vadd.f32 %v5179, 1.0
    %v5192 = vadd.f32 %v5181, 1.0
    %v5193 = vadd.f32 %v5183, 1.0
    %v5194 = vadd.f32 %v5185, 1.0
    %v5195 = vadd.f32 %v5187, 1.0
    %v5196 = vadd.f32 %v5189, 1.0
    %v5197 = vrcp.pop %v5190
    %v5198 = vmul.f32 %v5190, %v5197
    %v5199 = vsub.f32 1.0, %v5198
    %v5200 = vmul.f32 %v5197, %v5199
    %v5201 = vadd.f32 %v5197, %v5200
    %vm5202 = vweird.f32 %v5190
    %vm5203 = vweird.f32 %v5197
    %vm5204 = vmor %vm5202, %vm5203
    %v5205 = vsel %vm5204, %v5197, %v5201
    %v5206 = vand.u32 2147483647, %v5190
    %vm5207 = vcmp.eq.f32.partialorder %v5206, 8.507059e+37
    %v5208 = vand.u32 %v5190, 2147483648
    %v5209 = vor.u32 1.1754944e-38, %v5208
    %v5210 = vsel %vm5207, %v5209, %v5205
    %v5211 = vmul.f32 1.0, %v5210
    %v5212 = vrcp.pop %v5191
    %v5213 = vmul.f32 %v5191, %v5212
    %v5214 = vsub.f32 1.0, %v5213
    %v5215 = vmul.f32 %v5212, %v5214
    %v5216 = vadd.f32 %v5212, %v5215
    %vm5217 = vweird.f32 %v5191
    %vm5218 = vweird.f32 %v5212
    %vm5219 = vmor %vm5217, %vm5218
    %v5220 = vsel %vm5219, %v5212, %v5216
    %v5221 = vand.u32 2147483647, %v5191
    %vm5222 = vcmp.eq.f32.partialorder %v5221, 8.507059e+37
    %v5223 = vand.u32 %v5191, 2147483648
    %v5224 = vor.u32 1.1754944e-38, %v5223
    %v5225 = vsel %vm5222, %v5224, %v5220
    %v5226 = vmul.f32 1.0, %v5225
    %v5227 = vrcp.pop %v5192
    %v5228 = vmul.f32 %v5192, %v5227
    %v5229 = vsub.f32 1.0, %v5228
    %v5230 = vmul.f32 %v5227, %v5229
    %v5231 = vadd.f32 %v5227, %v5230
    %vm5232 = vweird.f32 %v5192
    %vm5233 = vweird.f32 %v5227
    %vm5234 = vmor %vm5232, %vm5233
    %v5235 = vsel %vm5234, %v5227, %v5231
    %v5236 = vand.u32 2147483647, %v5192
    %vm5237 = vcmp.eq.f32.partialorder %v5236, 8.507059e+37
    %v5238 = vand.u32 %v5192, 2147483648
    %v5239 = vor.u32 1.1754944e-38, %v5238
    %v5240 = vsel %vm5237, %v5239, %v5235
    %v5241 = vmul.f32 1.0, %v5240
    %v5242 = vrcp.pop %v5193
    %v5243 = vmul.f32 %v5193, %v5242
    %v5244 = vsub.f32 1.0, %v5243
    %v5245 = vmul.f32 %v5242, %v5244
    %v5246 = vadd.f32 %v5242, %v5245
    %vm5247 = vweird.f32 %v5193
    %vm5248 = vweird.f32 %v5242
    %vm5249 = vmor %vm5247, %vm5248
    %v5250 = vsel %vm5249, %v5242, %v5246
    %v5251 = vand.u32 2147483647, %v5193
    %vm5252 = vcmp.eq.f32.partialorder %v5251, 8.507059e+37
    %v5253 = vand.u32 %v5193, 2147483648
    %v5254 = vor.u32 1.1754944e-38, %v5253
    %v5255 = vsel %vm5252, %v5254, %v5250
    %v5256 = vmul.f32 1.0, %v5255
    %v5257 = vrcp.pop %v5194
    %v5258 = vmul.f32 %v5194, %v5257
    %v5259 = vsub.f32 1.0, %v5258
    %v5260 = vmul.f32 %v5257, %v5259
    %v5261 = vadd.f32 %v5257, %v5260
    %vm5262 = vweird.f32 %v5194
    %vm5263 = vweird.f32 %v5257
    %vm5264 = vmor %vm5262, %vm5263
    %v5265 = vsel %vm5264, %v5257, %v5261
    %v5266 = vand.u32 2147483647, %v5194
    %vm5267 = vcmp.eq.f32.partialorder %v5266, 8.507059e+37
    %v5268 = vand.u32 %v5194, 2147483648
    %v5269 = vor.u32 1.1754944e-38, %v5268
    %v5270 = vsel %vm5267, %v5269, %v5265
    %v5271 = vmul.f32 1.0, %v5270
    %v5272 = vrcp.pop %v5195
    %v5273 = vmul.f32 %v5195, %v5272
    %v5274 = vsub.f32 1.0, %v5273
    %v5275 = vmul.f32 %v5272, %v5274
    %v5276 = vadd.f32 %v5272, %v5275
    %vm5277 = vweird.f32 %v5195
    %vm5278 = vweird.f32 %v5272
    %vm5279 = vmor %vm5277, %vm5278
    %v5280 = vsel %vm5279, %v5272, %v5276
    %v5281 = vand.u32 2147483647, %v5195
    %vm5282 = vcmp.eq.f32.partialorder %v5281, 8.507059e+37
    %v5283 = vand.u32 %v5195, 2147483648
    %v5284 = vor.u32 1.1754944e-38, %v5283
    %v5285 = vsel %vm5282, %v5284, %v5280
    %v5286 = vmul.f32 1.0, %v5285
    %v5287 = vrcp.pop %v5196
    %v5288 = vmul.f32 %v5196, %v5287
    %v5289 = vsub.f32 1.0, %v5288
    %v5290 = vmul.f32 %v5287, %v5289
    %v5291 = vadd.f32 %v5287, %v5290
    %vm5292 = vweird.f32 %v5196
    %vm5293 = vweird.f32 %v5287
    %vm5294 = vmor %vm5292, %vm5293
    %v5295 = vsel %vm5294, %v5287, %v5291
    %v5296 = vand.u32 2147483647, %v5196
    %vm5297 = vcmp.eq.f32.partialorder %v5296, 8.507059e+37
    %v5298 = vand.u32 %v5196, 2147483648
    %v5299 = vor.u32 1.1754944e-38, %v5298
    %v5300 = vsel %vm5297, %v5299, %v5295
    %v5301 = vmul.f32 1.0, %v5300
    %5302 = vst [vmem:[%s17] sm:$0xff] %v5211
    %5303 = vst [vmem:[%s17 + $0x8] sm:$0xff] %v5226
    %5304 = vst [vmem:[%s17 + $0x10] sm:$0xff] %v5241
    %5305 = vst [vmem:[%s17 + $0x18] sm:$0xff] %v5256
    %5306 = vst [vmem:[%s17 + $0x20] sm:$0xff] %v5271
    %5307 = vst [vmem:[%s17 + $0x28] sm:$0xff] %v5286
    %5308 = vst [vmem:[%s17 + $0x30] sm:$0xff] %v5301
    // Predicated region
    $region98: #{autoencoder_forward.1} parent=1 // pred_check
      _
    $region99: #{autoencoder_forward.1} parent=1 // pred_check_branch
      %5310 = sbr.rel (0) target = $region101
    $region100: #{autoencoder_forward.1} parent=1 // pred_region
      _
    $region101: #{autoencoder_forward.1} parent=1 // pred_fallthru
      _
    // Predicated region
    $region102: #{autoencoder_forward.1} parent=1 // pred_check
      _
    $region103: #{autoencoder_forward.1} parent=1 // pred_check_branch
      %5312 = sbr.rel (0) target = $region105
    $region104: #{autoencoder_forward.1} parent=1 // pred_region
      _
    $region105: #{autoencoder_forward.1} parent=1 // pred_fallthru
      _
    %5313 = vsyncpa [#allocation3], 1
    %5314 = vsyncpa [#allocation5], 1
    %5315 = vsyncpa [#allocation8], 1
    %5316 = vsyncpa [#allocation11], 1

</llo_original>
